<compile_context>
chip_gen: v6e
topology: v6e:2x2x1
jax: 0.10.0
libtpu: 0.0.40
codegen_flags: <defaults>
</compile_context>

<pallas_src>
import numpy as np
import jax
import jax.numpy as jnp
from jax import lax
from jax.experimental import pallas as pl
from jax.experimental.pallas import tpu as pltpu

_NEG = -1e30  # mask value for padded logit lanes


# ---------------------------------------------------------------------------
# Fused kernel
# ---------------------------------------------------------------------------
def net_fused_kernel(xt_ref, a1_ref, b1r_ref, a2_ref, b2r_ref,
                     wf1_ref, bf1_ref, wf2_ref, bf2_ref, o_ref):
    # xt_ref : (28, Bt, 28)  image rows major, batch minor, width on lanes
    # a1_ref : (5, 28, 256)  conv1 band weights; lanes = parity*128 + oc*12+ow1
    # b1r_ref: (1, 128)      conv1 bias broadcast over ow1 (padded lanes 0)
    # a2_ref : (5, 128, 256) conv2 band weights; lanes = parity*128 + oc*4+ow3
    # b2r_ref: (1, 128)
    # wf1_ref: (4, 128, 64)  fc1 weights per oh3 slab (padded 80->128, 50->64)
    # bf1_ref: (1, 64)
    # wf2_ref: (64, 128)     fc2 weights (padded)
    # bf2_ref: (1, 128)      fc2 bias; padded lanes = -1e30 (softmax mask)
    # o_ref  : (Bt, 128)     log-probabilities, first 10 lanes valid
    bt = xt_ref.shape[1]
    f32 = jnp.float32

    # ---- conv1 + 2x2 maxpool + relu --------------------------------------
    # Even / odd image rows stacked as (14*Bt, 28), row index = ih2*Bt + b.
    xe = jnp.concatenate([xt_ref[2 * i] for i in range(14)], axis=0)
    xo = jnp.concatenate([xt_ref[2 * i + 1] for i in range(14)], axis=0)

    def rows1(t):                      # x rows t, t+2, ..., t+22 -> (12*Bt, 28)
        base = xe if t % 2 == 0 else xo
        u = t // 2
        return base[u * bt:(u + 12) * bt, :]

    def conv1_acc(s):                  # pre-pool conv1 at output-row parity s
        acc = jnp.zeros((12 * bt, 256), f32)
        for kh in range(5):
            acc = acc + jnp.dot(rows1(s + kh), a1_ref[kh],
                                preferred_element_type=f32)
        return acc

    y = jnp.maximum(conv1_acc(0), conv1_acc(1))       # pool over output-row parity
    y = jnp.maximum(y[:, :128], y[:, 128:])           # pool over output-col parity
    h1 = jnp.maximum(y + b1r_ref[...], 0.0)           # (12*Bt, 128)

    # ---- conv2 + (Dropout2d) + 2x2 maxpool + relu -------------------------
    # TODO(synk): Dropout2d / F.dropout are identity in eval mode; training-mode
    # stochastic dropout (stateful RNG) is not implemented here.
    he = jnp.concatenate(
        [h1[(2 * i) * bt:(2 * i + 1) * bt, :] for i in range(6)], axis=0)
    ho = jnp.concatenate(
        [h1[(2 * i + 1) * bt:(2 * i + 2) * bt, :] for i in range(6)], axis=0)

    def rows2(t):                      # h1 rows t, t+2, t+4, t+6 -> (4*Bt, 128)
        base = he if t % 2 == 0 else ho
        u = t // 2
        return base[u * bt:(u + 4) * bt, :]

    def conv2_acc(s):
        acc = jnp.zeros((4 * bt, 256), f32)
        for kh in range(5):
            acc = acc + jnp.dot(rows2(s + kh), a2_ref[kh],
                                preferred_element_type=f32)
        return acc

    z = jnp.maximum(conv2_acc(0), conv2_acc(1))
    z = jnp.maximum(z[:, :128], z[:, 128:])
    h2 = jnp.maximum(z + b2r_ref[...], 0.0)           # (4*Bt, 128), rows oh3*Bt + b

    # ---- fc1 + relu --------------------------------------------------------
    acc = jnp.zeros((bt, 64), f32)
    for oh in range(4):
        acc = acc + jnp.dot(h2[oh * bt:(oh + 1) * bt, :], wf1_ref[oh],
                            preferred_element_type=f32)
    hfc = jnp.maximum(acc + bf1_ref[...], 0.0)        # (Bt, 64)

    # ---- fc2 + log_softmax (padded lanes masked via -1e30 bias) ------------
    logits = jnp.dot(hfc, wf2_ref[...], preferred_element_type=f32) + bf2_ref[...]
    m = jnp.max(logits, axis=-1, keepdims=True)
    zc = logits - m
    lse = jnp.log(jnp.sum(jnp.exp(zc), axis=-1, keepdims=True))
    o_ref[...] = zc - lse


# ---------------------------------------------------------------------------
# Wrapper
# ---------------------------------------------------------------------------
def _pick_bt(batch):
    for bt in (64, 32, 16, 8):          # keep VMEM footprint modest (v7x: 64 MiB)
        if batch % bt == 0 and batch // bt >= 2:
            return bt                   # >= 2 grid blocks feeds both v7x TCs
    return batch


@jax.jit
def net_forward(x, packed):
    """x: (B, 1, 28, 28) float32 NCHW -> (B, 10) log-probabilities (eval mode)."""
    a1, b1r, a2, b2r, wf1, bf1, wf2, bf2 = packed
    B = x.shape[0]
    bt = _pick_bt(B)
    xt = jnp.transpose(x[:, 0], (1, 0, 2))            # (28, B, 28)

    out_pad = pl.pallas_call(
        net_fused_kernel,
        out_shape=jax.ShapeDtypeStruct((B, 128), jnp.float32),
        grid=(B // bt,),
        in_specs=[
            pl.BlockSpec((28, bt, 28), lambda i: (0, i, 0)),
            pl.BlockSpec((5, 28, 256), lambda i: (0, 0, 0)),
            pl.BlockSpec((1, 128), lambda i: (0, 0)),
            pl.BlockSpec((5, 128, 256), lambda i: (0, 0, 0)),
            pl.BlockSpec((1, 128), lambda i: (0, 0)),
            pl.BlockSpec((4, 128, 64), lambda i: (0, 0, 0)),
            pl.BlockSpec((1, 64), lambda i: (0, 0)),
            pl.BlockSpec((64, 128), lambda i: (0, 0)),
            pl.BlockSpec((1, 128), lambda i: (0, 0)),
        ],
        out_specs=pl.BlockSpec((bt, 128), lambda i: (i, 0)),
        compiler_params=pltpu.CompilerParams(
            dimension_semantics=("parallel",)),
    )(xt, a1, b1r, a2, b2r, wf1, bf1, wf2, bf2)
    return out_pad[:, :10]


# ---------------------------------------------------------------------------
# Pure-JAX reference (for correctness check)
# ---------------------------------------------------------------------------
def ref_forward(x, raw):
    conv1_w, conv1_b, conv2_w, conv2_b, fw1, fb1, fw2, fb2 = raw
    dn = ("NCHW", "OIHW", "NCHW")

    def pool(a):
        return lax.reduce_window(a, -jnp.inf, lax.max,
                                 (1, 1, 2, 2), (1, 1, 2, 2), "VALID")

    c1 = lax.conv_general_dilated(x, conv1_w, (1, 1), "VALID",
                                  dimension_numbers=dn)
    c1 = c1 + conv1_b[None, :, None, None]
    p1 = jnp.maximum(pool(c1), 0.0)
    c2 = lax.conv_general_dilated(p1, conv2_w, (1, 1), "VALID",
                                  dimension_numbers=dn)
    c2 = c2 + conv2_b[None, :, None, None]
    p2 = jnp.maximum(pool(c2), 0.0)
    f = p2.reshape(x.shape[0], 320)
    h = jnp.maximum(f @ fw1 + fb1[None, :], 0.0)
    logits = h @ fw2 + fb2[None, :]
    return jax.nn.log_softmax(logits, axis=-1)


# ---------------------------------------------------------------------------
# Parameter construction and packing into the kernel's layouts
# ---------------------------------------------------------------------------
def pack_params(raw):
    conv1_w, conv1_b, conv2_w, conv2_b, fw1, fb1, fw2, fb2 = [
        np.asarray(a, np.float32) for a in raw]

    # conv1 band weights: A1[kh, iw, p*128 + oc*12 + ow1] = w1[oc,0,kh, iw-(2*ow1+p)]
    A1 = np.zeros((5, 28, 256), np.float32)
    for kh in range(5):
        for oc in range(10):
            for ow in range(12):
                for p in range(2):
                    for kw in range(5):
                        A1[kh, 2 * ow + p + kw, p * 128 + oc * 12 + ow] = \
                            conv1_w[oc, 0, kh, kw]
    b1r = np.zeros((1, 128), np.float32)
    for oc in range(10):
        b1r[0, oc * 12:(oc + 1) * 12] = conv1_b[oc]

    # conv2 band weights: A2[kh, ic*12+iw, p*128 + oc*4 + ow3] = w2[oc,ic,kh, iw-(2*ow3+p)]
    A2 = np.zeros((5, 128, 256), np.float32)
    for kh in range(5):
        for oc in range(20):
            for ow in range(4):
                for p in range(2):
                    for ic in range(10):
                        for kw in range(5):
                            A2[kh, ic * 12 + 2 * ow + p + kw,
                               p * 128 + oc * 4 + ow] = conv2_w[oc, ic, kh, kw]
    b2r = np.zeros((1, 128), np.float32)
    for oc in range(20):
        b2r[0, oc * 4:(oc + 1) * 4] = conv2_b[oc]

    # fc1 split per oh3 slab; torch flatten index = oc*16 + oh*4 + ow (C,H,W)
    W1blk = np.zeros((4, 128, 64), np.float32)
    for oh in range(4):
        for oc in range(20):
            for ow in range(4):
                W1blk[oh, oc * 4 + ow, :50] = fw1[oc * 16 + oh * 4 + ow, :]
    bf1p = np.zeros((1, 64), np.float32)
    bf1p[0, :50] = fb1

    W2pad = np.zeros((64, 128), np.float32)
    W2pad[:50, :10] = fw2
    bf2p = np.full((1, 128), _NEG, np.float32)
    bf2p[0, :10] = fb2

    return tuple(jnp.asarray(a) for a in
                 (A1, b1r, A2, b2r, W1blk, bf1p, W2pad, bf2p))


def make_params(key):
    ks = jax.random.split(key, 8)

    def unif(k, shape, fan_in):
        bound = 1.0 / np.sqrt(float(fan_in))
        return jax.random.uniform(k, shape, jnp.float32, -bound, bound)

    conv1_w = unif(ks[0], (10, 1, 5, 5), 25)
    conv1_b = unif(ks[1], (10,), 25)
    conv2_w = unif(ks[2], (20, 10, 5, 5), 250)
    conv2_b = unif(ks[3], (20,), 250)
    fw1 = unif(ks[4], (320, 50), 320)
    fb1 = unif(ks[5], (50,), 320)
    fw2 = unif(ks[6], (50, 10), 50)
    fb2 = unif(ks[7], (10,), 50)

    raw = (conv1_w, conv1_b, conv2_w, conv2_b, fw1, fb1, fw2, fb2)
    return raw, pack_params(raw)


if __name__ == "__main__":
    key = jax.random.PRNGKey(0)
    kx, kp = jax.random.split(key)
    raw, packed = make_params(kp)

    # 320 = 20*4*4 implies a 28x28 single-channel input (MNIST).
    x = jax.random.normal(kx, (16, 1, 28, 28), jnp.float32)

    out = jax.block_until_ready(net_forward(x, packed))

    ref = ref_forward(x, raw)
    max_err = float(jnp.max(jnp.abs(out - ref)))
    if not bool(jnp.all(jnp.isfinite(out))) or max_err > 1e-3:
        raise RuntimeError(f"mismatch vs reference, max_err={max_err}")

    print("KERNEL_OK")
</pallas_src>

<mosaic_0001>
module attributes {stable_mosaic.version = 11 : i64} {
  func.func @net_fused_kernel(%arg0: i32, %arg1: memref<28x8x28xf32, #tpu.memory_space<vmem>>, %arg2: memref<5x28x256xf32, #tpu.memory_space<vmem>>, %arg3: memref<1x128xf32, #tpu.memory_space<vmem>>, %arg4: memref<5x128x256xf32, #tpu.memory_space<vmem>>, %arg5: memref<1x128xf32, #tpu.memory_space<vmem>>, %arg6: memref<4x128x64xf32, #tpu.memory_space<vmem>>, %arg7: memref<1x64xf32, #tpu.memory_space<vmem>>, %arg8: memref<64x128xf32, #tpu.memory_space<vmem>>, %arg9: memref<1x128xf32, #tpu.memory_space<vmem>>, %arg10: memref<8x128xf32, #tpu.memory_space<vmem>>) attributes {dimension_semantics = [#tpu.dimension_semantics<parallel>], iteration_bounds = array<i64: 2>, scalar_prefetch = 0 : i64, scratch_operands = 0 : i64, tpu.core_type = #tpu.core_type<tc>, window_params = [{transform_indices = @transform_0, window_bounds = array<i64: 28, 8, 28>}, {pipeline_mode = #tpu.pipeline_mode<synchronous>, transform_indices = @transform_1, window_bounds = array<i64: 5, 28, 256>}, {pipeline_mode = #tpu.pipeline_mode<synchronous>, transform_indices = @transform_2, window_bounds = array<i64: 1, 128>}, {pipeline_mode = #tpu.pipeline_mode<synchronous>, transform_indices = @transform_3, window_bounds = array<i64: 5, 128, 256>}, {pipeline_mode = #tpu.pipeline_mode<synchronous>, transform_indices = @transform_4, window_bounds = array<i64: 1, 128>}, {pipeline_mode = #tpu.pipeline_mode<synchronous>, transform_indices = @transform_5, window_bounds = array<i64: 4, 128, 64>}, {pipeline_mode = #tpu.pipeline_mode<synchronous>, transform_indices = @transform_6, window_bounds = array<i64: 1, 64>}, {pipeline_mode = #tpu.pipeline_mode<synchronous>, transform_indices = @transform_7, window_bounds = array<i64: 64, 128>}, {pipeline_mode = #tpu.pipeline_mode<synchronous>, transform_indices = @transform_8, window_bounds = array<i64: 1, 128>}, {transform_indices = @transform_9, window_bounds = array<i64: 8, 128>}]} {
    %c0 = arith.constant 0 : index
    %c0_0 = arith.constant 0 : index
    %c0_1 = arith.constant 0 : index
    %0 = vector.load %arg1[%c0, %c0_0, %c0_1] : memref<28x8x28xf32, #tpu.memory_space<vmem>>, vector<1x8x28xf32>
    %1 = vector.shape_cast %0 : vector<1x8x28xf32> to vector<8x28xf32>
    %c2 = arith.constant 2 : index
    %c0_2 = arith.constant 0 : index
    %c0_3 = arith.constant 0 : index
    %2 = vector.load %arg1[%c2, %c0_2, %c0_3] : memref<28x8x28xf32, #tpu.memory_space<vmem>>, vector<1x8x28xf32>
    %3 = vector.shape_cast %2 : vector<1x8x28xf32> to vector<8x28xf32>
    %c4 = arith.constant 4 : index
    %c0_4 = arith.constant 0 : index
    %c0_5 = arith.constant 0 : index
    %4 = vector.load %arg1[%c4, %c0_4, %c0_5] : memref<28x8x28xf32, #tpu.memory_space<vmem>>, vector<1x8x28xf32>
    %5 = vector.shape_cast %4 : vector<1x8x28xf32> to vector<8x28xf32>
    %c6 = arith.constant 6 : index
    %c0_6 = arith.constant 0 : index
    %c0_7 = arith.constant 0 : index
    %6 = vector.load %arg1[%c6, %c0_6, %c0_7] : memref<28x8x28xf32, #tpu.memory_space<vmem>>, vector<1x8x28xf32>
    %7 = vector.shape_cast %6 : vector<1x8x28xf32> to vector<8x28xf32>
    %c8 = arith.constant 8 : index
    %c0_8 = arith.constant 0 : index
    %c0_9 = arith.constant 0 : index
    %8 = vector.load %arg1[%c8, %c0_8, %c0_9] : memref<28x8x28xf32, #tpu.memory_space<vmem>>, vector<1x8x28xf32>
    %9 = vector.shape_cast %8 : vector<1x8x28xf32> to vector<8x28xf32>
    %c10 = arith.constant 10 : index
    %c0_10 = arith.constant 0 : index
    %c0_11 = arith.constant 0 : index
    %10 = vector.load %arg1[%c10, %c0_10, %c0_11] : memref<28x8x28xf32, #tpu.memory_space<vmem>>, vector<1x8x28xf32>
    %11 = vector.shape_cast %10 : vector<1x8x28xf32> to vector<8x28xf32>
    %c12 = arith.constant 12 : index
    %c0_12 = arith.constant 0 : index
    %c0_13 = arith.constant 0 : index
    %12 = vector.load %arg1[%c12, %c0_12, %c0_13] : memref<28x8x28xf32, #tpu.memory_space<vmem>>, vector<1x8x28xf32>
    %13 = vector.shape_cast %12 : vector<1x8x28xf32> to vector<8x28xf32>
    %c14 = arith.constant 14 : index
    %c0_14 = arith.constant 0 : index
    %c0_15 = arith.constant 0 : index
    %14 = vector.load %arg1[%c14, %c0_14, %c0_15] : memref<28x8x28xf32, #tpu.memory_space<vmem>>, vector<1x8x28xf32>
    %15 = vector.shape_cast %14 : vector<1x8x28xf32> to vector<8x28xf32>
    %c16 = arith.constant 16 : index
    %c0_16 = arith.constant 0 : index
    %c0_17 = arith.constant 0 : index
    %16 = vector.load %arg1[%c16, %c0_16, %c0_17] : memref<28x8x28xf32, #tpu.memory_space<vmem>>, vector<1x8x28xf32>
    %17 = vector.shape_cast %16 : vector<1x8x28xf32> to vector<8x28xf32>
    %c18 = arith.constant 18 : index
    %c0_18 = arith.constant 0 : index
    %c0_19 = arith.constant 0 : index
    %18 = vector.load %arg1[%c18, %c0_18, %c0_19] : memref<28x8x28xf32, #tpu.memory_space<vmem>>, vector<1x8x28xf32>
    %19 = vector.shape_cast %18 : vector<1x8x28xf32> to vector<8x28xf32>
    %c20 = arith.constant 20 : index
    %c0_20 = arith.constant 0 : index
    %c0_21 = arith.constant 0 : index
    %20 = vector.load %arg1[%c20, %c0_20, %c0_21] : memref<28x8x28xf32, #tpu.memory_space<vmem>>, vector<1x8x28xf32>
    %21 = vector.shape_cast %20 : vector<1x8x28xf32> to vector<8x28xf32>
    %c22 = arith.constant 22 : index
    %c0_22 = arith.constant 0 : index
    %c0_23 = arith.constant 0 : index
    %22 = vector.load %arg1[%c22, %c0_22, %c0_23] : memref<28x8x28xf32, #tpu.memory_space<vmem>>, vector<1x8x28xf32>
    %23 = vector.shape_cast %22 : vector<1x8x28xf32> to vector<8x28xf32>
    %c24 = arith.constant 24 : index
    %c0_24 = arith.constant 0 : index
    %c0_25 = arith.constant 0 : index
    %24 = vector.load %arg1[%c24, %c0_24, %c0_25] : memref<28x8x28xf32, #tpu.memory_space<vmem>>, vector<1x8x28xf32>
    %25 = vector.shape_cast %24 : vector<1x8x28xf32> to vector<8x28xf32>
    %c26 = arith.constant 26 : index
    %c0_26 = arith.constant 0 : index
    %c0_27 = arith.constant 0 : index
    %26 = vector.load %arg1[%c26, %c0_26, %c0_27] : memref<28x8x28xf32, #tpu.memory_space<vmem>>, vector<1x8x28xf32>
    %27 = vector.shape_cast %26 : vector<1x8x28xf32> to vector<8x28xf32>
    %28 = tpu.concatenate %1, %3, %5, %7, %9, %11, %13, %15, %17, %19, %21, %23, %25, %27 in 0 : vector<8x28xf32>, vector<8x28xf32>, vector<8x28xf32>, vector<8x28xf32>, vector<8x28xf32>, vector<8x28xf32>, vector<8x28xf32>, vector<8x28xf32>, vector<8x28xf32>, vector<8x28xf32>, vector<8x28xf32>, vector<8x28xf32>, vector<8x28xf32>, vector<8x28xf32> -> vector<112x28xf32>
    %c1 = arith.constant 1 : index
    %c0_28 = arith.constant 0 : index
    %c0_29 = arith.constant 0 : index
    %29 = vector.load %arg1[%c1, %c0_28, %c0_29] : memref<28x8x28xf32, #tpu.memory_space<vmem>>, vector<1x8x28xf32>
    %30 = vector.shape_cast %29 : vector<1x8x28xf32> to vector<8x28xf32>
    %c3 = arith.constant 3 : index
    %c0_30 = arith.constant 0 : index
    %c0_31 = arith.constant 0 : index
    %31 = vector.load %arg1[%c3, %c0_30, %c0_31] : memref<28x8x28xf32, #tpu.memory_space<vmem>>, vector<1x8x28xf32>
    %32 = vector.shape_cast %31 : vector<1x8x28xf32> to vector<8x28xf32>
    %c5 = arith.constant 5 : index
    %c0_32 = arith.constant 0 : index
    %c0_33 = arith.constant 0 : index
    %33 = vector.load %arg1[%c5, %c0_32, %c0_33] : memref<28x8x28xf32, #tpu.memory_space<vmem>>, vector<1x8x28xf32>
    %34 = vector.shape_cast %33 : vector<1x8x28xf32> to vector<8x28xf32>
    %c7 = arith.constant 7 : index
    %c0_34 = arith.constant 0 : index
    %c0_35 = arith.constant 0 : index
    %35 = vector.load %arg1[%c7, %c0_34, %c0_35] : memref<28x8x28xf32, #tpu.memory_space<vmem>>, vector<1x8x28xf32>
    %36 = vector.shape_cast %35 : vector<1x8x28xf32> to vector<8x28xf32>
    %c9 = arith.constant 9 : index
    %c0_36 = arith.constant 0 : index
    %c0_37 = arith.constant 0 : index
    %37 = vector.load %arg1[%c9, %c0_36, %c0_37] : memref<28x8x28xf32, #tpu.memory_space<vmem>>, vector<1x8x28xf32>
    %38 = vector.shape_cast %37 : vector<1x8x28xf32> to vector<8x28xf32>
    %c11 = arith.constant 11 : index
    %c0_38 = arith.constant 0 : index
    %c0_39 = arith.constant 0 : index
    %39 = vector.load %arg1[%c11, %c0_38, %c0_39] : memref<28x8x28xf32, #tpu.memory_space<vmem>>, vector<1x8x28xf32>
    %40 = vector.shape_cast %39 : vector<1x8x28xf32> to vector<8x28xf32>
    %c13 = arith.constant 13 : index
    %c0_40 = arith.constant 0 : index
    %c0_41 = arith.constant 0 : index
    %41 = vector.load %arg1[%c13, %c0_40, %c0_41] : memref<28x8x28xf32, #tpu.memory_space<vmem>>, vector<1x8x28xf32>
    %42 = vector.shape_cast %41 : vector<1x8x28xf32> to vector<8x28xf32>
    %c15 = arith.constant 15 : index
    %c0_42 = arith.constant 0 : index
    %c0_43 = arith.constant 0 : index
    %43 = vector.load %arg1[%c15, %c0_42, %c0_43] : memref<28x8x28xf32, #tpu.memory_space<vmem>>, vector<1x8x28xf32>
    %44 = vector.shape_cast %43 : vector<1x8x28xf32> to vector<8x28xf32>
    %c17 = arith.constant 17 : index
    %c0_44 = arith.constant 0 : index
    %c0_45 = arith.constant 0 : index
    %45 = vector.load %arg1[%c17, %c0_44, %c0_45] : memref<28x8x28xf32, #tpu.memory_space<vmem>>, vector<1x8x28xf32>
    %46 = vector.shape_cast %45 : vector<1x8x28xf32> to vector<8x28xf32>
    %c19 = arith.constant 19 : index
    %c0_46 = arith.constant 0 : index
    %c0_47 = arith.constant 0 : index
    %47 = vector.load %arg1[%c19, %c0_46, %c0_47] : memref<28x8x28xf32, #tpu.memory_space<vmem>>, vector<1x8x28xf32>
    %48 = vector.shape_cast %47 : vector<1x8x28xf32> to vector<8x28xf32>
    %c21 = arith.constant 21 : index
    %c0_48 = arith.constant 0 : index
    %c0_49 = arith.constant 0 : index
    %49 = vector.load %arg1[%c21, %c0_48, %c0_49] : memref<28x8x28xf32, #tpu.memory_space<vmem>>, vector<1x8x28xf32>
    %50 = vector.shape_cast %49 : vector<1x8x28xf32> to vector<8x28xf32>
    %c23 = arith.constant 23 : index
    %c0_50 = arith.constant 0 : index
    %c0_51 = arith.constant 0 : index
    %51 = vector.load %arg1[%c23, %c0_50, %c0_51] : memref<28x8x28xf32, #tpu.memory_space<vmem>>, vector<1x8x28xf32>
    %52 = vector.shape_cast %51 : vector<1x8x28xf32> to vector<8x28xf32>
    %c25 = arith.constant 25 : index
    %c0_52 = arith.constant 0 : index
    %c0_53 = arith.constant 0 : index
    %53 = vector.load %arg1[%c25, %c0_52, %c0_53] : memref<28x8x28xf32, #tpu.memory_space<vmem>>, vector<1x8x28xf32>
    %54 = vector.shape_cast %53 : vector<1x8x28xf32> to vector<8x28xf32>
    %c27 = arith.constant 27 : index
    %c0_54 = arith.constant 0 : index
    %c0_55 = arith.constant 0 : index
    %55 = vector.load %arg1[%c27, %c0_54, %c0_55] : memref<28x8x28xf32, #tpu.memory_space<vmem>>, vector<1x8x28xf32>
    %56 = vector.shape_cast %55 : vector<1x8x28xf32> to vector<8x28xf32>
    %57 = tpu.concatenate %30, %32, %34, %36, %38, %40, %42, %44, %46, %48, %50, %52, %54, %56 in 0 : vector<8x28xf32>, vector<8x28xf32>, vector<8x28xf32>, vector<8x28xf32>, vector<8x28xf32>, vector<8x28xf32>, vector<8x28xf32>, vector<8x28xf32>, vector<8x28xf32>, vector<8x28xf32>, vector<8x28xf32>, vector<8x28xf32>, vector<8x28xf32>, vector<8x28xf32> -> vector<112x28xf32>
    %cst = arith.constant 0.000000e+00 : f32
    %58 = vector.broadcast %cst : f32 to vector<96x256xf32>
    %59 = vector.extract_strided_slice %28 {offsets = [0, 0], sizes = [96, 28], strides = [1, 1]} : vector<112x28xf32> to vector<96x28xf32>
    %c0_56 = arith.constant 0 : index
    %c0_57 = arith.constant 0 : index
    %c0_58 = arith.constant 0 : index
    %60 = vector.load %arg2[%c0_56, %c0_57, %c0_58] : memref<5x28x256xf32, #tpu.memory_space<vmem>>, vector<1x28x256xf32>
    %61 = vector.shape_cast %60 : vector<1x28x256xf32> to vector<28x256xf32>
    %cst_59 = arith.constant dense<0.000000e+00> : vector<96x256xf32>
    %62 = tpu.matmul %59, %61, %cst_59 {dimension_numbers = #tpu.dot_dimension_numbers<[1], [0], [0], [1], [0, 0, 1, 1], [], []>} : vector<96x28xf32>, vector<28x256xf32>, vector<96x256xf32> -> vector<96x256xf32>
    %63 = arith.addf %58, %62 : vector<96x256xf32>
    %64 = vector.extract_strided_slice %57 {offsets = [0, 0], sizes = [96, 28], strides = [1, 1]} : vector<112x28xf32> to vector<96x28xf32>
    %c1_60 = arith.constant 1 : index
    %c0_61 = arith.constant 0 : index
    %c0_62 = arith.constant 0 : index
    %65 = vector.load %arg2[%c1_60, %c0_61, %c0_62] : memref<5x28x256xf32, #tpu.memory_space<vmem>>, vector<1x28x256xf32>
    %66 = vector.shape_cast %65 : vector<1x28x256xf32> to vector<28x256xf32>
    %cst_63 = arith.constant dense<0.000000e+00> : vector<96x256xf32>
    %67 = tpu.matmul %64, %66, %cst_63 {dimension_numbers = #tpu.dot_dimension_numbers<[1], [0], [0], [1], [0, 0, 1, 1], [], []>} : vector<96x28xf32>, vector<28x256xf32>, vector<96x256xf32> -> vector<96x256xf32>
    %68 = arith.addf %63, %67 : vector<96x256xf32>
    %69 = vector.extract_strided_slice %28 {offsets = [8, 0], sizes = [96, 28], strides = [1, 1]} : vector<112x28xf32> to vector<96x28xf32>
    %c2_64 = arith.constant 2 : index
    %c0_65 = arith.constant 0 : index
    %c0_66 = arith.constant 0 : index
    %70 = vector.load %arg2[%c2_64, %c0_65, %c0_66] : memref<5x28x256xf32, #tpu.memory_space<vmem>>, vector<1x28x256xf32>
    %71 = vector.shape_cast %70 : vector<1x28x256xf32> to vector<28x256xf32>
    %cst_67 = arith.constant dense<0.000000e+00> : vector<96x256xf32>
    %72 = tpu.matmul %69, %71, %cst_67 {dimension_numbers = #tpu.dot_dimension_numbers<[1], [0], [0], [1], [0, 0, 1, 1], [], []>} : vector<96x28xf32>, vector<28x256xf32>, vector<96x256xf32> -> vector<96x256xf32>
    %73 = arith.addf %68, %72 : vector<96x256xf32>
    %74 = vector.extract_strided_slice %57 {offsets = [8, 0], sizes = [96, 28], strides = [1, 1]} : vector<112x28xf32> to vector<96x28xf32>
    %c3_68 = arith.constant 3 : index
    %c0_69 = arith.constant 0 : index
    %c0_70 = arith.constant 0 : index
    %75 = vector.load %arg2[%c3_68, %c0_69, %c0_70] : memref<5x28x256xf32, #tpu.memory_space<vmem>>, vector<1x28x256xf32>
    %76 = vector.shape_cast %75 : vector<1x28x256xf32> to vector<28x256xf32>
    %cst_71 = arith.constant dense<0.000000e+00> : vector<96x256xf32>
    %77 = tpu.matmul %74, %76, %cst_71 {dimension_numbers = #tpu.dot_dimension_numbers<[1], [0], [0], [1], [0, 0, 1, 1], [], []>} : vector<96x28xf32>, vector<28x256xf32>, vector<96x256xf32> -> vector<96x256xf32>
    %78 = arith.addf %73, %77 : vector<96x256xf32>
    %79 = vector.extract_strided_slice %28 {offsets = [16, 0], sizes = [96, 28], strides = [1, 1]} : vector<112x28xf32> to vector<96x28xf32>
    %c4_72 = arith.constant 4 : index
    %c0_73 = arith.constant 0 : index
    %c0_74 = arith.constant 0 : index
    %80 = vector.load %arg2[%c4_72, %c0_73, %c0_74] : memref<5x28x256xf32, #tpu.memory_space<vmem>>, vector<1x28x256xf32>
    %81 = vector.shape_cast %80 : vector<1x28x256xf32> to vector<28x256xf32>
    %cst_75 = arith.constant dense<0.000000e+00> : vector<96x256xf32>
    %82 = tpu.matmul %79, %81, %cst_75 {dimension_numbers = #tpu.dot_dimension_numbers<[1], [0], [0], [1], [0, 0, 1, 1], [], []>} : vector<96x28xf32>, vector<28x256xf32>, vector<96x256xf32> -> vector<96x256xf32>
    %83 = arith.addf %78, %82 : vector<96x256xf32>
    %cst_76 = arith.constant 0.000000e+00 : f32
    %84 = vector.broadcast %cst_76 : f32 to vector<96x256xf32>
    %85 = vector.extract_strided_slice %57 {offsets = [0, 0], sizes = [96, 28], strides = [1, 1]} : vector<112x28xf32> to vector<96x28xf32>
    %c0_77 = arith.constant 0 : index
    %c0_78 = arith.constant 0 : index
    %c0_79 = arith.constant 0 : index
    %86 = vector.load %arg2[%c0_77, %c0_78, %c0_79] : memref<5x28x256xf32, #tpu.memory_space<vmem>>, vector<1x28x256xf32>
    %87 = vector.shape_cast %86 : vector<1x28x256xf32> to vector<28x256xf32>
    %cst_80 = arith.constant dense<0.000000e+00> : vector<96x256xf32>
    %88 = tpu.matmul %85, %87, %cst_80 {dimension_numbers = #tpu.dot_dimension_numbers<[1], [0], [0], [1], [0, 0, 1, 1], [], []>} : vector<96x28xf32>, vector<28x256xf32>, vector<96x256xf32> -> vector<96x256xf32>
    %89 = arith.addf %84, %88 : vector<96x256xf32>
    %90 = vector.extract_strided_slice %28 {offsets = [8, 0], sizes = [96, 28], strides = [1, 1]} : vector<112x28xf32> to vector<96x28xf32>
    %c1_81 = arith.constant 1 : index
    %c0_82 = arith.constant 0 : index
    %c0_83 = arith.constant 0 : index
    %91 = vector.load %arg2[%c1_81, %c0_82, %c0_83] : memref<5x28x256xf32, #tpu.memory_space<vmem>>, vector<1x28x256xf32>
    %92 = vector.shape_cast %91 : vector<1x28x256xf32> to vector<28x256xf32>
    %cst_84 = arith.constant dense<0.000000e+00> : vector<96x256xf32>
    %93 = tpu.matmul %90, %92, %cst_84 {dimension_numbers = #tpu.dot_dimension_numbers<[1], [0], [0], [1], [0, 0, 1, 1], [], []>} : vector<96x28xf32>, vector<28x256xf32>, vector<96x256xf32> -> vector<96x256xf32>
    %94 = arith.addf %89, %93 : vector<96x256xf32>
    %95 = vector.extract_strided_slice %57 {offsets = [8, 0], sizes = [96, 28], strides = [1, 1]} : vector<112x28xf32> to vector<96x28xf32>
    %c2_85 = arith.constant 2 : index
    %c0_86 = arith.constant 0 : index
    %c0_87 = arith.constant 0 : index
    %96 = vector.load %arg2[%c2_85, %c0_86, %c0_87] : memref<5x28x256xf32, #tpu.memory_space<vmem>>, vector<1x28x256xf32>
    %97 = vector.shape_cast %96 : vector<1x28x256xf32> to vector<28x256xf32>
    %cst_88 = arith.constant dense<0.000000e+00> : vector<96x256xf32>
    %98 = tpu.matmul %95, %97, %cst_88 {dimension_numbers = #tpu.dot_dimension_numbers<[1], [0], [0], [1], [0, 0, 1, 1], [], []>} : vector<96x28xf32>, vector<28x256xf32>, vector<96x256xf32> -> vector<96x256xf32>
    %99 = arith.addf %94, %98 : vector<96x256xf32>
    %100 = vector.extract_strided_slice %28 {offsets = [16, 0], sizes = [96, 28], strides = [1, 1]} : vector<112x28xf32> to vector<96x28xf32>
    %c3_89 = arith.constant 3 : index
    %c0_90 = arith.constant 0 : index
    %c0_91 = arith.constant 0 : index
    %101 = vector.load %arg2[%c3_89, %c0_90, %c0_91] : memref<5x28x256xf32, #tpu.memory_space<vmem>>, vector<1x28x256xf32>
    %102 = vector.shape_cast %101 : vector<1x28x256xf32> to vector<28x256xf32>
    %cst_92 = arith.constant dense<0.000000e+00> : vector<96x256xf32>
    %103 = tpu.matmul %100, %102, %cst_92 {dimension_numbers = #tpu.dot_dimension_numbers<[1], [0], [0], [1], [0, 0, 1, 1], [], []>} : vector<96x28xf32>, vector<28x256xf32>, vector<96x256xf32> -> vector<96x256xf32>
    %104 = arith.addf %99, %103 : vector<96x256xf32>
    %105 = vector.extract_strided_slice %57 {offsets = [16, 0], sizes = [96, 28], strides = [1, 1]} : vector<112x28xf32> to vector<96x28xf32>
    %c4_93 = arith.constant 4 : index
    %c0_94 = arith.constant 0 : index
    %c0_95 = arith.constant 0 : index
    %106 = vector.load %arg2[%c4_93, %c0_94, %c0_95] : memref<5x28x256xf32, #tpu.memory_space<vmem>>, vector<1x28x256xf32>
    %107 = vector.shape_cast %106 : vector<1x28x256xf32> to vector<28x256xf32>
    %cst_96 = arith.constant dense<0.000000e+00> : vector<96x256xf32>
    %108 = tpu.matmul %105, %107, %cst_96 {dimension_numbers = #tpu.dot_dimension_numbers<[1], [0], [0], [1], [0, 0, 1, 1], [], []>} : vector<96x28xf32>, vector<28x256xf32>, vector<96x256xf32> -> vector<96x256xf32>
    %109 = arith.addf %104, %108 : vector<96x256xf32>
    %110 = arith.maximumf %83, %109 : vector<96x256xf32>
    %111 = vector.extract_strided_slice %110 {offsets = [0, 0], sizes = [96, 128], strides = [1, 1]} : vector<96x256xf32> to vector<96x128xf32>
    %112 = vector.extract_strided_slice %110 {offsets = [0, 128], sizes = [96, 128], strides = [1, 1]} : vector<96x256xf32> to vector<96x128xf32>
    %113 = arith.maximumf %111, %112 : vector<96x128xf32>
    %c0_97 = arith.constant 0 : index
    %c0_98 = arith.constant 0 : index
    %114 = vector.load %arg3[%c0_97, %c0_98] : memref<1x128xf32, #tpu.memory_space<vmem>>, vector<1x128xf32>
    %115 = vector.broadcast %114 : vector<1x128xf32> to vector<96x128xf32>
    %116 = arith.addf %113, %115 : vector<96x128xf32>
    %cst_99 = arith.constant 0.000000e+00 : f32
    %117 = vector.broadcast %cst_99 : f32 to vector<96x128xf32>
    %118 = arith.maximumf %116, %117 : vector<96x128xf32>
    %119 = vector.extract_strided_slice %118 {offsets = [0, 0], sizes = [8, 128], strides = [1, 1]} : vector<96x128xf32> to vector<8x128xf32>
    %120 = vector.extract_strided_slice %118 {offsets = [16, 0], sizes = [8, 128], strides = [1, 1]} : vector<96x128xf32> to vector<8x128xf32>
    %121 = vector.extract_strided_slice %118 {offsets = [32, 0], sizes = [8, 128], strides = [1, 1]} : vector<96x128xf32> to vector<8x128xf32>
    %122 = vector.extract_strided_slice %118 {offsets = [48, 0], sizes = [8, 128], strides = [1, 1]} : vector<96x128xf32> to vector<8x128xf32>
    %123 = vector.extract_strided_slice %118 {offsets = [64, 0], sizes = [8, 128], strides = [1, 1]} : vector<96x128xf32> to vector<8x128xf32>
    %124 = vector.extract_strided_slice %118 {offsets = [80, 0], sizes = [8, 128], strides = [1, 1]} : vector<96x128xf32> to vector<8x128xf32>
    %125 = tpu.concatenate %119, %120, %121, %122, %123, %124 in 0 : vector<8x128xf32>, vector<8x128xf32>, vector<8x128xf32>, vector<8x128xf32>, vector<8x128xf32>, vector<8x128xf32> -> vector<48x128xf32>
    %126 = vector.extract_strided_slice %118 {offsets = [8, 0], sizes = [8, 128], strides = [1, 1]} : vector<96x128xf32> to vector<8x128xf32>
    %127 = vector.extract_strided_slice %118 {offsets = [24, 0], sizes = [8, 128], strides = [1, 1]} : vector<96x128xf32> to vector<8x128xf32>
    %128 = vector.extract_strided_slice %118 {offsets = [40, 0], sizes = [8, 128], strides = [1, 1]} : vector<96x128xf32> to vector<8x128xf32>
    %129 = vector.extract_strided_slice %118 {offsets = [56, 0], sizes = [8, 128], strides = [1, 1]} : vector<96x128xf32> to vector<8x128xf32>
    %130 = vector.extract_strided_slice %118 {offsets = [72, 0], sizes = [8, 128], strides = [1, 1]} : vector<96x128xf32> to vector<8x128xf32>
    %131 = vector.extract_strided_slice %118 {offsets = [88, 0], sizes = [8, 128], strides = [1, 1]} : vector<96x128xf32> to vector<8x128xf32>
    %132 = tpu.concatenate %126, %127, %128, %129, %130, %131 in 0 : vector<8x128xf32>, vector<8x128xf32>, vector<8x128xf32>, vector<8x128xf32>, vector<8x128xf32>, vector<8x128xf32> -> vector<48x128xf32>
    %cst_100 = arith.constant 0.000000e+00 : f32
    %133 = vector.broadcast %cst_100 : f32 to vector<32x256xf32>
    %134 = vector.extract_strided_slice %125 {offsets = [0, 0], sizes = [32, 128], strides = [1, 1]} : vector<48x128xf32> to vector<32x128xf32>
    %c0_101 = arith.constant 0 : index
    %c0_102 = arith.constant 0 : index
    %c0_103 = arith.constant 0 : index
    %135 = vector.load %arg4[%c0_101, %c0_102, %c0_103] : memref<5x128x256xf32, #tpu.memory_space<vmem>>, vector<1x128x256xf32>
    %136 = vector.shape_cast %135 : vector<1x128x256xf32> to vector<128x256xf32>
    %cst_104 = arith.constant dense<0.000000e+00> : vector<32x256xf32>
    %137 = tpu.matmul %134, %136, %cst_104 {dimension_numbers = #tpu.dot_dimension_numbers<[1], [0], [0], [1], [0, 0, 1, 1], [], []>} : vector<32x128xf32>, vector<128x256xf32>, vector<32x256xf32> -> vector<32x256xf32>
    %138 = arith.addf %133, %137 : vector<32x256xf32>
    %139 = vector.extract_strided_slice %132 {offsets = [0, 0], sizes = [32, 128], strides = [1, 1]} : vector<48x128xf32> to vector<32x128xf32>
    %c1_105 = arith.constant 1 : index
    %c0_106 = arith.constant 0 : index
    %c0_107 = arith.constant 0 : index
    %140 = vector.load %arg4[%c1_105, %c0_106, %c0_107] : memref<5x128x256xf32, #tpu.memory_space<vmem>>, vector<1x128x256xf32>
    %141 = vector.shape_cast %140 : vector<1x128x256xf32> to vector<128x256xf32>
    %cst_108 = arith.constant dense<0.000000e+00> : vector<32x256xf32>
    %142 = tpu.matmul %139, %141, %cst_108 {dimension_numbers = #tpu.dot_dimension_numbers<[1], [0], [0], [1], [0, 0, 1, 1], [], []>} : vector<32x128xf32>, vector<128x256xf32>, vector<32x256xf32> -> vector<32x256xf32>
    %143 = arith.addf %138, %142 : vector<32x256xf32>
    %144 = vector.extract_strided_slice %125 {offsets = [8, 0], sizes = [32, 128], strides = [1, 1]} : vector<48x128xf32> to vector<32x128xf32>
    %c2_109 = arith.constant 2 : index
    %c0_110 = arith.constant 0 : index
    %c0_111 = arith.constant 0 : index
    %145 = vector.load %arg4[%c2_109, %c0_110, %c0_111] : memref<5x128x256xf32, #tpu.memory_space<vmem>>, vector<1x128x256xf32>
    %146 = vector.shape_cast %145 : vector<1x128x256xf32> to vector<128x256xf32>
    %cst_112 = arith.constant dense<0.000000e+00> : vector<32x256xf32>
    %147 = tpu.matmul %144, %146, %cst_112 {dimension_numbers = #tpu.dot_dimension_numbers<[1], [0], [0], [1], [0, 0, 1, 1], [], []>} : vector<32x128xf32>, vector<128x256xf32>, vector<32x256xf32> -> vector<32x256xf32>
    %148 = arith.addf %143, %147 : vector<32x256xf32>
    %149 = vector.extract_strided_slice %132 {offsets = [8, 0], sizes = [32, 128], strides = [1, 1]} : vector<48x128xf32> to vector<32x128xf32>
    %c3_113 = arith.constant 3 : index
    %c0_114 = arith.constant 0 : index
    %c0_115 = arith.constant 0 : index
    %150 = vector.load %arg4[%c3_113, %c0_114, %c0_115] : memref<5x128x256xf32, #tpu.memory_space<vmem>>, vector<1x128x256xf32>
    %151 = vector.shape_cast %150 : vector<1x128x256xf32> to vector<128x256xf32>
    %cst_116 = arith.constant dense<0.000000e+00> : vector<32x256xf32>
    %152 = tpu.matmul %149, %151, %cst_116 {dimension_numbers = #tpu.dot_dimension_numbers<[1], [0], [0], [1], [0, 0, 1, 1], [], []>} : vector<32x128xf32>, vector<128x256xf32>, vector<32x256xf32> -> vector<32x256xf32>
    %153 = arith.addf %148, %152 : vector<32x256xf32>
    %154 = vector.extract_strided_slice %125 {offsets = [16, 0], sizes = [32, 128], strides = [1, 1]} : vector<48x128xf32> to vector<32x128xf32>
    %c4_117 = arith.constant 4 : index
    %c0_118 = arith.constant 0 : index
    %c0_119 = arith.constant 0 : index
    %155 = vector.load %arg4[%c4_117, %c0_118, %c0_119] : memref<5x128x256xf32, #tpu.memory_space<vmem>>, vector<1x128x256xf32>
    %156 = vector.shape_cast %155 : vector<1x128x256xf32> to vector<128x256xf32>
    %cst_120 = arith.constant dense<0.000000e+00> : vector<32x256xf32>
    %157 = tpu.matmul %154, %156, %cst_120 {dimension_numbers = #tpu.dot_dimension_numbers<[1], [0], [0], [1], [0, 0, 1, 1], [], []>} : vector<32x128xf32>, vector<128x256xf32>, vector<32x256xf32> -> vector<32x256xf32>
    %158 = arith.addf %153, %157 : vector<32x256xf32>
    %cst_121 = arith.constant 0.000000e+00 : f32
    %159 = vector.broadcast %cst_121 : f32 to vector<32x256xf32>
    %160 = vector.extract_strided_slice %132 {offsets = [0, 0], sizes = [32, 128], strides = [1, 1]} : vector<48x128xf32> to vector<32x128xf32>
    %c0_122 = arith.constant 0 : index
    %c0_123 = arith.constant 0 : index
    %c0_124 = arith.constant 0 : index
    %161 = vector.load %arg4[%c0_122, %c0_123, %c0_124] : memref<5x128x256xf32, #tpu.memory_space<vmem>>, vector<1x128x256xf32>
    %162 = vector.shape_cast %161 : vector<1x128x256xf32> to vector<128x256xf32>
    %cst_125 = arith.constant dense<0.000000e+00> : vector<32x256xf32>
    %163 = tpu.matmul %160, %162, %cst_125 {dimension_numbers = #tpu.dot_dimension_numbers<[1], [0], [0], [1], [0, 0, 1, 1], [], []>} : vector<32x128xf32>, vector<128x256xf32>, vector<32x256xf32> -> vector<32x256xf32>
    %164 = arith.addf %159, %163 : vector<32x256xf32>
    %165 = vector.extract_strided_slice %125 {offsets = [8, 0], sizes = [32, 128], strides = [1, 1]} : vector<48x128xf32> to vector<32x128xf32>
    %c1_126 = arith.constant 1 : index
    %c0_127 = arith.constant 0 : index
    %c0_128 = arith.constant 0 : index
    %166 = vector.load %arg4[%c1_126, %c0_127, %c0_128] : memref<5x128x256xf32, #tpu.memory_space<vmem>>, vector<1x128x256xf32>
    %167 = vector.shape_cast %166 : vector<1x128x256xf32> to vector<128x256xf32>
    %cst_129 = arith.constant dense<0.000000e+00> : vector<32x256xf32>
    %168 = tpu.matmul %165, %167, %cst_129 {dimension_numbers = #tpu.dot_dimension_numbers<[1], [0], [0], [1], [0, 0, 1, 1], [], []>} : vector<32x128xf32>, vector<128x256xf32>, vector<32x256xf32> -> vector<32x256xf32>
    %169 = arith.addf %164, %168 : vector<32x256xf32>
    %170 = vector.extract_strided_slice %132 {offsets = [8, 0], sizes = [32, 128], strides = [1, 1]} : vector<48x128xf32> to vector<32x128xf32>
    %c2_130 = arith.constant 2 : index
    %c0_131 = arith.constant 0 : index
    %c0_132 = arith.constant 0 : index
    %171 = vector.load %arg4[%c2_130, %c0_131, %c0_132] : memref<5x128x256xf32, #tpu.memory_space<vmem>>, vector<1x128x256xf32>
    %172 = vector.shape_cast %171 : vector<1x128x256xf32> to vector<128x256xf32>
    %cst_133 = arith.constant dense<0.000000e+00> : vector<32x256xf32>
    %173 = tpu.matmul %170, %172, %cst_133 {dimension_numbers = #tpu.dot_dimension_numbers<[1], [0], [0], [1], [0, 0, 1, 1], [], []>} : vector<32x128xf32>, vector<128x256xf32>, vector<32x256xf32> -> vector<32x256xf32>
    %174 = arith.addf %169, %173 : vector<32x256xf32>
    %175 = vector.extract_strided_slice %125 {offsets = [16, 0], sizes = [32, 128], strides = [1, 1]} : vector<48x128xf32> to vector<32x128xf32>
    %c3_134 = arith.constant 3 : index
    %c0_135 = arith.constant 0 : index
    %c0_136 = arith.constant 0 : index
    %176 = vector.load %arg4[%c3_134, %c0_135, %c0_136] : memref<5x128x256xf32, #tpu.memory_space<vmem>>, vector<1x128x256xf32>
    %177 = vector.shape_cast %176 : vector<1x128x256xf32> to vector<128x256xf32>
    %cst_137 = arith.constant dense<0.000000e+00> : vector<32x256xf32>
    %178 = tpu.matmul %175, %177, %cst_137 {dimension_numbers = #tpu.dot_dimension_numbers<[1], [0], [0], [1], [0, 0, 1, 1], [], []>} : vector<32x128xf32>, vector<128x256xf32>, vector<32x256xf32> -> vector<32x256xf32>
    %179 = arith.addf %174, %178 : vector<32x256xf32>
    %180 = vector.extract_strided_slice %132 {offsets = [16, 0], sizes = [32, 128], strides = [1, 1]} : vector<48x128xf32> to vector<32x128xf32>
    %c4_138 = arith.constant 4 : index
    %c0_139 = arith.constant 0 : index
    %c0_140 = arith.constant 0 : index
    %181 = vector.load %arg4[%c4_138, %c0_139, %c0_140] : memref<5x128x256xf32, #tpu.memory_space<vmem>>, vector<1x128x256xf32>
    %182 = vector.shape_cast %181 : vector<1x128x256xf32> to vector<128x256xf32>
    %cst_141 = arith.constant dense<0.000000e+00> : vector<32x256xf32>
    %183 = tpu.matmul %180, %182, %cst_141 {dimension_numbers = #tpu.dot_dimension_numbers<[1], [0], [0], [1], [0, 0, 1, 1], [], []>} : vector<32x128xf32>, vector<128x256xf32>, vector<32x256xf32> -> vector<32x256xf32>
    %184 = arith.addf %179, %183 : vector<32x256xf32>
    %185 = arith.maximumf %158, %184 : vector<32x256xf32>
    %186 = vector.extract_strided_slice %185 {offsets = [0, 0], sizes = [32, 128], strides = [1, 1]} : vector<32x256xf32> to vector<32x128xf32>
    %187 = vector.extract_strided_slice %185 {offsets = [0, 128], sizes = [32, 128], strides = [1, 1]} : vector<32x256xf32> to vector<32x128xf32>
    %188 = arith.maximumf %186, %187 : vector<32x128xf32>
    %c0_142 = arith.constant 0 : index
    %c0_143 = arith.constant 0 : index
    %189 = vector.load %arg5[%c0_142, %c0_143] : memref<1x128xf32, #tpu.memory_space<vmem>>, vector<1x128xf32>
    %190 = vector.broadcast %189 : vector<1x128xf32> to vector<32x128xf32>
    %191 = arith.addf %188, %190 : vector<32x128xf32>
    %cst_144 = arith.constant 0.000000e+00 : f32
    %192 = vector.broadcast %cst_144 : f32 to vector<32x128xf32>
    %193 = arith.maximumf %191, %192 : vector<32x128xf32>
    %cst_145 = arith.constant 0.000000e+00 : f32
    %194 = vector.broadcast %cst_145 : f32 to vector<8x64xf32>
    %195 = vector.extract_strided_slice %193 {offsets = [0, 0], sizes = [8, 128], strides = [1, 1]} : vector<32x128xf32> to vector<8x128xf32>
    %c0_146 = arith.constant 0 : index
    %c0_147 = arith.constant 0 : index
    %c0_148 = arith.constant 0 : index
    %196 = vector.load %arg6[%c0_146, %c0_147, %c0_148] : memref<4x128x64xf32, #tpu.memory_space<vmem>>, vector<1x128x64xf32>
    %197 = vector.shape_cast %196 : vector<1x128x64xf32> to vector<128x64xf32>
    %cst_149 = arith.constant dense<0.000000e+00> : vector<8x64xf32>
    %198 = tpu.matmul %195, %197, %cst_149 {dimension_numbers = #tpu.dot_dimension_numbers<[1], [0], [0], [1], [0, 0, 1, 1], [], []>} : vector<8x128xf32>, vector<128x64xf32>, vector<8x64xf32> -> vector<8x64xf32>
    %199 = arith.addf %194, %198 : vector<8x64xf32>
    %200 = vector.extract_strided_slice %193 {offsets = [8, 0], sizes = [8, 128], strides = [1, 1]} : vector<32x128xf32> to vector<8x128xf32>
    %c1_150 = arith.constant 1 : index
    %c0_151 = arith.constant 0 : index
    %c0_152 = arith.constant 0 : index
    %201 = vector.load %arg6[%c1_150, %c0_151, %c0_152] : memref<4x128x64xf32, #tpu.memory_space<vmem>>, vector<1x128x64xf32>
    %202 = vector.shape_cast %201 : vector<1x128x64xf32> to vector<128x64xf32>
    %cst_153 = arith.constant dense<0.000000e+00> : vector<8x64xf32>
    %203 = tpu.matmul %200, %202, %cst_153 {dimension_numbers = #tpu.dot_dimension_numbers<[1], [0], [0], [1], [0, 0, 1, 1], [], []>} : vector<8x128xf32>, vector<128x64xf32>, vector<8x64xf32> -> vector<8x64xf32>
    %204 = arith.addf %199, %203 : vector<8x64xf32>
    %205 = vector.extract_strided_slice %193 {offsets = [16, 0], sizes = [8, 128], strides = [1, 1]} : vector<32x128xf32> to vector<8x128xf32>
    %c2_154 = arith.constant 2 : index
    %c0_155 = arith.constant 0 : index
    %c0_156 = arith.constant 0 : index
    %206 = vector.load %arg6[%c2_154, %c0_155, %c0_156] : memref<4x128x64xf32, #tpu.memory_space<vmem>>, vector<1x128x64xf32>
    %207 = vector.shape_cast %206 : vector<1x128x64xf32> to vector<128x64xf32>
    %cst_157 = arith.constant dense<0.000000e+00> : vector<8x64xf32>
    %208 = tpu.matmul %205, %207, %cst_157 {dimension_numbers = #tpu.dot_dimension_numbers<[1], [0], [0], [1], [0, 0, 1, 1], [], []>} : vector<8x128xf32>, vector<128x64xf32>, vector<8x64xf32> -> vector<8x64xf32>
    %209 = arith.addf %204, %208 : vector<8x64xf32>
    %210 = vector.extract_strided_slice %193 {offsets = [24, 0], sizes = [8, 128], strides = [1, 1]} : vector<32x128xf32> to vector<8x128xf32>
    %c3_158 = arith.constant 3 : index
    %c0_159 = arith.constant 0 : index
    %c0_160 = arith.constant 0 : index
    %211 = vector.load %arg6[%c3_158, %c0_159, %c0_160] : memref<4x128x64xf32, #tpu.memory_space<vmem>>, vector<1x128x64xf32>
    %212 = vector.shape_cast %211 : vector<1x128x64xf32> to vector<128x64xf32>
    %cst_161 = arith.constant dense<0.000000e+00> : vector<8x64xf32>
    %213 = tpu.matmul %210, %212, %cst_161 {dimension_numbers = #tpu.dot_dimension_numbers<[1], [0], [0], [1], [0, 0, 1, 1], [], []>} : vector<8x128xf32>, vector<128x64xf32>, vector<8x64xf32> -> vector<8x64xf32>
    %214 = arith.addf %209, %213 : vector<8x64xf32>
    %c0_162 = arith.constant 0 : index
    %c0_163 = arith.constant 0 : index
    %215 = vector.load %arg7[%c0_162, %c0_163] : memref<1x64xf32, #tpu.memory_space<vmem>>, vector<1x64xf32>
    %216 = vector.broadcast %215 : vector<1x64xf32> to vector<8x64xf32>
    %217 = arith.addf %214, %216 : vector<8x64xf32>
    %cst_164 = arith.constant 0.000000e+00 : f32
    %218 = vector.broadcast %cst_164 : f32 to vector<8x64xf32>
    %219 = arith.maximumf %217, %218 : vector<8x64xf32>
    %c0_165 = arith.constant 0 : index
    %c0_166 = arith.constant 0 : index
    %220 = vector.load %arg8[%c0_165, %c0_166] : memref<64x128xf32, #tpu.memory_space<vmem>>, vector<64x128xf32>
    %cst_167 = arith.constant dense<0.000000e+00> : vector<8x128xf32>
    %221 = tpu.matmul %219, %220, %cst_167 {dimension_numbers = #tpu.dot_dimension_numbers<[1], [0], [0], [1], [0, 0, 1, 1], [], []>} : vector<8x64xf32>, vector<64x128xf32>, vector<8x128xf32> -> vector<8x128xf32>
    %c0_168 = arith.constant 0 : index
    %c0_169 = arith.constant 0 : index
    %222 = vector.load %arg9[%c0_168, %c0_169] : memref<1x128xf32, #tpu.memory_space<vmem>>, vector<1x128xf32>
    %223 = vector.broadcast %222 : vector<1x128xf32> to vector<8x128xf32>
    %224 = arith.addf %221, %223 : vector<8x128xf32>
    %cst_170 = arith.constant dense<0xFF800000> : vector<8xf32>
    %225 = vector.multi_reduction <maximumf>, %224, %cst_170 [1] : vector<8x128xf32> to vector<8xf32>
    %226 = vector.shape_cast %225 : vector<8xf32> to vector<8x1xf32>
    %227 = vector.broadcast %226 : vector<8x1xf32> to vector<8x128xf32>
    %228 = arith.subf %224, %227 : vector<8x128xf32>
    %229 = math.exp %228 : vector<8x128xf32>
    %cst_171 = arith.constant dense<0.000000e+00> : vector<8xf32>
    %230 = vector.multi_reduction <add>, %229, %cst_171 [1] : vector<8x128xf32> to vector<8xf32>
    %231 = vector.shape_cast %230 : vector<8xf32> to vector<8x1xf32>
    %232 = math.log %231 : vector<8x1xf32>
    %233 = vector.broadcast %232 : vector<8x1xf32> to vector<8x128xf32>
    %234 = arith.subf %228, %233 : vector<8x128xf32>
    %c0_172 = arith.constant 0 : index
    %c0_173 = arith.constant 0 : index
    %235 = vector.load %arg10[%c0_172, %c0_173] : memref<8x128xf32, #tpu.memory_space<vmem>>, vector<8x128xf32>
    tpu.vector_store %arg10[%c0_172, %c0_173], %234 {strides = array<i32>} : memref<8x128xf32, #tpu.memory_space<vmem>>, vector<8x128xf32>,
    return
  }
  func.func @transform_0(%arg0: i32) -> (i32, i32, i32) {
    %c0_i32 = arith.constant 0 : i32
    %c0_i32_0 = arith.constant 0 : i32
    %c0_i32_1 = arith.constant 0 : i32
    return %c0_i32, %arg0, %c0_i32_0 : i32, i32, i32
  }
  func.func @transform_1(%arg0: i32) -> (i32, i32, i32) {
    %c0_i32 = arith.constant 0 : i32
    %c0_i32_0 = arith.constant 0 : i32
    %c0_i32_1 = arith.constant 0 : i32
    %c0_i32_2 = arith.constant 0 : i32
    return %c0_i32, %c0_i32_0, %c0_i32_1 : i32, i32, i32
  }
  func.func @transform_2(%arg0: i32) -> (i32, i32) {
    %c0_i32 = arith.constant 0 : i32
    %c0_i32_0 = arith.constant 0 : i32
    %c0_i32_1 = arith.constant 0 : i32
    return %c0_i32, %c0_i32_0 : i32, i32
  }
  func.func @transform_3(%arg0: i32) -> (i32, i32, i32) {
    %c0_i32 = arith.constant 0 : i32
    %c0_i32_0 = arith.constant 0 : i32
    %c0_i32_1 = arith.constant 0 : i32
    %c0_i32_2 = arith.constant 0 : i32
    return %c0_i32, %c0_i32_0, %c0_i32_1 : i32, i32, i32
  }
  func.func @transform_4(%arg0: i32) -> (i32, i32) {
    %c0_i32 = arith.constant 0 : i32
    %c0_i32_0 = arith.constant 0 : i32
    %c0_i32_1 = arith.constant 0 : i32
    return %c0_i32, %c0_i32_0 : i32, i32
  }
  func.func @transform_5(%arg0: i32) -> (i32, i32, i32) {
    %c0_i32 = arith.constant 0 : i32
    %c0_i32_0 = arith.constant 0 : i32
    %c0_i32_1 = arith.constant 0 : i32
    %c0_i32_2 = arith.constant 0 : i32
    return %c0_i32, %c0_i32_0, %c0_i32_1 : i32, i32, i32
  }
  func.func @transform_6(%arg0: i32) -> (i32, i32) {
    %c0_i32 = arith.constant 0 : i32
    %c0_i32_0 = arith.constant 0 : i32
    %c0_i32_1 = arith.constant 0 : i32
    return %c0_i32, %c0_i32_0 : i32, i32
  }
  func.func @transform_7(%arg0: i32) -> (i32, i32) {
    %c0_i32 = arith.constant 0 : i32
    %c0_i32_0 = arith.constant 0 : i32
    %c0_i32_1 = arith.constant 0 : i32
    return %c0_i32, %c0_i32_0 : i32, i32
  }
  func.func @transform_8(%arg0: i32) -> (i32, i32) {
    %c0_i32 = arith.constant 0 : i32
    %c0_i32_0 = arith.constant 0 : i32
    %c0_i32_1 = arith.constant 0 : i32
    return %c0_i32, %c0_i32_0 : i32, i32
  }
  func.func @transform_9(%arg0: i32) -> (i32, i32) {
    %c0_i32 = arith.constant 0 : i32
    %c0_i32_0 = arith.constant 0 : i32
    return %arg0, %c0_i32 : i32, i32
  }
}

</mosaic_0001>

<llo_original>
// kernel: net_forward.1
$region0: #{net_forward.1}
  #allocation0 [shape = 'u32[]', space=smem, size = 0x4, offset = 0x4, fixed_abs, tag = 'smem constant byte address 0x4 - core index']
  #allocation1 [shape = 'u32[144,128]{1,0:T(1,128)}', space=vmem, size = 0x12000, scoped, tag = 'internal scratch']
  %s0 = inlined_call_operand.vmem [shape: f32[28,16,28], index: 0, kind: input, shape index: {}]
  %s1 = inlined_call_operand.vmem [shape: f32[5,28,256], index: 1, kind: input, shape index: {}]
  %s2 = inlined_call_operand.vmem [shape: f32[1,128], index: 2, kind: input, shape index: {}]
  %s3 = inlined_call_operand.vmem [shape: f32[5,128,256], index: 3, kind: input, shape index: {}]
  %s4 = inlined_call_operand.vmem [shape: f32[1,128], index: 4, kind: input, shape index: {}]
  %s5 = inlined_call_operand.vmem [shape: f32[4,128,64], index: 5, kind: input, shape index: {}]
  %s6 = inlined_call_operand.vmem [shape: f32[1,64], index: 6, kind: input, shape index: {}]
  %s7 = inlined_call_operand.vmem [shape: f32[64,128], index: 7, kind: input, shape index: {}]
  %s8 = inlined_call_operand.vmem [shape: f32[1,128], index: 8, kind: input, shape index: {}]
  %s9 = inlined_call_operand.hbm [shape: f32[16,128], index: 9, kind: output, shape index: {}]
  %s10 = sld [smem:[#allocation0]]
  $region107: #{net_forward.1} parent=0
    _
  %s12 = ssub.s32 1, %s10
  %s13 = scalar_select 0, %s12, %s10
  $region1: #{net_forward.1} parent=0
    #allocation2 [shape = 'u8[229376]{0}', space=vmem, size = 0x38000, scoped, tag = 'input window, operand 0']
    #allocation3 [shape = 'u8[8192]{0}', space=vmem, size = 0x2000, scoped, tag = 'output window, operand 0']
    #allocation4 [shape = 's32[2]{0}', space=sflag, size = 0x8, scoped, tag = 'scoped memory for net_forward.1']
    %14 = vsyncpa [#allocation4], 0
    %s15 = scalar_lea.sflag [#allocation4], 1
    %16 = vsyncpa %s15, 0
    loop: start=0, step=1, limit=4
    $region2: #{net_forward.1} parent=1 // loop_pre_header
      _
    $region3: #{net_forward.1} parent=1 // loop_header
      %s18 = sphi 0, %s22
      %p19 = scmp.ge.s32.totalorder %s18, 4
      %s28 = sphi 0, %s30
      %s31 = sphi 0, %s28
      %s32 = sphi 0, %s31
      %s48 = sphi 0, %s32
      %s52 = sphi 0, %s52
      %s54 = sphi 0, %s52
      %s55 = sphi 0, %s54
      %s69 = sphi 0, %s55
      %s73 = sphi 0, %s73
      %s75 = sphi 0, %s73
      %s76 = sphi 0, %s75
      %s90 = sphi 0, %s76
      %s94 = sphi 0, %s94
      %s96 = sphi 0, %s94
      %s97 = sphi 0, %s96
      %s111 = sphi 0, %s97
      %s115 = sphi 0, %s115
      %s117 = sphi 0, %s115
      %s118 = sphi 0, %s117
      %s132 = sphi 0, %s118
      %s136 = sphi 0, %s136
      %s138 = sphi 0, %s136
      %s139 = sphi 0, %s138
      %s153 = sphi 0, %s139
      %s157 = sphi 0, %s157
      %s159 = sphi 0, %s157
      %s160 = sphi 0, %s159
      %s174 = sphi 0, %s160
      %s178 = sphi 0, %s178
      %s180 = sphi 0, %s178
      %s181 = sphi 0, %s180
      %s195 = sphi 0, %s181
      %s199 = sphi 0, %s199
      %s201 = sphi 0, %s199
      %s202 = sphi 0, %s201
      %s216 = sphi 0, %s202
      %s222 = sphi 0, %s224
      %s225 = sphi 0, %s222
      %s226 = sphi 0, %s225
      %s242 = sphi 0, %s226
    $region4: #{net_forward.1} parent=1 // loop_header_branch
      %21 = sbr.rel (%p19) target = $region8
    $region5: #{net_forward.1} parent=1 // loop_body
      %s23 = ssub.s32 %s18, 1
      %s24 = ssub.s32 %s18, 2
      %s25 = sadd.s32 %s18, 1
      %s26 = ssub.s32 %s18, %s25
      %p27 = scmp.eq.s32.totalorder %s26, 0
      %s29 = sadd.s32 %s28, 1
      %s30 = scalar_select %p27, %s28, %s29
      %p33 = pneg %p27
      %p34 = scmp.eq.s32.totalorder %s18, 1
      %p35 = por %p33, %p34
      %p36 = scmp.ne.s32.totalorder %s28, %s31
      %p37 = scmp.eq.s32.totalorder %s18, 0
      %p38 = por %p36, %p37
      %p39 = scmp.ne.s32.totalorder %s28, %s31
      %p40 = scmp.eq.s32.totalorder %s23, 1
      %p41 = por %p39, %p40
      %p42 = scmp.ne.s32.totalorder %s31, %s32
      %p43 = scmp.eq.s32.totalorder %s23, 0
      %p44 = por %p42, %p43
      %p45 = scmp.ne.s32.totalorder %s31, %s32
      %p46 = scmp.eq.s32.totalorder %s24, 1
      %p47 = por %p45, %p46
      %p49 = scmp.ne.s32.totalorder %s32, %s48
      %p50 = scmp.eq.s32.totalorder %s24, 0
      %p51 = por %p49, %p50
      %s53 = sadd.s32 %s52, 1
      %p56 = scmp.eq.s32.totalorder %s18, 1
      %p57 = scmp.ne.s32.totalorder %s52, %s54
      %p58 = scmp.eq.s32.totalorder %s18, 0
      %p59 = por %p57, %p58
      %p60 = scmp.ne.s32.totalorder %s52, %s54
      %p61 = scmp.eq.s32.totalorder %s23, 1
      %p62 = por %p60, %p61
      %p63 = scmp.ne.s32.totalorder %s54, %s55
      %p64 = scmp.eq.s32.totalorder %s23, 0
      %p65 = por %p63, %p64
      %p66 = scmp.ne.s32.totalorder %s54, %s55
      %p67 = scmp.eq.s32.totalorder %s24, 1
      %p68 = por %p66, %p67
      %p70 = scmp.ne.s32.totalorder %s55, %s69
      %p71 = scmp.eq.s32.totalorder %s24, 0
      %p72 = por %p70, %p71
      %s74 = sadd.s32 %s73, 1
      %p77 = scmp.eq.s32.totalorder %s18, 1
      %p78 = scmp.ne.s32.totalorder %s73, %s75
      %p79 = scmp.eq.s32.totalorder %s18, 0
      %p80 = por %p78, %p79
      %p81 = scmp.ne.s32.totalorder %s73, %s75
      %p82 = scmp.eq.s32.totalorder %s23, 1
      %p83 = por %p81, %p82
      %p84 = scmp.ne.s32.totalorder %s75, %s76
      %p85 = scmp.eq.s32.totalorder %s23, 0
      %p86 = por %p84, %p85
      %p87 = scmp.ne.s32.totalorder %s75, %s76
      %p88 = scmp.eq.s32.totalorder %s24, 1
      %p89 = por %p87, %p88
      %p91 = scmp.ne.s32.totalorder %s76, %s90
      %p92 = scmp.eq.s32.totalorder %s24, 0
      %p93 = por %p91, %p92
      %s95 = sadd.s32 %s94, 1
      %p98 = scmp.eq.s32.totalorder %s18, 1
      %p99 = scmp.ne.s32.totalorder %s94, %s96
      %p100 = scmp.eq.s32.totalorder %s18, 0
      %p101 = por %p99, %p100
      %p102 = scmp.ne.s32.totalorder %s94, %s96
      %p103 = scmp.eq.s32.totalorder %s23, 1
      %p104 = por %p102, %p103
      %p105 = scmp.ne.s32.totalorder %s96, %s97
      %p106 = scmp.eq.s32.totalorder %s23, 0
      %p107 = por %p105, %p106
      %p108 = scmp.ne.s32.totalorder %s96, %s97
      %p109 = scmp.eq.s32.totalorder %s24, 1
      %p110 = por %p108, %p109
      %p112 = scmp.ne.s32.totalorder %s97, %s111
      %p113 = scmp.eq.s32.totalorder %s24, 0
      %p114 = por %p112, %p113
      %s116 = sadd.s32 %s115, 1
      %p119 = scmp.eq.s32.totalorder %s18, 1
      %p120 = scmp.ne.s32.totalorder %s115, %s117
      %p121 = scmp.eq.s32.totalorder %s18, 0
      %p122 = por %p120, %p121
      %p123 = scmp.ne.s32.totalorder %s115, %s117
      %p124 = scmp.eq.s32.totalorder %s23, 1
      %p125 = por %p123, %p124
      %p126 = scmp.ne.s32.totalorder %s117, %s118
      %p127 = scmp.eq.s32.totalorder %s23, 0
      %p128 = por %p126, %p127
      %p129 = scmp.ne.s32.totalorder %s117, %s118
      %p130 = scmp.eq.s32.totalorder %s24, 1
      %p131 = por %p129, %p130
      %p133 = scmp.ne.s32.totalorder %s118, %s132
      %p134 = scmp.eq.s32.totalorder %s24, 0
      %p135 = por %p133, %p134
      %s137 = sadd.s32 %s136, 1
      %p140 = scmp.eq.s32.totalorder %s18, 1
      %p141 = scmp.ne.s32.totalorder %s136, %s138
      %p142 = scmp.eq.s32.totalorder %s18, 0
      %p143 = por %p141, %p142
      %p144 = scmp.ne.s32.totalorder %s136, %s138
      %p145 = scmp.eq.s32.totalorder %s23, 1
      %p146 = por %p144, %p145
      %p147 = scmp.ne.s32.totalorder %s138, %s139
      %p148 = scmp.eq.s32.totalorder %s23, 0
      %p149 = por %p147, %p148
      %p150 = scmp.ne.s32.totalorder %s138, %s139
      %p151 = scmp.eq.s32.totalorder %s24, 1
      %p152 = por %p150, %p151
      %p154 = scmp.ne.s32.totalorder %s139, %s153
      %p155 = scmp.eq.s32.totalorder %s24, 0
      %p156 = por %p154, %p155
      %s158 = sadd.s32 %s157, 1
      %p161 = scmp.eq.s32.totalorder %s18, 1
      %p162 = scmp.ne.s32.totalorder %s157, %s159
      %p163 = scmp.eq.s32.totalorder %s18, 0
      %p164 = por %p162, %p163
      %p165 = scmp.ne.s32.totalorder %s157, %s159
      %p166 = scmp.eq.s32.totalorder %s23, 1
      %p167 = por %p165, %p166
      %p168 = scmp.ne.s32.totalorder %s159, %s160
      %p169 = scmp.eq.s32.totalorder %s23, 0
      %p170 = por %p168, %p169
      %p171 = scmp.ne.s32.totalorder %s159, %s160
      %p172 = scmp.eq.s32.totalorder %s24, 1
      %p173 = por %p171, %p172
      %p175 = scmp.ne.s32.totalorder %s160, %s174
      %p176 = scmp.eq.s32.totalorder %s24, 0
      %p177 = por %p175, %p176
      %s179 = sadd.s32 %s178, 1
      %p182 = scmp.eq.s32.totalorder %s18, 1
      %p183 = scmp.ne.s32.totalorder %s178, %s180
      %p184 = scmp.eq.s32.totalorder %s18, 0
      %p185 = por %p183, %p184
      %p186 = scmp.ne.s32.totalorder %s178, %s180
      %p187 = scmp.eq.s32.totalorder %s23, 1
      %p188 = por %p186, %p187
      %p189 = scmp.ne.s32.totalorder %s180, %s181
      %p190 = scmp.eq.s32.totalorder %s23, 0
      %p191 = por %p189, %p190
      %p192 = scmp.ne.s32.totalorder %s180, %s181
      %p193 = scmp.eq.s32.totalorder %s24, 1
      %p194 = por %p192, %p193
      %p196 = scmp.ne.s32.totalorder %s181, %s195
      %p197 = scmp.eq.s32.totalorder %s24, 0
      %p198 = por %p196, %p197
      %s200 = sadd.s32 %s199, 1
      %p203 = scmp.eq.s32.totalorder %s18, 1
      %p204 = scmp.ne.s32.totalorder %s199, %s201
      %p205 = scmp.eq.s32.totalorder %s18, 0
      %p206 = por %p204, %p205
      %p207 = scmp.ne.s32.totalorder %s199, %s201
      %p208 = scmp.eq.s32.totalorder %s23, 1
      %p209 = por %p207, %p208
      %p210 = scmp.ne.s32.totalorder %s201, %s202
      %p211 = scmp.eq.s32.totalorder %s23, 0
      %p212 = por %p210, %p211
      %p213 = scmp.ne.s32.totalorder %s201, %s202
      %p214 = scmp.eq.s32.totalorder %s24, 1
      %p215 = por %p213, %p214
      %p217 = scmp.ne.s32.totalorder %s202, %s216
      %p218 = scmp.eq.s32.totalorder %s24, 0
      %p219 = por %p217, %p218
      %s220 = ssub.s32 %s18, %s25
      %p221 = scmp.eq.s32.totalorder %s220, 0
      %s223 = sadd.s32 %s222, 1
      %s224 = scalar_select %p221, %s222, %s223
      %p227 = pneg %p221
      %p228 = scmp.eq.s32.totalorder %s18, 1
      %p229 = por %p227, %p228
      %p230 = scmp.ne.s32.totalorder %s222, %s225
      %p231 = scmp.eq.s32.totalorder %s18, 0
      %p232 = por %p230, %p231
      %p233 = scmp.ne.s32.totalorder %s222, %s225
      %p234 = scmp.eq.s32.totalorder %s23, 1
      %p235 = por %p233, %p234
      %p236 = scmp.ne.s32.totalorder %s225, %s226
      %p237 = scmp.eq.s32.totalorder %s23, 0
      %p238 = por %p236, %p237
      %p239 = scmp.ne.s32.totalorder %s225, %s226
      %p240 = scmp.eq.s32.totalorder %s24, 1
      %p241 = por %p239, %p240
      %p243 = scmp.ne.s32.totalorder %s226, %s242
      %p244 = scmp.eq.s32.totalorder %s24, 0
      %p245 = por %p243, %p244
      %p246 = scmp.le.s32.totalorder 1, %s18
      %p247 = scmp.lt.s32.totalorder %s18, 3
      %p248 = pnand %p246, %p247
      %p249 = pneg %p248
      // Predicated region
      $region9: #{net_forward.1} parent=5 // pred_check
        _
      $region10: #{net_forward.1} parent=5 // pred_check_branch
        %251 = sbr.rel (%p248) target = $region12
      $region11: #{net_forward.1} parent=5 // pred_region
        %s252 = ssub.s32 %s18, 1
        // Predicated region
        $region13: #{net_forward.1} parent=11 // pred_check
          %p253 = pneg %p65
        $region14: #{net_forward.1} parent=11 // pred_check_branch
          %255 = sbr.rel (%p253) target = $region16
        $region15: #{net_forward.1} parent=11 // pred_region
          _
        $region16: #{net_forward.1} parent=11 // pred_fallthru
          _
        // Predicated region
        $region17: #{net_forward.1} parent=11 // pred_check
          %p256 = pneg %p86
        $region18: #{net_forward.1} parent=11 // pred_check_branch
          %258 = sbr.rel (%p256) target = $region20
        $region19: #{net_forward.1} parent=11 // pred_region
          _
        $region20: #{net_forward.1} parent=11 // pred_fallthru
          _
        // Predicated region
        $region21: #{net_forward.1} parent=11 // pred_check
          %p259 = pneg %p107
        $region22: #{net_forward.1} parent=11 // pred_check_branch
          %261 = sbr.rel (%p259) target = $region24
        $region23: #{net_forward.1} parent=11 // pred_region
          _
        $region24: #{net_forward.1} parent=11 // pred_fallthru
          _
        // Predicated region
        $region25: #{net_forward.1} parent=11 // pred_check
          %p262 = pneg %p128
        $region26: #{net_forward.1} parent=11 // pred_check_branch
          %264 = sbr.rel (%p262) target = $region28
        $region27: #{net_forward.1} parent=11 // pred_region
          _
        $region28: #{net_forward.1} parent=11 // pred_fallthru
          _
        // Predicated region
        $region29: #{net_forward.1} parent=11 // pred_check
          %p265 = pneg %p149
        $region30: #{net_forward.1} parent=11 // pred_check_branch
          %267 = sbr.rel (%p265) target = $region32
        $region31: #{net_forward.1} parent=11 // pred_region
          _
        $region32: #{net_forward.1} parent=11 // pred_fallthru
          _
        // Predicated region
        $region33: #{net_forward.1} parent=11 // pred_check
          %p268 = pneg %p170
        $region34: #{net_forward.1} parent=11 // pred_check_branch
          %270 = sbr.rel (%p268) target = $region36
        $region35: #{net_forward.1} parent=11 // pred_region
          _
        $region36: #{net_forward.1} parent=11 // pred_fallthru
          _
        // Predicated region
        $region37: #{net_forward.1} parent=11 // pred_check
          %p271 = pneg %p191
        $region38: #{net_forward.1} parent=11 // pred_check_branch
          %273 = sbr.rel (%p271) target = $region40
        $region39: #{net_forward.1} parent=11 // pred_region
          _
        $region40: #{net_forward.1} parent=11 // pred_fallthru
          _
        // Predicated region
        $region41: #{net_forward.1} parent=11 // pred_check
          %p274 = pneg %p212
        $region42: #{net_forward.1} parent=11 // pred_check_branch
          %276 = sbr.rel (%p274) target = $region44
        $region43: #{net_forward.1} parent=11 // pred_region
          _
        $region44: #{net_forward.1} parent=11 // pred_fallthru
          _
      $region12: #{net_forward.1} parent=5 // pred_fallthru
        _
      %p277 = scmp.lt.s32.totalorder %s18, 2
      // Predicated region
      $region45: #{net_forward.1} parent=5 // pred_check
        %p278 = pneg %p277
      $region46: #{net_forward.1} parent=5 // pred_check_branch
        %280 = sbr.rel (%p278) target = $region48
      $region47: #{net_forward.1} parent=5 // pred_region
        // Predicated region
        $region49: #{net_forward.1} parent=47 // pred_check
          %p281 = pneg %p38
        $region50: #{net_forward.1} parent=47 // pred_check_branch
          %283 = sbr.rel (%p281) target = $region52
        $region51: #{net_forward.1} parent=47 // pred_region
          %s284 = sand.u32 %s28, 1
          %s285 = sand.u32 %s28, 1
          %s286 = smul.addr %s285, 224
          %s287 = scalar_lea.vmem [#allocation2], %s286
          %s288 = smul.addr %s18, 8
          %s289 = scalar_lea.vmem %s0, %s288
          // Predicated region
          $region53: #{net_forward.1} parent=51 // pred_check
            _
          $region54: #{net_forward.1} parent=51 // pred_check_branch
            %291 = sbr.rel (0) target = $region56
          $region55: #{net_forward.1} parent=51 // pred_region
            // Predicated region
            $region57: #{net_forward.1} parent=55 // pred_check
              _
            $region58: #{net_forward.1} parent=55 // pred_check_branch
              %293 = sbr.rel (0) target = $region60
            $region59: #{net_forward.1} parent=55 // pred_region
              // Predicated region
              $region72: #{net_forward.1} parent=59 // pred_check
                _
              $region73: #{net_forward.1} parent=59 // pred_check_branch
                %363 = sbr.rel (0) target = $region75
              $region74: #{net_forward.1} parent=59 // pred_region
                loop: start=0, step=1, limit=1
                $region76: #{net_forward.1} parent=74 // loop_pre_header
                  _
                $region77: #{net_forward.1} parent=74 // loop_header
                  %s365 = sphi 0, %s369
                  %p366 = scmp.ge.s32.totalorder %s365, 1
                  %s370 = sphi %s289, %s289
                  %s371 = sphi %s287, %s287
                $region78: #{net_forward.1} parent=74 // loop_header_branch
                  %368 = sbr.rel (%p366) target = $region82
                $region79: #{net_forward.1} parent=74 // loop_body
                  %v372 = vld [vmem:[%s370] sm:$0xff]
                  %373 = vst [vmem:[%s371] sm:$0xff] %v372
                  %v374 = vld [vmem:[%s370 + $0x10] sm:$0xff]
                  %375 = vst [vmem:[%s371 + $0x8] sm:$0xff] %v374
                  %v376 = vld [vmem:[%s370 + $0x20] sm:$0xff]
                  %377 = vst [vmem:[%s371 + $0x10] sm:$0xff] %v376
                  %v378 = vld [vmem:[%s370 + $0x30] sm:$0xff]
                  %379 = vst [vmem:[%s371 + $0x18] sm:$0xff] %v378
                  %v380 = vld [vmem:[%s370 + $0x40] sm:$0xff]
                  %381 = vst [vmem:[%s371 + $0x20] sm:$0xff] %v380
                  %v382 = vld [vmem:[%s370 + $0x50] sm:$0xff]
                  %383 = vst [vmem:[%s371 + $0x28] sm:$0xff] %v382
                  %v384 = vld [vmem:[%s370 + $0x60] sm:$0xff]
                  %385 = vst [vmem:[%s371 + $0x30] sm:$0xff] %v384
                  %v386 = vld [vmem:[%s370 + $0x70] sm:$0xff]
                  %387 = vst [vmem:[%s371 + $0x38] sm:$0xff] %v386
                  %v388 = vld [vmem:[%s370 + $0x80] sm:$0xff]
                  %389 = vst [vmem:[%s371 + $0x40] sm:$0xff] %v388
                  %v390 = vld [vmem:[%s370 + $0x90] sm:$0xff]
                  %391 = vst [vmem:[%s371 + $0x48] sm:$0xff] %v390
                  %v392 = vld [vmem:[%s370 + $0xa0] sm:$0xff]
                  %393 = vst [vmem:[%s371 + $0x50] sm:$0xff] %v392
                  %v394 = vld [vmem:[%s370 + $0xb0] sm:$0xff]
                  %395 = vst [vmem:[%s371 + $0x58] sm:$0xff] %v394
                  %v396 = vld [vmem:[%s370 + $0xc0] sm:$0xff]
                  %397 = vst [vmem:[%s371 + $0x60] sm:$0xff] %v396
                  %v398 = vld [vmem:[%s370 + $0xd0] sm:$0xff]
                  %399 = vst [vmem:[%s371 + $0x68] sm:$0xff] %v398
                  %v400 = vld [vmem:[%s370 + $0xe0] sm:$0xff]
                  %401 = vst [vmem:[%s371 + $0x70] sm:$0xff] %v400
                  %v402 = vld [vmem:[%s370 + $0xf0] sm:$0xff]
                  %403 = vst [vmem:[%s371 + $0x78] sm:$0xff] %v402
                  %v404 = vld [vmem:[%s370 + $0x100] sm:$0xff]
                  %405 = vst [vmem:[%s371 + $0x80] sm:$0xff] %v404
                  %v406 = vld [vmem:[%s370 + $0x110] sm:$0xff]
                  %407 = vst [vmem:[%s371 + $0x88] sm:$0xff] %v406
                  %v408 = vld [vmem:[%s370 + $0x120] sm:$0xff]
                  %409 = vst [vmem:[%s371 + $0x90] sm:$0xff] %v408
                  %v410 = vld [vmem:[%s370 + $0x130] sm:$0xff]
                  %411 = vst [vmem:[%s371 + $0x98] sm:$0xff] %v410
                  %v412 = vld [vmem:[%s370 + $0x140] sm:$0xff]
                  %413 = vst [vmem:[%s371 + $0xa0] sm:$0xff] %v412
                  %v414 = vld [vmem:[%s370 + $0x150] sm:$0xff]
                  %415 = vst [vmem:[%s371 + $0xa8] sm:$0xff] %v414
                  %v416 = vld [vmem:[%s370 + $0x160] sm:$0xff]
                  %417 = vst [vmem:[%s371 + $0xb0] sm:$0xff] %v416
                  %v418 = vld [vmem:[%s370 + $0x170] sm:$0xff]
                  %419 = vst [vmem:[%s371 + $0xb8] sm:$0xff] %v418
                  %v420 = vld [vmem:[%s370 + $0x180] sm:$0xff]
                  %421 = vst [vmem:[%s371 + $0xc0] sm:$0xff] %v420
                  %v422 = vld [vmem:[%s370 + $0x190] sm:$0xff]
                  %423 = vst [vmem:[%s371 + $0xc8] sm:$0xff] %v422
                  %v424 = vld [vmem:[%s370 + $0x1a0] sm:$0xff]
                  %425 = vst [vmem:[%s371 + $0xd0] sm:$0xff] %v424
                  %v426 = vld [vmem:[%s370 + $0x1b0] sm:$0xff]
                  %427 = vst [vmem:[%s371 + $0xd8] sm:$0xff] %v426
                $region80: #{net_forward.1} parent=74 // loop_footer
                  %s369 = sadd.s32 1, %s365
                $region81: #{net_forward.1} parent=74 // loop_footer_branch
                  %364 = sbr.rel target = $region77
                $region82: #{net_forward.1} parent=74 // loop_exit
                  _
              $region75: #{net_forward.1} parent=59 // pred_fallthru
                _
              // Predicated region
              $region83: #{net_forward.1} parent=59 // pred_check
                _
              $region84: #{net_forward.1} parent=59 // pred_check_branch
                %429 = sbr.rel target = $region86
              $region85: #{net_forward.1} parent=59 // pred_region
                _
              $region86: #{net_forward.1} parent=59 // pred_fallthru
                _
            $region60: #{net_forward.1} parent=55 // pred_fallthru
              _
            // Predicated region
            $region61: #{net_forward.1} parent=55 // pred_check
              _
            $region62: #{net_forward.1} parent=55 // pred_check_branch
              %295 = sbr.rel target = $region64
            $region63: #{net_forward.1} parent=55 // pred_region
              %s297 = ssub.s32 256, 1
              loop: start=0, step=1, limit=1
              $region65: #{net_forward.1} parent=63 // loop_pre_header
                _
              $region66: #{net_forward.1} parent=63 // loop_header
                %s299 = sphi 0, %s303
                %p300 = scmp.ge.s32.totalorder %s299, 1
                %s304 = sphi %s289, %s289
                %s305 = sphi %s287, %s287
              $region67: #{net_forward.1} parent=63 // loop_header_branch
                %302 = sbr.rel (%p300) target = $region71
              $region68: #{net_forward.1} parent=63 // loop_body
                %v306 = vld [vmem:[%s304] sm:%s297]
                %307 = vst [vmem:[%s305] sm:%s297] %v306
                %v308 = vld [vmem:[%s304 + $0x10] sm:%s297]
                %309 = vst [vmem:[%s305 + $0x8] sm:%s297] %v308
                %v310 = vld [vmem:[%s304 + $0x20] sm:%s297]
                %311 = vst [vmem:[%s305 + $0x10] sm:%s297] %v310
                %v312 = vld [vmem:[%s304 + $0x30] sm:%s297]
                %313 = vst [vmem:[%s305 + $0x18] sm:%s297] %v312
                %v314 = vld [vmem:[%s304 + $0x40] sm:%s297]
                %315 = vst [vmem:[%s305 + $0x20] sm:%s297] %v314
                %v316 = vld [vmem:[%s304 + $0x50] sm:%s297]
                %317 = vst [vmem:[%s305 + $0x28] sm:%s297] %v316
                %v318 = vld [vmem:[%s304 + $0x60] sm:%s297]
                %319 = vst [vmem:[%s305 + $0x30] sm:%s297] %v318
                %v320 = vld [vmem:[%s304 + $0x70] sm:%s297]
                %321 = vst [vmem:[%s305 + $0x38] sm:%s297] %v320
                %v322 = vld [vmem:[%s304 + $0x80] sm:%s297]
                %323 = vst [vmem:[%s305 + $0x40] sm:%s297] %v322
                %v324 = vld [vmem:[%s304 + $0x90] sm:%s297]
                %325 = vst [vmem:[%s305 + $0x48] sm:%s297] %v324
                %v326 = vld [vmem:[%s304 + $0xa0] sm:%s297]
                %327 = vst [vmem:[%s305 + $0x50] sm:%s297] %v326
                %v328 = vld [vmem:[%s304 + $0xb0] sm:%s297]
                %329 = vst [vmem:[%s305 + $0x58] sm:%s297] %v328
                %v330 = vld [vmem:[%s304 + $0xc0] sm:%s297]
                %331 = vst [vmem:[%s305 + $0x60] sm:%s297] %v330
                %v332 = vld [vmem:[%s304 + $0xd0] sm:%s297]
                %333 = vst [vmem:[%s305 + $0x68] sm:%s297] %v332
                %v334 = vld [vmem:[%s304 + $0xe0] sm:%s297]
                %335 = vst [vmem:[%s305 + $0x70] sm:%s297] %v334
                %v336 = vld [vmem:[%s304 + $0xf0] sm:%s297]
                %337 = vst [vmem:[%s305 + $0x78] sm:%s297] %v336
                %v338 = vld [vmem:[%s304 + $0x100] sm:%s297]
                %339 = vst [vmem:[%s305 + $0x80] sm:%s297] %v338
                %v340 = vld [vmem:[%s304 + $0x110] sm:%s297]
                %341 = vst [vmem:[%s305 + $0x88] sm:%s297] %v340
                %v342 = vld [vmem:[%s304 + $0x120] sm:%s297]
                %343 = vst [vmem:[%s305 + $0x90] sm:%s297] %v342
                %v344 = vld [vmem:[%s304 + $0x130] sm:%s297]
                %345 = vst [vmem:[%s305 + $0x98] sm:%s297] %v344
                %v346 = vld [vmem:[%s304 + $0x140] sm:%s297]
                %347 = vst [vmem:[%s305 + $0xa0] sm:%s297] %v346
                %v348 = vld [vmem:[%s304 + $0x150] sm:%s297]
                %349 = vst [vmem:[%s305 + $0xa8] sm:%s297] %v348
                %v350 = vld [vmem:[%s304 + $0x160] sm:%s297]
                %351 = vst [vmem:[%s305 + $0xb0] sm:%s297] %v350
                %v352 = vld [vmem:[%s304 + $0x170] sm:%s297]
                %353 = vst [vmem:[%s305 + $0xb8] sm:%s297] %v352
                %v354 = vld [vmem:[%s304 + $0x180] sm:%s297]
                %355 = vst [vmem:[%s305 + $0xc0] sm:%s297] %v354
                %v356 = vld [vmem:[%s304 + $0x190] sm:%s297]
                %357 = vst [vmem:[%s305 + $0xc8] sm:%s297] %v356
                %v358 = vld [vmem:[%s304 + $0x1a0] sm:%s297]
                %359 = vst [vmem:[%s305 + $0xd0] sm:%s297] %v358
                %v360 = vld [vmem:[%s304 + $0x1b0] sm:%s297]
                %361 = vst [vmem:[%s305 + $0xd8] sm:%s297] %v360
              $region69: #{net_forward.1} parent=63 // loop_footer
                %s303 = sadd.s32 1, %s299
              $region70: #{net_forward.1} parent=63 // loop_footer_branch
                %298 = sbr.rel target = $region66
              $region71: #{net_forward.1} parent=63 // loop_exit
                _
            $region64: #{net_forward.1} parent=55 // pred_fallthru
              _
          $region56: #{net_forward.1} parent=51 // pred_fallthru
            _
          %430 = vnop
        $region52: #{net_forward.1} parent=47 // pred_fallthru
          _
      $region48: #{net_forward.1} parent=5 // pred_fallthru
        _
      %p431 = scmp.le.s32.totalorder 1, %s18
      %p432 = scmp.lt.s32.totalorder %s18, 3
      %p433 = pnand %p431, %p432
      %p434 = pneg %p433
      // Predicated region
      $region87: #{net_forward.1} parent=5 // pred_check
        _
      $region88: #{net_forward.1} parent=5 // pred_check_branch
        %436 = sbr.rel (%p433) target = $region90
      $region89: #{net_forward.1} parent=5 // pred_region
        %s437 = ssub.s32 %s18, 1
        %s438 = sand.u32 %s31, 1
        %s439 = sand.u32 %s31, 1
        %s440 = smul.addr %s439, 224
        %s441 = scalar_lea.vmem [#allocation2], %s440
        // Predicated region
        $region91: #{net_forward.1} parent=89 // pred_check
          %p442 = pneg %p44
        $region92: #{net_forward.1} parent=89 // pred_check_branch
          %444 = sbr.rel (%p442) target = $region94
        $region93: #{net_forward.1} parent=89 // pred_region
          _
        $region94: #{net_forward.1} parent=89 // pred_fallthru
          _
        %s445 = sand.u32 %s31, 1
        %s446 = sand.u32 %s31, 1
        %s447 = smul.addr %s446, 224
        %s448 = scalar_lea.vmem [#allocation2], %s447
        %p449 = pneg %p44
        %p450 = pneg %p41
        %p451 = pneg %p65
        %p452 = pneg %p62
        %p453 = pneg %p86
        %p454 = pneg %p83
        %p455 = pneg %p107
        %p456 = pneg %p104
        %p457 = pneg %p128
        %p458 = pneg %p125
        %p459 = pneg %p149
        %p460 = pneg %p146
        %p461 = pneg %p170
        %p462 = pneg %p167
        %p463 = pneg %p191
        %p464 = pneg %p188
        %p465 = pneg %p212
        %p466 = pneg %p209
        %p467 = pneg %p238
        %p468 = pneg %p235
        %s469 = sand.u32 %s225, 1
        %s470 = scalar_lea.sflag [#allocation4], %s469
        %s471 = sand.u32 %s225, 1
        %s472 = smul.addr %s471, 8
        %s473 = scalar_lea.vmem [#allocation3], %s472
        %v474 = vld [vmem:[%s441] sm:$0xff]
        %s475 = scalar_lea.vmem %s441, 16 [#allocation2]
        %v476 = vld [vmem:[%s475] sm:$0xff]
        %s477 = scalar_lea.vmem %s441, 32 [#allocation2]
        %v478 = vld [vmem:[%s477] sm:$0xff]
        %s479 = scalar_lea.vmem %s441, 48 [#allocation2]
        %v480 = vld [vmem:[%s479] sm:$0xff]
        %s481 = scalar_lea.vmem %s441, 64 [#allocation2]
        %v482 = vld [vmem:[%s481] sm:$0xff]
        %s483 = scalar_lea.vmem %s441, 80 [#allocation2]
        %v484 = vld [vmem:[%s483] sm:$0xff]
        %s485 = scalar_lea.vmem %s441, 96 [#allocation2]
        %v486 = vld [vmem:[%s485] sm:$0xff]
        %s487 = scalar_lea.vmem %s441, 112 [#allocation2]
        %v488 = vld [vmem:[%s487] sm:$0xff]
        %s489 = scalar_lea.vmem %s441, 128 [#allocation2]
        %v490 = vld [vmem:[%s489] sm:$0xff]
        %s491 = scalar_lea.vmem %s441, 144 [#allocation2]
        %v492 = vld [vmem:[%s491] sm:$0xff]
        %s493 = scalar_lea.vmem %s441, 160 [#allocation2]
        %v494 = vld [vmem:[%s493] sm:$0xff]
        %s495 = scalar_lea.vmem %s441, 176 [#allocation2]
        %v496 = vld [vmem:[%s495] sm:$0xff]
        %s497 = scalar_lea.vmem %s441, 192 [#allocation2]
        %v498 = vld [vmem:[%s497] sm:$0xff]
        %s499 = scalar_lea.vmem %s441, 208 [#allocation2]
        %v500 = vld [vmem:[%s499] sm:$0xff]
        %s501 = scalar_lea.vmem %s441, 8 [#allocation2]
        %v502 = vld [vmem:[%s501] sm:$0xff]
        %s503 = scalar_lea.vmem %s441, 24 [#allocation2]
        %v504 = vld [vmem:[%s503] sm:$0xff]
        %s505 = scalar_lea.vmem %s441, 40 [#allocation2]
        %v506 = vld [vmem:[%s505] sm:$0xff]
        %s507 = scalar_lea.vmem %s441, 56 [#allocation2]
        %v508 = vld [vmem:[%s507] sm:$0xff]
        %s509 = scalar_lea.vmem %s441, 72 [#allocation2]
        %v510 = vld [vmem:[%s509] sm:$0xff]
        %s511 = scalar_lea.vmem %s441, 88 [#allocation2]
        %v512 = vld [vmem:[%s511] sm:$0xff]
        %s513 = scalar_lea.vmem %s441, 104 [#allocation2]
        %v514 = vld [vmem:[%s513] sm:$0xff]
        %s515 = scalar_lea.vmem %s441, 120 [#allocation2]
        %v516 = vld [vmem:[%s515] sm:$0xff]
        %s517 = scalar_lea.vmem %s441, 136 [#allocation2]
        %v518 = vld [vmem:[%s517] sm:$0xff]
        %s519 = scalar_lea.vmem %s441, 152 [#allocation2]
        %v520 = vld [vmem:[%s519] sm:$0xff]
        %s521 = scalar_lea.vmem %s441, 168 [#allocation2]
        %v522 = vld [vmem:[%s521] sm:$0xff]
        %s523 = scalar_lea.vmem %s441, 184 [#allocation2]
        %v524 = vld [vmem:[%s523] sm:$0xff]
        %s525 = scalar_lea.vmem %s441, 200 [#allocation2]
        %v526 = vld [vmem:[%s525] sm:$0xff]
        %s527 = scalar_lea.vmem %s441, 216 [#allocation2]
        %v528 = vld [vmem:[%s527] sm:$0xff]
        %v529 = vld [vmem:[%s1] sm:$0xff]
        %v530 = vld [vmem:[%s1 + $0x8] sm:$0xff]
        %v531 = vld [vmem:[%s1 + $0x10] sm:$0xff]
        %v532 = vld [vmem:[%s1 + $0x18] sm:$0xff]
        %v533 = vld [vmem:[%s1 + $0x20] sm:$0xff]
        %v534 = vld [vmem:[%s1 + $0x28] sm:$0xff]
        %v535 = vld [vmem:[%s1 + $0x30] sm:$0xf]
        %v536 = vld [vmem:[%s1 + $0x38] sm:$0xf]
        %s537 = scalar_lea.vmem %s1, 64
        %v538 = vld [vmem:[%s537] sm:$0xff]
        %v539 = vld [vmem:[%s537 + $0x8] sm:$0xff]
        %v540 = vld [vmem:[%s537 + $0x10] sm:$0xff]
        %v541 = vld [vmem:[%s537 + $0x18] sm:$0xff]
        %v542 = vld [vmem:[%s537 + $0x20] sm:$0xff]
        %v543 = vld [vmem:[%s537 + $0x28] sm:$0xff]
        %v544 = vld [vmem:[%s537 + $0x30] sm:$0xf]
        %v545 = vld [vmem:[%s537 + $0x38] sm:$0xf]
        %vm546 = vcmask 228352
        %v548 = vsel %vm546, %v502, 0
        %v551 = vsel %vm546, %v504, 0
        %v554 = vsel %vm546, %v506, 0
        %v557 = vsel %vm546, %v508, 0
        %v560 = vsel %vm546, %v510, 0
        %v563 = vsel %vm546, %v512, 0
        %v566 = vsel %vm546, %v514, 0
        %v569 = vsel %vm546, %v516, 0
        %v572 = vsel %vm546, %v518, 0
        %v575 = vsel %vm546, %v520, 0
        %v578 = vsel %vm546, %v522, 0
        %v581 = vsel %vm546, %v524, 0
        %vm583 = vcmask 1043456
        %v585 = vsel %vm583, %v544, 0
        %v588 = vsel %vm583, %v545, 0
        %590 = vmatprep.subr.mxu0 0.0
        %591 = vmatpush1.msra.mxu0 0.0
        %592 = vmatprep.subr.mxu0 0.0
        %593 = vmatpush1.msra.mxu0 0.0
        %594 = vmatprep.subr.mxu0 0.0
        %595 = vmatpush1.msra.mxu0 0.0
        %596 = vmatprep.subr.mxu0 0.0
        %597 = vmatpush1.msra.mxu0 0.0
        %598 = vmatprep.subr.mxu0 0.0
        %599 = vmatpush1.msra.mxu0 0.0
        %600 = vmatprep.subr.mxu0 0.0
        %601 = vmatpush1.msra.mxu0 0.0
        %602 = vmatprep.subr.mxu0 0.0
        %603 = vmatpush1.msra.mxu0 0.0
        %604 = vmatprep.subr.mxu0 0.0
        %605 = vmatpush1.msra.mxu0 0.0
        %606 = vmatprep.subr.mxu0 0.0
        %607 = vmatpush1.msra.mxu0 0.0
        %608 = vmatprep.subr.mxu0 0.0
        %609 = vmatpush1.msra.mxu0 0.0
        %610 = vmatprep.subr.mxu0 0.0
        %611 = vmatpush1.msra.mxu0 0.0
        %612 = vmatprep.subr.mxu0 0.0
        %613 = vmatpush1.msra.mxu0 0.0
        %614 = vmatprep.subr.mxu0 %v588
        %615 = vmatpush1.msra.mxu0 %v585
        %616 = vmatprep.subr.mxu0 %v543
        %617 = vmatpush1.msra.mxu0 %v542
        %618 = vmatprep.subr.mxu0 %v541
        %619 = vmatpush1.msra.mxu0 %v540
        %620 = vmatprep.subr.mxu0 %v539
        %621 = vmatpush1.msra.mxu0 %v538
        %622 = vmatprep.subr.mxu0 0.0
        %623 = vmatpush2.msra.mxu0 0.0
        %624 = vmatprep.subr.mxu0 0.0
        %625 = vmatpush2.msra.mxu0 0.0
        %626 = vmatprep.subr.mxu0 0.0
        %627 = vmatpush2.msra.mxu0 0.0
        %628 = vmatprep.subr.mxu0 0.0
        %629 = vmatpush2.msra.mxu0 0.0
        %630 = vmatprep.subr.mxu0 0.0
        %631 = vmatpush2.msra.mxu0 0.0
        %632 = vmatprep.subr.mxu0 0.0
        %633 = vmatpush2.msra.mxu0 0.0
        %634 = vmatprep.subr.mxu0 0.0
        %635 = vmatpush2.msra.mxu0 0.0
        %636 = vmatprep.subr.mxu0 0.0
        %637 = vmatpush2.msra.mxu0 0.0
        %638 = vmatprep.subr.mxu0 0.0
        %639 = vmatpush2.msra.mxu0 0.0
        %640 = vmatprep.subr.mxu0 0.0
        %641 = vmatpush2.msra.mxu0 0.0
        %642 = vmatprep.subr.mxu0 0.0
        %643 = vmatpush2.msra.mxu0 0.0
        %644 = vmatprep.subr.mxu0 0.0
        %645 = vmatpush2.msra.mxu0 0.0
        %646 = vmatprep.subr.mxu0 0.0
        %647 = vmatpush2.msra.mxu0 0.0
        %648 = vmatprep.subr.mxu0 0.0
        %649 = vmatpush2.msra.mxu0 0.0
        %650 = vmatprep.subr.mxu0 0.0
        %651 = vmatpush2.msra.mxu0 0.0
        %652 = vmatprep.subr.mxu0 0.0
        %653 = vmatpush2.msra.mxu0 0.0
        %654 = vmatprep.mubr.f32.mxu0 0.0
        %655 = vmatmul.mubr.f32.gmra.mxu0 %v548
        %v656 = vpop.f32.mrf.mxu0
        %v657 = vadd.f32 0.0, %v656
        %v658 = vpop.f32.mrf.mxu0
        %v659 = vadd.f32 0.0, %v658
        %660 = vmatprep.mubr.f32.mxu0 0.0
        %661 = vmatmul.mubr.f32.gmra.mxu0 %v551
        %v662 = vpop.f32.mrf.mxu0
        %v663 = vadd.f32 0.0, %v662
        %v664 = vpop.f32.mrf.mxu0
        %v665 = vadd.f32 0.0, %v664
        %666 = vmatprep.mubr.f32.mxu0 0.0
        %667 = vmatmul.mubr.f32.gmra.mxu0 %v554
        %v668 = vpop.f32.mrf.mxu0
        %v669 = vadd.f32 0.0, %v668
        %v670 = vpop.f32.mrf.mxu0
        %v671 = vadd.f32 0.0, %v670
        %672 = vmatprep.mubr.f32.mxu0 0.0
        %673 = vmatmul.mubr.f32.gmra.mxu0 %v557
        %v674 = vpop.f32.mrf.mxu0
        %v675 = vadd.f32 0.0, %v674
        %v676 = vpop.f32.mrf.mxu0
        %v677 = vadd.f32 0.0, %v676
        %678 = vmatprep.mubr.f32.mxu0 0.0
        %679 = vmatmul.mubr.f32.gmra.mxu0 %v560
        %v680 = vpop.f32.mrf.mxu0
        %v681 = vadd.f32 0.0, %v680
        %v682 = vpop.f32.mrf.mxu0
        %v683 = vadd.f32 0.0, %v682
        %684 = vmatprep.mubr.f32.mxu0 0.0
        %685 = vmatmul.mubr.f32.gmra.mxu0 %v563
        %v686 = vpop.f32.mrf.mxu0
        %v687 = vadd.f32 0.0, %v686
        %v688 = vpop.f32.mrf.mxu0
        %v689 = vadd.f32 0.0, %v688
        %690 = vmatprep.mubr.f32.mxu0 0.0
        %691 = vmatmul.mubr.f32.gmra.mxu0 %v566
        %v692 = vpop.f32.mrf.mxu0
        %v693 = vadd.f32 0.0, %v692
        %v694 = vpop.f32.mrf.mxu0
        %v695 = vadd.f32 0.0, %v694
        %696 = vmatprep.mubr.f32.mxu0 0.0
        %697 = vmatmul.mubr.f32.gmra.mxu0 %v569
        %v698 = vpop.f32.mrf.mxu0
        %v699 = vadd.f32 0.0, %v698
        %v700 = vpop.f32.mrf.mxu0
        %v701 = vadd.f32 0.0, %v700
        %702 = vmatprep.mubr.f32.mxu0 0.0
        %703 = vmatmul.mubr.f32.gmra.mxu0 %v572
        %v704 = vpop.f32.mrf.mxu0
        %v705 = vadd.f32 0.0, %v704
        %v706 = vpop.f32.mrf.mxu0
        %v707 = vadd.f32 0.0, %v706
        %708 = vmatprep.mubr.f32.mxu0 0.0
        %709 = vmatmul.mubr.f32.gmra.mxu0 %v575
        %v710 = vpop.f32.mrf.mxu0
        %v711 = vadd.f32 0.0, %v710
        %v712 = vpop.f32.mrf.mxu0
        %v713 = vadd.f32 0.0, %v712
        %714 = vmatprep.mubr.f32.mxu0 0.0
        %715 = vmatmul.mubr.f32.gmra.mxu0 %v578
        %v716 = vpop.f32.mrf.mxu0
        %v717 = vadd.f32 0.0, %v716
        %v718 = vpop.f32.mrf.mxu0
        %v719 = vadd.f32 0.0, %v718
        %720 = vmatprep.mubr.f32.mxu0 0.0
        %721 = vmatmul.mubr.f32.gmra.mxu0 %v581
        %v722 = vpop.f32.mrf.mxu0
        %v723 = vadd.f32 0.0, %v722
        %v724 = vpop.f32.mrf.mxu0
        %v725 = vadd.f32 0.0, %v724
        %726 = vdwg.mxu0
        %v728 = vsel %vm546, %v474, 0
        %v731 = vsel %vm546, %v476, 0
        %v734 = vsel %vm546, %v478, 0
        %v737 = vsel %vm546, %v480, 0
        %v740 = vsel %vm546, %v482, 0
        %v743 = vsel %vm546, %v484, 0
        %v746 = vsel %vm546, %v486, 0
        %v749 = vsel %vm546, %v488, 0
        %v752 = vsel %vm546, %v490, 0
        %v755 = vsel %vm546, %v492, 0
        %v758 = vsel %vm546, %v494, 0
        %v761 = vsel %vm546, %v496, 0
        %v764 = vsel %vm583, %v535, 0
        %v767 = vsel %vm583, %v536, 0
        %769 = vmatprep.subr.mxu0 0.0
        %770 = vmatpush1.msra.mxu0 0.0
        %771 = vmatprep.subr.mxu0 0.0
        %772 = vmatpush1.msra.mxu0 0.0
        %773 = vmatprep.subr.mxu0 0.0
        %774 = vmatpush1.msra.mxu0 0.0
        %775 = vmatprep.subr.mxu0 0.0
        %776 = vmatpush1.msra.mxu0 0.0
        %777 = vmatprep.subr.mxu0 0.0
        %778 = vmatpush1.msra.mxu0 0.0
        %779 = vmatprep.subr.mxu0 0.0
        %780 = vmatpush1.msra.mxu0 0.0
        %781 = vmatprep.subr.mxu0 0.0
        %782 = vmatpush1.msra.mxu0 0.0
        %783 = vmatprep.subr.mxu0 0.0
        %784 = vmatpush1.msra.mxu0 0.0
        %785 = vmatprep.subr.mxu0 0.0
        %786 = vmatpush1.msra.mxu0 0.0
        %787 = vmatprep.subr.mxu0 0.0
        %788 = vmatpush1.msra.mxu0 0.0
        %789 = vmatprep.subr.mxu0 0.0
        %790 = vmatpush1.msra.mxu0 0.0
        %791 = vmatprep.subr.mxu0 0.0
        %792 = vmatpush1.msra.mxu0 0.0
        %793 = vmatprep.subr.mxu0 %v767
        %794 = vmatpush1.msra.mxu0 %v764
        %795 = vmatprep.subr.mxu0 %v534
        %796 = vmatpush1.msra.mxu0 %v533
        %797 = vmatprep.subr.mxu0 %v532
        %798 = vmatpush1.msra.mxu0 %v531
        %799 = vmatprep.subr.mxu0 %v530
        %800 = vmatpush1.msra.mxu0 %v529
        %801 = vmatprep.subr.mxu0 0.0
        %802 = vmatpush2.msra.mxu0 0.0
        %803 = vmatprep.subr.mxu0 0.0
        %804 = vmatpush2.msra.mxu0 0.0
        %805 = vmatprep.subr.mxu0 0.0
        %806 = vmatpush2.msra.mxu0 0.0
        %807 = vmatprep.subr.mxu0 0.0
        %808 = vmatpush2.msra.mxu0 0.0
        %809 = vmatprep.subr.mxu0 0.0
        %810 = vmatpush2.msra.mxu0 0.0
        %811 = vmatprep.subr.mxu0 0.0
        %812 = vmatpush2.msra.mxu0 0.0
        %813 = vmatprep.subr.mxu0 0.0
        %814 = vmatpush2.msra.mxu0 0.0
        %815 = vmatprep.subr.mxu0 0.0
        %816 = vmatpush2.msra.mxu0 0.0
        %817 = vmatprep.subr.mxu0 0.0
        %818 = vmatpush2.msra.mxu0 0.0
        %819 = vmatprep.subr.mxu0 0.0
        %820 = vmatpush2.msra.mxu0 0.0
        %821 = vmatprep.subr.mxu0 0.0
        %822 = vmatpush2.msra.mxu0 0.0
        %823 = vmatprep.subr.mxu0 0.0
        %824 = vmatpush2.msra.mxu0 0.0
        %825 = vmatprep.subr.mxu0 0.0
        %826 = vmatpush2.msra.mxu0 0.0
        %827 = vmatprep.subr.mxu0 0.0
        %828 = vmatpush2.msra.mxu0 0.0
        %829 = vmatprep.subr.mxu0 0.0
        %830 = vmatpush2.msra.mxu0 0.0
        %831 = vmatprep.subr.mxu0 0.0
        %832 = vmatpush2.msra.mxu0 0.0
        %833 = vmatprep.mubr.f32.mxu0 0.0
        %834 = vmatmul.mubr.f32.gmra.mxu0 %v728
        %v835 = vpop.f32.mrf.mxu0
        %v836 = vadd.f32 %v657, %v835
        %v837 = vpop.f32.mrf.mxu0
        %v838 = vadd.f32 %v659, %v837
        %839 = vmatprep.mubr.f32.mxu0 0.0
        %840 = vmatmul.mubr.f32.gmra.mxu0 %v731
        %v841 = vpop.f32.mrf.mxu0
        %v842 = vadd.f32 %v663, %v841
        %v843 = vpop.f32.mrf.mxu0
        %v844 = vadd.f32 %v665, %v843
        %845 = vmatprep.mubr.f32.mxu0 0.0
        %846 = vmatmul.mubr.f32.gmra.mxu0 %v734
        %v847 = vpop.f32.mrf.mxu0
        %v848 = vadd.f32 %v669, %v847
        %v849 = vpop.f32.mrf.mxu0
        %v850 = vadd.f32 %v671, %v849
        %851 = vmatprep.mubr.f32.mxu0 0.0
        %852 = vmatmul.mubr.f32.gmra.mxu0 %v737
        %v853 = vpop.f32.mrf.mxu0
        %v854 = vadd.f32 %v675, %v853
        %v855 = vpop.f32.mrf.mxu0
        %v856 = vadd.f32 %v677, %v855
        %857 = vmatprep.mubr.f32.mxu0 0.0
        %858 = vmatmul.mubr.f32.gmra.mxu0 %v740
        %v859 = vpop.f32.mrf.mxu0
        %v860 = vadd.f32 %v681, %v859
        %v861 = vpop.f32.mrf.mxu0
        %v862 = vadd.f32 %v683, %v861
        %863 = vmatprep.mubr.f32.mxu0 0.0
        %864 = vmatmul.mubr.f32.gmra.mxu0 %v743
        %v865 = vpop.f32.mrf.mxu0
        %v866 = vadd.f32 %v687, %v865
        %v867 = vpop.f32.mrf.mxu0
        %v868 = vadd.f32 %v689, %v867
        %869 = vmatprep.mubr.f32.mxu0 0.0
        %870 = vmatmul.mubr.f32.gmra.mxu0 %v746
        %v871 = vpop.f32.mrf.mxu0
        %v872 = vadd.f32 %v693, %v871
        %v873 = vpop.f32.mrf.mxu0
        %v874 = vadd.f32 %v695, %v873
        %875 = vmatprep.mubr.f32.mxu0 0.0
        %876 = vmatmul.mubr.f32.gmra.mxu0 %v749
        %v877 = vpop.f32.mrf.mxu0
        %v878 = vadd.f32 %v699, %v877
        %v879 = vpop.f32.mrf.mxu0
        %v880 = vadd.f32 %v701, %v879
        %881 = vmatprep.mubr.f32.mxu0 0.0
        %882 = vmatmul.mubr.f32.gmra.mxu0 %v752
        %v883 = vpop.f32.mrf.mxu0
        %v884 = vadd.f32 %v705, %v883
        %v885 = vpop.f32.mrf.mxu0
        %v886 = vadd.f32 %v707, %v885
        %887 = vmatprep.mubr.f32.mxu0 0.0
        %888 = vmatmul.mubr.f32.gmra.mxu0 %v755
        %v889 = vpop.f32.mrf.mxu0
        %v890 = vadd.f32 %v711, %v889
        %v891 = vpop.f32.mrf.mxu0
        %v892 = vadd.f32 %v713, %v891
        %893 = vmatprep.mubr.f32.mxu0 0.0
        %894 = vmatmul.mubr.f32.gmra.mxu0 %v758
        %v895 = vpop.f32.mrf.mxu0
        %v896 = vadd.f32 %v717, %v895
        %v897 = vpop.f32.mrf.mxu0
        %v898 = vadd.f32 %v719, %v897
        %899 = vmatprep.mubr.f32.mxu0 0.0
        %900 = vmatmul.mubr.f32.gmra.mxu0 %v761
        %v901 = vpop.f32.mrf.mxu0
        %v902 = vadd.f32 %v723, %v901
        %v903 = vpop.f32.mrf.mxu0
        %v904 = vadd.f32 %v725, %v903
        %905 = vdwg.mxu0
        %s906 = scalar_lea.vmem %s1, 128
        %v907 = vld [vmem:[%s906] sm:$0xff]
        %v908 = vld [vmem:[%s906 + $0x8] sm:$0xff]
        %v909 = vld [vmem:[%s906 + $0x10] sm:$0xff]
        %v910 = vld [vmem:[%s906 + $0x18] sm:$0xff]
        %v911 = vld [vmem:[%s906 + $0x20] sm:$0xff]
        %v912 = vld [vmem:[%s906 + $0x28] sm:$0xff]
        %v913 = vld [vmem:[%s906 + $0x30] sm:$0xf]
        %v914 = vld [vmem:[%s906 + $0x38] sm:$0xf]
        %v916 = vsel %vm546, %v498, 0
        %v919 = vsel %vm583, %v913, 0
        %v922 = vsel %vm583, %v914, 0
        %924 = vmatprep.subr.mxu0 0.0
        %925 = vmatpush1.msra.mxu0 0.0
        %926 = vmatprep.subr.mxu0 0.0
        %927 = vmatpush1.msra.mxu0 0.0
        %928 = vmatprep.subr.mxu0 0.0
        %929 = vmatpush1.msra.mxu0 0.0
        %930 = vmatprep.subr.mxu0 0.0
        %931 = vmatpush1.msra.mxu0 0.0
        %932 = vmatprep.subr.mxu0 0.0
        %933 = vmatpush1.msra.mxu0 0.0
        %934 = vmatprep.subr.mxu0 0.0
        %935 = vmatpush1.msra.mxu0 0.0
        %936 = vmatprep.subr.mxu0 0.0
        %937 = vmatpush1.msra.mxu0 0.0
        %938 = vmatprep.subr.mxu0 0.0
        %939 = vmatpush1.msra.mxu0 0.0
        %940 = vmatprep.subr.mxu0 0.0
        %941 = vmatpush1.msra.mxu0 0.0
        %942 = vmatprep.subr.mxu0 0.0
        %943 = vmatpush1.msra.mxu0 0.0
        %944 = vmatprep.subr.mxu0 0.0
        %945 = vmatpush1.msra.mxu0 0.0
        %946 = vmatprep.subr.mxu0 0.0
        %947 = vmatpush1.msra.mxu0 0.0
        %948 = vmatprep.subr.mxu0 %v922
        %949 = vmatpush1.msra.mxu0 %v919
        %950 = vmatprep.subr.mxu0 %v912
        %951 = vmatpush1.msra.mxu0 %v911
        %952 = vmatprep.subr.mxu0 %v910
        %953 = vmatpush1.msra.mxu0 %v909
        %954 = vmatprep.subr.mxu0 %v908
        %955 = vmatpush1.msra.mxu0 %v907
        %956 = vmatprep.subr.mxu0 0.0
        %957 = vmatpush2.msra.mxu0 0.0
        %958 = vmatprep.subr.mxu0 0.0
        %959 = vmatpush2.msra.mxu0 0.0
        %960 = vmatprep.subr.mxu0 0.0
        %961 = vmatpush2.msra.mxu0 0.0
        %962 = vmatprep.subr.mxu0 0.0
        %963 = vmatpush2.msra.mxu0 0.0
        %964 = vmatprep.subr.mxu0 0.0
        %965 = vmatpush2.msra.mxu0 0.0
        %966 = vmatprep.subr.mxu0 0.0
        %967 = vmatpush2.msra.mxu0 0.0
        %968 = vmatprep.subr.mxu0 0.0
        %969 = vmatpush2.msra.mxu0 0.0
        %970 = vmatprep.subr.mxu0 0.0
        %971 = vmatpush2.msra.mxu0 0.0
        %972 = vmatprep.subr.mxu0 0.0
        %973 = vmatpush2.msra.mxu0 0.0
        %974 = vmatprep.subr.mxu0 0.0
        %975 = vmatpush2.msra.mxu0 0.0
        %976 = vmatprep.subr.mxu0 0.0
        %977 = vmatpush2.msra.mxu0 0.0
        %978 = vmatprep.subr.mxu0 0.0
        %979 = vmatpush2.msra.mxu0 0.0
        %980 = vmatprep.subr.mxu0 0.0
        %981 = vmatpush2.msra.mxu0 0.0
        %982 = vmatprep.subr.mxu0 0.0
        %983 = vmatpush2.msra.mxu0 0.0
        %984 = vmatprep.subr.mxu0 0.0
        %985 = vmatpush2.msra.mxu0 0.0
        %986 = vmatprep.subr.mxu0 0.0
        %987 = vmatpush2.msra.mxu0 0.0
        %988 = vmatprep.mubr.f32.mxu0 0.0
        %989 = vmatmul.mubr.f32.gmra.mxu0 %v731
        %v990 = vpop.f32.mrf.mxu0
        %v991 = vadd.f32 0.0, %v990
        %v992 = vpop.f32.mrf.mxu0
        %v993 = vadd.f32 0.0, %v992
        %994 = vmatprep.mubr.f32.mxu0 0.0
        %995 = vmatmul.mubr.f32.gmra.mxu0 %v734
        %v996 = vpop.f32.mrf.mxu0
        %v997 = vadd.f32 0.0, %v996
        %v998 = vpop.f32.mrf.mxu0
        %v999 = vadd.f32 0.0, %v998
        %1000 = vmatprep.mubr.f32.mxu0 0.0
        %1001 = vmatmul.mubr.f32.gmra.mxu0 %v737
        %v1002 = vpop.f32.mrf.mxu0
        %v1003 = vadd.f32 0.0, %v1002
        %v1004 = vpop.f32.mrf.mxu0
        %v1005 = vadd.f32 0.0, %v1004
        %1006 = vmatprep.mubr.f32.mxu0 0.0
        %1007 = vmatmul.mubr.f32.gmra.mxu0 %v740
        %v1008 = vpop.f32.mrf.mxu0
        %v1009 = vadd.f32 0.0, %v1008
        %v1010 = vpop.f32.mrf.mxu0
        %v1011 = vadd.f32 0.0, %v1010
        %1012 = vmatprep.mubr.f32.mxu0 0.0
        %1013 = vmatmul.mubr.f32.gmra.mxu0 %v743
        %v1014 = vpop.f32.mrf.mxu0
        %v1015 = vadd.f32 0.0, %v1014
        %v1016 = vpop.f32.mrf.mxu0
        %v1017 = vadd.f32 0.0, %v1016
        %1018 = vmatprep.mubr.f32.mxu0 0.0
        %1019 = vmatmul.mubr.f32.gmra.mxu0 %v746
        %v1020 = vpop.f32.mrf.mxu0
        %v1021 = vadd.f32 0.0, %v1020
        %v1022 = vpop.f32.mrf.mxu0
        %v1023 = vadd.f32 0.0, %v1022
        %1024 = vmatprep.mubr.f32.mxu0 0.0
        %1025 = vmatmul.mubr.f32.gmra.mxu0 %v749
        %v1026 = vpop.f32.mrf.mxu0
        %v1027 = vadd.f32 0.0, %v1026
        %v1028 = vpop.f32.mrf.mxu0
        %v1029 = vadd.f32 0.0, %v1028
        %1030 = vmatprep.mubr.f32.mxu0 0.0
        %1031 = vmatmul.mubr.f32.gmra.mxu0 %v752
        %v1032 = vpop.f32.mrf.mxu0
        %v1033 = vadd.f32 0.0, %v1032
        %v1034 = vpop.f32.mrf.mxu0
        %v1035 = vadd.f32 0.0, %v1034
        %1036 = vmatprep.mubr.f32.mxu0 0.0
        %1037 = vmatmul.mubr.f32.gmra.mxu0 %v755
        %v1038 = vpop.f32.mrf.mxu0
        %v1039 = vadd.f32 0.0, %v1038
        %v1040 = vpop.f32.mrf.mxu0
        %v1041 = vadd.f32 0.0, %v1040
        %1042 = vmatprep.mubr.f32.mxu0 0.0
        %1043 = vmatmul.mubr.f32.gmra.mxu0 %v758
        %v1044 = vpop.f32.mrf.mxu0
        %v1045 = vadd.f32 0.0, %v1044
        %v1046 = vpop.f32.mrf.mxu0
        %v1047 = vadd.f32 0.0, %v1046
        %1048 = vmatprep.mubr.f32.mxu0 0.0
        %1049 = vmatmul.mubr.f32.gmra.mxu0 %v761
        %v1050 = vpop.f32.mrf.mxu0
        %v1051 = vadd.f32 0.0, %v1050
        %v1052 = vpop.f32.mrf.mxu0
        %v1053 = vadd.f32 0.0, %v1052
        %1054 = vmatprep.mubr.f32.mxu0 0.0
        %1055 = vmatmul.mubr.f32.gmra.mxu0 %v916
        %v1056 = vpop.f32.mrf.mxu0
        %v1057 = vadd.f32 0.0, %v1056
        %v1058 = vpop.f32.mrf.mxu0
        %v1059 = vadd.f32 0.0, %v1058
        %1060 = vdwg.mxu0
        %v1061 = vadd.f32 %v836, %v991
        %v1062 = vadd.f32 %v838, %v993
        %v1063 = vadd.f32 %v842, %v997
        %v1064 = vadd.f32 %v844, %v999
        %v1065 = vadd.f32 %v848, %v1003
        %v1066 = vadd.f32 %v850, %v1005
        %v1067 = vadd.f32 %v854, %v1009
        %v1068 = vadd.f32 %v856, %v1011
        %v1069 = vadd.f32 %v860, %v1015
        %v1070 = vadd.f32 %v862, %v1017
        %v1071 = vadd.f32 %v866, %v1021
        %v1072 = vadd.f32 %v868, %v1023
        %v1073 = vadd.f32 %v872, %v1027
        %v1074 = vadd.f32 %v874, %v1029
        %v1075 = vadd.f32 %v878, %v1033
        %v1076 = vadd.f32 %v880, %v1035
        %v1077 = vadd.f32 %v884, %v1039
        %v1078 = vadd.f32 %v886, %v1041
        %v1079 = vadd.f32 %v890, %v1045
        %v1080 = vadd.f32 %v892, %v1047
        %v1081 = vadd.f32 %v896, %v1051
        %v1082 = vadd.f32 %v898, %v1053
        %v1083 = vadd.f32 %v902, %v1057
        %v1084 = vadd.f32 %v904, %v1059
        %s1085 = scalar_lea.vmem %s1, 192
        %v1086 = vld [vmem:[%s1085] sm:$0xff]
        %v1087 = vld [vmem:[%s1085 + $0x8] sm:$0xff]
        %v1088 = vld [vmem:[%s1085 + $0x10] sm:$0xff]
        %v1089 = vld [vmem:[%s1085 + $0x18] sm:$0xff]
        %v1090 = vld [vmem:[%s1085 + $0x20] sm:$0xff]
        %v1091 = vld [vmem:[%s1085 + $0x28] sm:$0xff]
        %v1092 = vld [vmem:[%s1085 + $0x30] sm:$0xf]
        %v1093 = vld [vmem:[%s1085 + $0x38] sm:$0xf]
        %v1095 = vsel %vm546, %v526, 0
        %v1098 = vsel %vm583, %v1092, 0
        %v1101 = vsel %vm583, %v1093, 0
        %1103 = vmatprep.subr.mxu0 0.0
        %1104 = vmatpush1.msra.mxu0 0.0
        %1105 = vmatprep.subr.mxu0 0.0
        %1106 = vmatpush1.msra.mxu0 0.0
        %1107 = vmatprep.subr.mxu0 0.0
        %1108 = vmatpush1.msra.mxu0 0.0
        %1109 = vmatprep.subr.mxu0 0.0
        %1110 = vmatpush1.msra.mxu0 0.0
        %1111 = vmatprep.subr.mxu0 0.0
        %1112 = vmatpush1.msra.mxu0 0.0
        %1113 = vmatprep.subr.mxu0 0.0
        %1114 = vmatpush1.msra.mxu0 0.0
        %1115 = vmatprep.subr.mxu0 0.0
        %1116 = vmatpush1.msra.mxu0 0.0
        %1117 = vmatprep.subr.mxu0 0.0
        %1118 = vmatpush1.msra.mxu0 0.0
        %1119 = vmatprep.subr.mxu0 0.0
        %1120 = vmatpush1.msra.mxu0 0.0
        %1121 = vmatprep.subr.mxu0 0.0
        %1122 = vmatpush1.msra.mxu0 0.0
        %1123 = vmatprep.subr.mxu0 0.0
        %1124 = vmatpush1.msra.mxu0 0.0
        %1125 = vmatprep.subr.mxu0 0.0
        %1126 = vmatpush1.msra.mxu0 0.0
        %1127 = vmatprep.subr.mxu0 %v1101
        %1128 = vmatpush1.msra.mxu0 %v1098
        %1129 = vmatprep.subr.mxu0 %v1091
        %1130 = vmatpush1.msra.mxu0 %v1090
        %1131 = vmatprep.subr.mxu0 %v1089
        %1132 = vmatpush1.msra.mxu0 %v1088
        %1133 = vmatprep.subr.mxu0 %v1087
        %1134 = vmatpush1.msra.mxu0 %v1086
        %1135 = vmatprep.subr.mxu0 0.0
        %1136 = vmatpush2.msra.mxu0 0.0
        %1137 = vmatprep.subr.mxu0 0.0
        %1138 = vmatpush2.msra.mxu0 0.0
        %1139 = vmatprep.subr.mxu0 0.0
        %1140 = vmatpush2.msra.mxu0 0.0
        %1141 = vmatprep.subr.mxu0 0.0
        %1142 = vmatpush2.msra.mxu0 0.0
        %1143 = vmatprep.subr.mxu0 0.0
        %1144 = vmatpush2.msra.mxu0 0.0
        %1145 = vmatprep.subr.mxu0 0.0
        %1146 = vmatpush2.msra.mxu0 0.0
        %1147 = vmatprep.subr.mxu0 0.0
        %1148 = vmatpush2.msra.mxu0 0.0
        %1149 = vmatprep.subr.mxu0 0.0
        %1150 = vmatpush2.msra.mxu0 0.0
        %1151 = vmatprep.subr.mxu0 0.0
        %1152 = vmatpush2.msra.mxu0 0.0
        %1153 = vmatprep.subr.mxu0 0.0
        %1154 = vmatpush2.msra.mxu0 0.0
        %1155 = vmatprep.subr.mxu0 0.0
        %1156 = vmatpush2.msra.mxu0 0.0
        %1157 = vmatprep.subr.mxu0 0.0
        %1158 = vmatpush2.msra.mxu0 0.0
        %1159 = vmatprep.subr.mxu0 0.0
        %1160 = vmatpush2.msra.mxu0 0.0
        %1161 = vmatprep.subr.mxu0 0.0
        %1162 = vmatpush2.msra.mxu0 0.0
        %1163 = vmatprep.subr.mxu0 0.0
        %1164 = vmatpush2.msra.mxu0 0.0
        %1165 = vmatprep.subr.mxu0 0.0
        %1166 = vmatpush2.msra.mxu0 0.0
        %1167 = vmatprep.mubr.f32.mxu0 0.0
        %1168 = vmatmul.mubr.f32.gmra.mxu0 %v551
        %v1169 = vpop.f32.mrf.mxu0
        %v1170 = vadd.f32 0.0, %v1169
        %v1171 = vpop.f32.mrf.mxu0
        %v1172 = vadd.f32 0.0, %v1171
        %1173 = vmatprep.mubr.f32.mxu0 0.0
        %1174 = vmatmul.mubr.f32.gmra.mxu0 %v554
        %v1175 = vpop.f32.mrf.mxu0
        %v1176 = vadd.f32 0.0, %v1175
        %v1177 = vpop.f32.mrf.mxu0
        %v1178 = vadd.f32 0.0, %v1177
        %1179 = vmatprep.mubr.f32.mxu0 0.0
        %1180 = vmatmul.mubr.f32.gmra.mxu0 %v557
        %v1181 = vpop.f32.mrf.mxu0
        %v1182 = vadd.f32 0.0, %v1181
        %v1183 = vpop.f32.mrf.mxu0
        %v1184 = vadd.f32 0.0, %v1183
        %1185 = vmatprep.mubr.f32.mxu0 0.0
        %1186 = vmatmul.mubr.f32.gmra.mxu0 %v560
        %v1187 = vpop.f32.mrf.mxu0
        %v1188 = vadd.f32 0.0, %v1187
        %v1189 = vpop.f32.mrf.mxu0
        %v1190 = vadd.f32 0.0, %v1189
        %1191 = vmatprep.mubr.f32.mxu0 0.0
        %1192 = vmatmul.mubr.f32.gmra.mxu0 %v563
        %v1193 = vpop.f32.mrf.mxu0
        %v1194 = vadd.f32 0.0, %v1193
        %v1195 = vpop.f32.mrf.mxu0
        %v1196 = vadd.f32 0.0, %v1195
        %1197 = vmatprep.mubr.f32.mxu0 0.0
        %1198 = vmatmul.mubr.f32.gmra.mxu0 %v566
        %v1199 = vpop.f32.mrf.mxu0
        %v1200 = vadd.f32 0.0, %v1199
        %v1201 = vpop.f32.mrf.mxu0
        %v1202 = vadd.f32 0.0, %v1201
        %1203 = vmatprep.mubr.f32.mxu0 0.0
        %1204 = vmatmul.mubr.f32.gmra.mxu0 %v569
        %v1205 = vpop.f32.mrf.mxu0
        %v1206 = vadd.f32 0.0, %v1205
        %v1207 = vpop.f32.mrf.mxu0
        %v1208 = vadd.f32 0.0, %v1207
        %1209 = vmatprep.mubr.f32.mxu0 0.0
        %1210 = vmatmul.mubr.f32.gmra.mxu0 %v572
        %v1211 = vpop.f32.mrf.mxu0
        %v1212 = vadd.f32 0.0, %v1211
        %v1213 = vpop.f32.mrf.mxu0
        %v1214 = vadd.f32 0.0, %v1213
        %1215 = vmatprep.mubr.f32.mxu0 0.0
        %1216 = vmatmul.mubr.f32.gmra.mxu0 %v575
        %v1217 = vpop.f32.mrf.mxu0
        %v1218 = vadd.f32 0.0, %v1217
        %v1219 = vpop.f32.mrf.mxu0
        %v1220 = vadd.f32 0.0, %v1219
        %1221 = vmatprep.mubr.f32.mxu0 0.0
        %1222 = vmatmul.mubr.f32.gmra.mxu0 %v578
        %v1223 = vpop.f32.mrf.mxu0
        %v1224 = vadd.f32 0.0, %v1223
        %v1225 = vpop.f32.mrf.mxu0
        %v1226 = vadd.f32 0.0, %v1225
        %1227 = vmatprep.mubr.f32.mxu0 0.0
        %1228 = vmatmul.mubr.f32.gmra.mxu0 %v581
        %v1229 = vpop.f32.mrf.mxu0
        %v1230 = vadd.f32 0.0, %v1229
        %v1231 = vpop.f32.mrf.mxu0
        %v1232 = vadd.f32 0.0, %v1231
        %1233 = vmatprep.mubr.f32.mxu0 0.0
        %1234 = vmatmul.mubr.f32.gmra.mxu0 %v1095
        %v1235 = vpop.f32.mrf.mxu0
        %v1236 = vadd.f32 0.0, %v1235
        %v1237 = vpop.f32.mrf.mxu0
        %v1238 = vadd.f32 0.0, %v1237
        %1239 = vdwg.mxu0
        %v1240 = vadd.f32 %v1061, %v1170
        %v1241 = vadd.f32 %v1062, %v1172
        %v1242 = vadd.f32 %v1063, %v1176
        %v1243 = vadd.f32 %v1064, %v1178
        %v1244 = vadd.f32 %v1065, %v1182
        %v1245 = vadd.f32 %v1066, %v1184
        %v1246 = vadd.f32 %v1067, %v1188
        %v1247 = vadd.f32 %v1068, %v1190
        %v1248 = vadd.f32 %v1069, %v1194
        %v1249 = vadd.f32 %v1070, %v1196
        %v1250 = vadd.f32 %v1071, %v1200
        %v1251 = vadd.f32 %v1072, %v1202
        %v1252 = vadd.f32 %v1073, %v1206
        %v1253 = vadd.f32 %v1074, %v1208
        %v1254 = vadd.f32 %v1075, %v1212
        %v1255 = vadd.f32 %v1076, %v1214
        %v1256 = vadd.f32 %v1077, %v1218
        %v1257 = vadd.f32 %v1078, %v1220
        %v1258 = vadd.f32 %v1079, %v1224
        %v1259 = vadd.f32 %v1080, %v1226
        %v1260 = vadd.f32 %v1081, %v1230
        %v1261 = vadd.f32 %v1082, %v1232
        %v1262 = vadd.f32 %v1083, %v1236
        %v1263 = vadd.f32 %v1084, %v1238
        %s1264 = scalar_lea.vmem %s1, 256
        %v1265 = vld [vmem:[%s1264] sm:$0xff]
        %v1266 = vld [vmem:[%s1264 + $0x8] sm:$0xff]
        %v1267 = vld [vmem:[%s1264 + $0x10] sm:$0xff]
        %v1268 = vld [vmem:[%s1264 + $0x18] sm:$0xff]
        %v1269 = vld [vmem:[%s1264 + $0x20] sm:$0xff]
        %v1270 = vld [vmem:[%s1264 + $0x28] sm:$0xff]
        %v1271 = vld [vmem:[%s1264 + $0x30] sm:$0xf]
        %v1272 = vld [vmem:[%s1264 + $0x38] sm:$0xf]
        %v1274 = vsel %vm546, %v500, 0
        %v1277 = vsel %vm583, %v1271, 0
        %v1280 = vsel %vm583, %v1272, 0
        %1282 = vmatprep.subr.mxu0 0.0
        %1283 = vmatpush1.msra.mxu0 0.0
        %1284 = vmatprep.subr.mxu0 0.0
        %1285 = vmatpush1.msra.mxu0 0.0
        %1286 = vmatprep.subr.mxu0 0.0
        %1287 = vmatpush1.msra.mxu0 0.0
        %1288 = vmatprep.subr.mxu0 0.0
        %1289 = vmatpush1.msra.mxu0 0.0
        %1290 = vmatprep.subr.mxu0 0.0
        %1291 = vmatpush1.msra.mxu0 0.0
        %1292 = vmatprep.subr.mxu0 0.0
        %1293 = vmatpush1.msra.mxu0 0.0
        %1294 = vmatprep.subr.mxu0 0.0
        %1295 = vmatpush1.msra.mxu0 0.0
        %1296 = vmatprep.subr.mxu0 0.0
        %1297 = vmatpush1.msra.mxu0 0.0
        %1298 = vmatprep.subr.mxu0 0.0
        %1299 = vmatpush1.msra.mxu0 0.0
        %1300 = vmatprep.subr.mxu0 0.0
        %1301 = vmatpush1.msra.mxu0 0.0
        %1302 = vmatprep.subr.mxu0 0.0
        %1303 = vmatpush1.msra.mxu0 0.0
        %1304 = vmatprep.subr.mxu0 0.0
        %1305 = vmatpush1.msra.mxu0 0.0
        %1306 = vmatprep.subr.mxu0 %v1280
        %1307 = vmatpush1.msra.mxu0 %v1277
        %1308 = vmatprep.subr.mxu0 %v1270
        %1309 = vmatpush1.msra.mxu0 %v1269
        %1310 = vmatprep.subr.mxu0 %v1268
        %1311 = vmatpush1.msra.mxu0 %v1267
        %1312 = vmatprep.subr.mxu0 %v1266
        %1313 = vmatpush1.msra.mxu0 %v1265
        %1314 = vmatprep.subr.mxu0 0.0
        %1315 = vmatpush2.msra.mxu0 0.0
        %1316 = vmatprep.subr.mxu0 0.0
        %1317 = vmatpush2.msra.mxu0 0.0
        %1318 = vmatprep.subr.mxu0 0.0
        %1319 = vmatpush2.msra.mxu0 0.0
        %1320 = vmatprep.subr.mxu0 0.0
        %1321 = vmatpush2.msra.mxu0 0.0
        %1322 = vmatprep.subr.mxu0 0.0
        %1323 = vmatpush2.msra.mxu0 0.0
        %1324 = vmatprep.subr.mxu0 0.0
        %1325 = vmatpush2.msra.mxu0 0.0
        %1326 = vmatprep.subr.mxu0 0.0
        %1327 = vmatpush2.msra.mxu0 0.0
        %1328 = vmatprep.subr.mxu0 0.0
        %1329 = vmatpush2.msra.mxu0 0.0
        %1330 = vmatprep.subr.mxu0 0.0
        %1331 = vmatpush2.msra.mxu0 0.0
        %1332 = vmatprep.subr.mxu0 0.0
        %1333 = vmatpush2.msra.mxu0 0.0
        %1334 = vmatprep.subr.mxu0 0.0
        %1335 = vmatpush2.msra.mxu0 0.0
        %1336 = vmatprep.subr.mxu0 0.0
        %1337 = vmatpush2.msra.mxu0 0.0
        %1338 = vmatprep.subr.mxu0 0.0
        %1339 = vmatpush2.msra.mxu0 0.0
        %1340 = vmatprep.subr.mxu0 0.0
        %1341 = vmatpush2.msra.mxu0 0.0
        %1342 = vmatprep.subr.mxu0 0.0
        %1343 = vmatpush2.msra.mxu0 0.0
        %1344 = vmatprep.subr.mxu0 0.0
        %1345 = vmatpush2.msra.mxu0 0.0
        %1346 = vmatprep.mubr.f32.mxu0 0.0
        %1347 = vmatmul.mubr.f32.gmra.mxu0 %v734
        %v1348 = vpop.f32.mrf.mxu0
        %v1349 = vadd.f32 0.0, %v1348
        %v1350 = vpop.f32.mrf.mxu0
        %v1351 = vadd.f32 0.0, %v1350
        %1352 = vmatprep.mubr.f32.mxu0 0.0
        %1353 = vmatmul.mubr.f32.gmra.mxu0 %v737
        %v1354 = vpop.f32.mrf.mxu0
        %v1355 = vadd.f32 0.0, %v1354
        %v1356 = vpop.f32.mrf.mxu0
        %v1357 = vadd.f32 0.0, %v1356
        %1358 = vmatprep.mubr.f32.mxu0 0.0
        %1359 = vmatmul.mubr.f32.gmra.mxu0 %v740
        %v1360 = vpop.f32.mrf.mxu0
        %v1361 = vadd.f32 0.0, %v1360
        %v1362 = vpop.f32.mrf.mxu0
        %v1363 = vadd.f32 0.0, %v1362
        %1364 = vmatprep.mubr.f32.mxu0 0.0
        %1365 = vmatmul.mubr.f32.gmra.mxu0 %v743
        %v1366 = vpop.f32.mrf.mxu0
        %v1367 = vadd.f32 0.0, %v1366
        %v1368 = vpop.f32.mrf.mxu0
        %v1369 = vadd.f32 0.0, %v1368
        %1370 = vmatprep.mubr.f32.mxu0 0.0
        %1371 = vmatmul.mubr.f32.gmra.mxu0 %v746
        %v1372 = vpop.f32.mrf.mxu0
        %v1373 = vadd.f32 0.0, %v1372
        %v1374 = vpop.f32.mrf.mxu0
        %v1375 = vadd.f32 0.0, %v1374
        %1376 = vmatprep.mubr.f32.mxu0 0.0
        %1377 = vmatmul.mubr.f32.gmra.mxu0 %v749
        %v1378 = vpop.f32.mrf.mxu0
        %v1379 = vadd.f32 0.0, %v1378
        %v1380 = vpop.f32.mrf.mxu0
        %v1381 = vadd.f32 0.0, %v1380
        %1382 = vmatprep.mubr.f32.mxu0 0.0
        %1383 = vmatmul.mubr.f32.gmra.mxu0 %v752
        %v1384 = vpop.f32.mrf.mxu0
        %v1385 = vadd.f32 0.0, %v1384
        %v1386 = vpop.f32.mrf.mxu0
        %v1387 = vadd.f32 0.0, %v1386
        %1388 = vmatprep.mubr.f32.mxu0 0.0
        %1389 = vmatmul.mubr.f32.gmra.mxu0 %v755
        %v1390 = vpop.f32.mrf.mxu0
        %v1391 = vadd.f32 0.0, %v1390
        %v1392 = vpop.f32.mrf.mxu0
        %v1393 = vadd.f32 0.0, %v1392
        %1394 = vmatprep.mubr.f32.mxu0 0.0
        %1395 = vmatmul.mubr.f32.gmra.mxu0 %v758
        %v1396 = vpop.f32.mrf.mxu0
        %v1397 = vadd.f32 0.0, %v1396
        %v1398 = vpop.f32.mrf.mxu0
        %v1399 = vadd.f32 0.0, %v1398
        %1400 = vmatprep.mubr.f32.mxu0 0.0
        %1401 = vmatmul.mubr.f32.gmra.mxu0 %v761
        %v1402 = vpop.f32.mrf.mxu0
        %v1403 = vadd.f32 0.0, %v1402
        %v1404 = vpop.f32.mrf.mxu0
        %v1405 = vadd.f32 0.0, %v1404
        %1406 = vmatprep.mubr.f32.mxu0 0.0
        %1407 = vmatmul.mubr.f32.gmra.mxu0 %v916
        %v1408 = vpop.f32.mrf.mxu0
        %v1409 = vadd.f32 0.0, %v1408
        %v1410 = vpop.f32.mrf.mxu0
        %v1411 = vadd.f32 0.0, %v1410
        %1412 = vmatprep.mubr.f32.mxu0 0.0
        %1413 = vmatmul.mubr.f32.gmra.mxu0 %v1274
        %v1414 = vpop.f32.mrf.mxu0
        %v1415 = vadd.f32 0.0, %v1414
        %v1416 = vpop.f32.mrf.mxu0
        %v1417 = vadd.f32 0.0, %v1416
        %1418 = vdwg.mxu0
        %v1419 = vadd.f32 %v1240, %v1349
        %v1420 = vadd.f32 %v1241, %v1351
        %v1421 = vadd.f32 %v1242, %v1355
        %v1422 = vadd.f32 %v1243, %v1357
        %v1423 = vadd.f32 %v1244, %v1361
        %v1424 = vadd.f32 %v1245, %v1363
        %v1425 = vadd.f32 %v1246, %v1367
        %v1426 = vadd.f32 %v1247, %v1369
        %v1427 = vadd.f32 %v1248, %v1373
        %v1428 = vadd.f32 %v1249, %v1375
        %v1429 = vadd.f32 %v1250, %v1379
        %v1430 = vadd.f32 %v1251, %v1381
        %v1431 = vadd.f32 %v1252, %v1385
        %v1432 = vadd.f32 %v1253, %v1387
        %v1433 = vadd.f32 %v1254, %v1391
        %v1434 = vadd.f32 %v1255, %v1393
        %v1435 = vadd.f32 %v1256, %v1397
        %v1436 = vadd.f32 %v1257, %v1399
        %v1437 = vadd.f32 %v1258, %v1403
        %v1438 = vadd.f32 %v1259, %v1405
        %v1439 = vadd.f32 %v1260, %v1409
        %v1440 = vadd.f32 %v1261, %v1411
        %v1441 = vadd.f32 %v1262, %v1415
        %v1442 = vadd.f32 %v1263, %v1417
        %1443 = vmatprep.subr.mxu0 0.0
        %1444 = vmatpush1.msra.mxu0 0.0
        %1445 = vmatprep.subr.mxu0 0.0
        %1446 = vmatpush1.msra.mxu0 0.0
        %1447 = vmatprep.subr.mxu0 0.0
        %1448 = vmatpush1.msra.mxu0 0.0
        %1449 = vmatprep.subr.mxu0 0.0
        %1450 = vmatpush1.msra.mxu0 0.0
        %1451 = vmatprep.subr.mxu0 0.0
        %1452 = vmatpush1.msra.mxu0 0.0
        %1453 = vmatprep.subr.mxu0 0.0
        %1454 = vmatpush1.msra.mxu0 0.0
        %1455 = vmatprep.subr.mxu0 0.0
        %1456 = vmatpush1.msra.mxu0 0.0
        %1457 = vmatprep.subr.mxu0 0.0
        %1458 = vmatpush1.msra.mxu0 0.0
        %1459 = vmatprep.subr.mxu0 0.0
        %1460 = vmatpush1.msra.mxu0 0.0
        %1461 = vmatprep.subr.mxu0 0.0
        %1462 = vmatpush1.msra.mxu0 0.0
        %1463 = vmatprep.subr.mxu0 0.0
        %1464 = vmatpush1.msra.mxu0 0.0
        %1465 = vmatprep.subr.mxu0 0.0
        %1466 = vmatpush1.msra.mxu0 0.0
        %1467 = vmatprep.subr.mxu0 %v588
        %1468 = vmatpush1.msra.mxu0 %v585
        %1469 = vmatprep.subr.mxu0 %v543
        %1470 = vmatpush1.msra.mxu0 %v542
        %1471 = vmatprep.subr.mxu0 %v541
        %1472 = vmatpush1.msra.mxu0 %v540
        %1473 = vmatprep.subr.mxu0 %v539
        %1474 = vmatpush1.msra.mxu0 %v538
        %1475 = vmatprep.subr.mxu0 0.0
        %1476 = vmatpush2.msra.mxu0 0.0
        %1477 = vmatprep.subr.mxu0 0.0
        %1478 = vmatpush2.msra.mxu0 0.0
        %1479 = vmatprep.subr.mxu0 0.0
        %1480 = vmatpush2.msra.mxu0 0.0
        %1481 = vmatprep.subr.mxu0 0.0
        %1482 = vmatpush2.msra.mxu0 0.0
        %1483 = vmatprep.subr.mxu0 0.0
        %1484 = vmatpush2.msra.mxu0 0.0
        %1485 = vmatprep.subr.mxu0 0.0
        %1486 = vmatpush2.msra.mxu0 0.0
        %1487 = vmatprep.subr.mxu0 0.0
        %1488 = vmatpush2.msra.mxu0 0.0
        %1489 = vmatprep.subr.mxu0 0.0
        %1490 = vmatpush2.msra.mxu0 0.0
        %1491 = vmatprep.subr.mxu0 0.0
        %1492 = vmatpush2.msra.mxu0 0.0
        %1493 = vmatprep.subr.mxu0 0.0
        %1494 = vmatpush2.msra.mxu0 0.0
        %1495 = vmatprep.subr.mxu0 0.0
        %1496 = vmatpush2.msra.mxu0 0.0
        %1497 = vmatprep.subr.mxu0 0.0
        %1498 = vmatpush2.msra.mxu0 0.0
        %1499 = vmatprep.subr.mxu0 0.0
        %1500 = vmatpush2.msra.mxu0 0.0
        %1501 = vmatprep.subr.mxu0 0.0
        %1502 = vmatpush2.msra.mxu0 0.0
        %1503 = vmatprep.subr.mxu0 0.0
        %1504 = vmatpush2.msra.mxu0 0.0
        %1505 = vmatprep.subr.mxu0 0.0
        %1506 = vmatpush2.msra.mxu0 0.0
        %1507 = vmatprep.mubr.f32.mxu0 0.0
        %1508 = vmatmul.mubr.f32.gmra.mxu0 %v731
        %v1509 = vpop.f32.mrf.mxu0
        %v1510 = vadd.f32 0.0, %v1509
        %v1511 = vpop.f32.mrf.mxu0
        %v1512 = vadd.f32 0.0, %v1511
        %1513 = vmatprep.mubr.f32.mxu0 0.0
        %1514 = vmatmul.mubr.f32.gmra.mxu0 %v734
        %v1515 = vpop.f32.mrf.mxu0
        %v1516 = vadd.f32 0.0, %v1515
        %v1517 = vpop.f32.mrf.mxu0
        %v1518 = vadd.f32 0.0, %v1517
        %1519 = vmatprep.mubr.f32.mxu0 0.0
        %1520 = vmatmul.mubr.f32.gmra.mxu0 %v737
        %v1521 = vpop.f32.mrf.mxu0
        %v1522 = vadd.f32 0.0, %v1521
        %v1523 = vpop.f32.mrf.mxu0
        %v1524 = vadd.f32 0.0, %v1523
        %1525 = vmatprep.mubr.f32.mxu0 0.0
        %1526 = vmatmul.mubr.f32.gmra.mxu0 %v740
        %v1527 = vpop.f32.mrf.mxu0
        %v1528 = vadd.f32 0.0, %v1527
        %v1529 = vpop.f32.mrf.mxu0
        %v1530 = vadd.f32 0.0, %v1529
        %1531 = vmatprep.mubr.f32.mxu0 0.0
        %1532 = vmatmul.mubr.f32.gmra.mxu0 %v743
        %v1533 = vpop.f32.mrf.mxu0
        %v1534 = vadd.f32 0.0, %v1533
        %v1535 = vpop.f32.mrf.mxu0
        %v1536 = vadd.f32 0.0, %v1535
        %1537 = vmatprep.mubr.f32.mxu0 0.0
        %1538 = vmatmul.mubr.f32.gmra.mxu0 %v746
        %v1539 = vpop.f32.mrf.mxu0
        %v1540 = vadd.f32 0.0, %v1539
        %v1541 = vpop.f32.mrf.mxu0
        %v1542 = vadd.f32 0.0, %v1541
        %1543 = vmatprep.mubr.f32.mxu0 0.0
        %1544 = vmatmul.mubr.f32.gmra.mxu0 %v749
        %v1545 = vpop.f32.mrf.mxu0
        %v1546 = vadd.f32 0.0, %v1545
        %v1547 = vpop.f32.mrf.mxu0
        %v1548 = vadd.f32 0.0, %v1547
        %1549 = vmatprep.mubr.f32.mxu0 0.0
        %1550 = vmatmul.mubr.f32.gmra.mxu0 %v752
        %v1551 = vpop.f32.mrf.mxu0
        %v1552 = vadd.f32 0.0, %v1551
        %v1553 = vpop.f32.mrf.mxu0
        %v1554 = vadd.f32 0.0, %v1553
        %1555 = vmatprep.mubr.f32.mxu0 0.0
        %1556 = vmatmul.mubr.f32.gmra.mxu0 %v755
        %v1557 = vpop.f32.mrf.mxu0
        %v1558 = vadd.f32 0.0, %v1557
        %v1559 = vpop.f32.mrf.mxu0
        %v1560 = vadd.f32 0.0, %v1559
        %1561 = vmatprep.mubr.f32.mxu0 0.0
        %1562 = vmatmul.mubr.f32.gmra.mxu0 %v758
        %v1563 = vpop.f32.mrf.mxu0
        %v1564 = vadd.f32 0.0, %v1563
        %v1565 = vpop.f32.mrf.mxu0
        %v1566 = vadd.f32 0.0, %v1565
        %1567 = vmatprep.mubr.f32.mxu0 0.0
        %1568 = vmatmul.mubr.f32.gmra.mxu0 %v761
        %v1569 = vpop.f32.mrf.mxu0
        %v1570 = vadd.f32 0.0, %v1569
        %v1571 = vpop.f32.mrf.mxu0
        %v1572 = vadd.f32 0.0, %v1571
        %1573 = vmatprep.mubr.f32.mxu0 0.0
        %1574 = vmatmul.mubr.f32.gmra.mxu0 %v916
        %v1575 = vpop.f32.mrf.mxu0
        %v1576 = vadd.f32 0.0, %v1575
        %v1577 = vpop.f32.mrf.mxu0
        %v1578 = vadd.f32 0.0, %v1577
        %1579 = vdwg.mxu0
        %1580 = vmatprep.subr.mxu0 0.0
        %1581 = vmatpush1.msra.mxu0 0.0
        %1582 = vmatprep.subr.mxu0 0.0
        %1583 = vmatpush1.msra.mxu0 0.0
        %1584 = vmatprep.subr.mxu0 0.0
        %1585 = vmatpush1.msra.mxu0 0.0
        %1586 = vmatprep.subr.mxu0 0.0
        %1587 = vmatpush1.msra.mxu0 0.0
        %1588 = vmatprep.subr.mxu0 0.0
        %1589 = vmatpush1.msra.mxu0 0.0
        %1590 = vmatprep.subr.mxu0 0.0
        %1591 = vmatpush1.msra.mxu0 0.0
        %1592 = vmatprep.subr.mxu0 0.0
        %1593 = vmatpush1.msra.mxu0 0.0
        %1594 = vmatprep.subr.mxu0 0.0
        %1595 = vmatpush1.msra.mxu0 0.0
        %1596 = vmatprep.subr.mxu0 0.0
        %1597 = vmatpush1.msra.mxu0 0.0
        %1598 = vmatprep.subr.mxu0 0.0
        %1599 = vmatpush1.msra.mxu0 0.0
        %1600 = vmatprep.subr.mxu0 0.0
        %1601 = vmatpush1.msra.mxu0 0.0
        %1602 = vmatprep.subr.mxu0 0.0
        %1603 = vmatpush1.msra.mxu0 0.0
        %1604 = vmatprep.subr.mxu0 %v767
        %1605 = vmatpush1.msra.mxu0 %v764
        %1606 = vmatprep.subr.mxu0 %v534
        %1607 = vmatpush1.msra.mxu0 %v533
        %1608 = vmatprep.subr.mxu0 %v532
        %1609 = vmatpush1.msra.mxu0 %v531
        %1610 = vmatprep.subr.mxu0 %v530
        %1611 = vmatpush1.msra.mxu0 %v529
        %1612 = vmatprep.subr.mxu0 0.0
        %1613 = vmatpush2.msra.mxu0 0.0
        %1614 = vmatprep.subr.mxu0 0.0
        %1615 = vmatpush2.msra.mxu0 0.0
        %1616 = vmatprep.subr.mxu0 0.0
        %1617 = vmatpush2.msra.mxu0 0.0
        %1618 = vmatprep.subr.mxu0 0.0
        %1619 = vmatpush2.msra.mxu0 0.0
        %1620 = vmatprep.subr.mxu0 0.0
        %1621 = vmatpush2.msra.mxu0 0.0
        %1622 = vmatprep.subr.mxu0 0.0
        %1623 = vmatpush2.msra.mxu0 0.0
        %1624 = vmatprep.subr.mxu0 0.0
        %1625 = vmatpush2.msra.mxu0 0.0
        %1626 = vmatprep.subr.mxu0 0.0
        %1627 = vmatpush2.msra.mxu0 0.0
        %1628 = vmatprep.subr.mxu0 0.0
        %1629 = vmatpush2.msra.mxu0 0.0
        %1630 = vmatprep.subr.mxu0 0.0
        %1631 = vmatpush2.msra.mxu0 0.0
        %1632 = vmatprep.subr.mxu0 0.0
        %1633 = vmatpush2.msra.mxu0 0.0
        %1634 = vmatprep.subr.mxu0 0.0
        %1635 = vmatpush2.msra.mxu0 0.0
        %1636 = vmatprep.subr.mxu0 0.0
        %1637 = vmatpush2.msra.mxu0 0.0
        %1638 = vmatprep.subr.mxu0 0.0
        %1639 = vmatpush2.msra.mxu0 0.0
        %1640 = vmatprep.subr.mxu0 0.0
        %1641 = vmatpush2.msra.mxu0 0.0
        %1642 = vmatprep.subr.mxu0 0.0
        %1643 = vmatpush2.msra.mxu0 0.0
        %1644 = vmatprep.mubr.f32.mxu0 0.0
        %1645 = vmatmul.mubr.f32.gmra.mxu0 %v548
        %v1646 = vpop.f32.mrf.mxu0
        %v1647 = vadd.f32 %v1510, %v1646
        %v1648 = vpop.f32.mrf.mxu0
        %v1649 = vadd.f32 %v1512, %v1648
        %1650 = vmatprep.mubr.f32.mxu0 0.0
        %1651 = vmatmul.mubr.f32.gmra.mxu0 %v551
        %v1652 = vpop.f32.mrf.mxu0
        %v1653 = vadd.f32 %v1516, %v1652
        %v1654 = vpop.f32.mrf.mxu0
        %v1655 = vadd.f32 %v1518, %v1654
        %1656 = vmatprep.mubr.f32.mxu0 0.0
        %1657 = vmatmul.mubr.f32.gmra.mxu0 %v554
        %v1658 = vpop.f32.mrf.mxu0
        %v1659 = vadd.f32 %v1522, %v1658
        %v1660 = vpop.f32.mrf.mxu0
        %v1661 = vadd.f32 %v1524, %v1660
        %1662 = vmatprep.mubr.f32.mxu0 0.0
        %1663 = vmatmul.mubr.f32.gmra.mxu0 %v557
        %v1664 = vpop.f32.mrf.mxu0
        %v1665 = vadd.f32 %v1528, %v1664
        %v1666 = vpop.f32.mrf.mxu0
        %v1667 = vadd.f32 %v1530, %v1666
        %1668 = vmatprep.mubr.f32.mxu0 0.0
        %1669 = vmatmul.mubr.f32.gmra.mxu0 %v560
        %v1670 = vpop.f32.mrf.mxu0
        %v1671 = vadd.f32 %v1534, %v1670
        %v1672 = vpop.f32.mrf.mxu0
        %v1673 = vadd.f32 %v1536, %v1672
        %1674 = vmatprep.mubr.f32.mxu0 0.0
        %1675 = vmatmul.mubr.f32.gmra.mxu0 %v563
        %v1676 = vpop.f32.mrf.mxu0
        %v1677 = vadd.f32 %v1540, %v1676
        %v1678 = vpop.f32.mrf.mxu0
        %v1679 = vadd.f32 %v1542, %v1678
        %1680 = vmatprep.mubr.f32.mxu0 0.0
        %1681 = vmatmul.mubr.f32.gmra.mxu0 %v566
        %v1682 = vpop.f32.mrf.mxu0
        %v1683 = vadd.f32 %v1546, %v1682
        %v1684 = vpop.f32.mrf.mxu0
        %v1685 = vadd.f32 %v1548, %v1684
        %1686 = vmatprep.mubr.f32.mxu0 0.0
        %1687 = vmatmul.mubr.f32.gmra.mxu0 %v569
        %v1688 = vpop.f32.mrf.mxu0
        %v1689 = vadd.f32 %v1552, %v1688
        %v1690 = vpop.f32.mrf.mxu0
        %v1691 = vadd.f32 %v1554, %v1690
        %1692 = vmatprep.mubr.f32.mxu0 0.0
        %1693 = vmatmul.mubr.f32.gmra.mxu0 %v572
        %v1694 = vpop.f32.mrf.mxu0
        %v1695 = vadd.f32 %v1558, %v1694
        %v1696 = vpop.f32.mrf.mxu0
        %v1697 = vadd.f32 %v1560, %v1696
        %1698 = vmatprep.mubr.f32.mxu0 0.0
        %1699 = vmatmul.mubr.f32.gmra.mxu0 %v575
        %v1700 = vpop.f32.mrf.mxu0
        %v1701 = vadd.f32 %v1564, %v1700
        %v1702 = vpop.f32.mrf.mxu0
        %v1703 = vadd.f32 %v1566, %v1702
        %1704 = vmatprep.mubr.f32.mxu0 0.0
        %1705 = vmatmul.mubr.f32.gmra.mxu0 %v578
        %v1706 = vpop.f32.mrf.mxu0
        %v1707 = vadd.f32 %v1570, %v1706
        %v1708 = vpop.f32.mrf.mxu0
        %v1709 = vadd.f32 %v1572, %v1708
        %1710 = vmatprep.mubr.f32.mxu0 0.0
        %1711 = vmatmul.mubr.f32.gmra.mxu0 %v581
        %v1712 = vpop.f32.mrf.mxu0
        %v1713 = vadd.f32 %v1576, %v1712
        %v1714 = vpop.f32.mrf.mxu0
        %v1715 = vadd.f32 %v1578, %v1714
        %1716 = vdwg.mxu0
        %1717 = vmatprep.subr.mxu0 0.0
        %1718 = vmatpush1.msra.mxu0 0.0
        %1719 = vmatprep.subr.mxu0 0.0
        %1720 = vmatpush1.msra.mxu0 0.0
        %1721 = vmatprep.subr.mxu0 0.0
        %1722 = vmatpush1.msra.mxu0 0.0
        %1723 = vmatprep.subr.mxu0 0.0
        %1724 = vmatpush1.msra.mxu0 0.0
        %1725 = vmatprep.subr.mxu0 0.0
        %1726 = vmatpush1.msra.mxu0 0.0
        %1727 = vmatprep.subr.mxu0 0.0
        %1728 = vmatpush1.msra.mxu0 0.0
        %1729 = vmatprep.subr.mxu0 0.0
        %1730 = vmatpush1.msra.mxu0 0.0
        %1731 = vmatprep.subr.mxu0 0.0
        %1732 = vmatpush1.msra.mxu0 0.0
        %1733 = vmatprep.subr.mxu0 0.0
        %1734 = vmatpush1.msra.mxu0 0.0
        %1735 = vmatprep.subr.mxu0 0.0
        %1736 = vmatpush1.msra.mxu0 0.0
        %1737 = vmatprep.subr.mxu0 0.0
        %1738 = vmatpush1.msra.mxu0 0.0
        %1739 = vmatprep.subr.mxu0 0.0
        %1740 = vmatpush1.msra.mxu0 0.0
        %1741 = vmatprep.subr.mxu0 %v922
        %1742 = vmatpush1.msra.mxu0 %v919
        %1743 = vmatprep.subr.mxu0 %v912
        %1744 = vmatpush1.msra.mxu0 %v911
        %1745 = vmatprep.subr.mxu0 %v910
        %1746 = vmatpush1.msra.mxu0 %v909
        %1747 = vmatprep.subr.mxu0 %v908
        %1748 = vmatpush1.msra.mxu0 %v907
        %1749 = vmatprep.subr.mxu0 0.0
        %1750 = vmatpush2.msra.mxu0 0.0
        %1751 = vmatprep.subr.mxu0 0.0
        %1752 = vmatpush2.msra.mxu0 0.0
        %1753 = vmatprep.subr.mxu0 0.0
        %1754 = vmatpush2.msra.mxu0 0.0
        %1755 = vmatprep.subr.mxu0 0.0
        %1756 = vmatpush2.msra.mxu0 0.0
        %1757 = vmatprep.subr.mxu0 0.0
        %1758 = vmatpush2.msra.mxu0 0.0
        %1759 = vmatprep.subr.mxu0 0.0
        %1760 = vmatpush2.msra.mxu0 0.0
        %1761 = vmatprep.subr.mxu0 0.0
        %1762 = vmatpush2.msra.mxu0 0.0
        %1763 = vmatprep.subr.mxu0 0.0
        %1764 = vmatpush2.msra.mxu0 0.0
        %1765 = vmatprep.subr.mxu0 0.0
        %1766 = vmatpush2.msra.mxu0 0.0
        %1767 = vmatprep.subr.mxu0 0.0
        %1768 = vmatpush2.msra.mxu0 0.0
        %1769 = vmatprep.subr.mxu0 0.0
        %1770 = vmatpush2.msra.mxu0 0.0
        %1771 = vmatprep.subr.mxu0 0.0
        %1772 = vmatpush2.msra.mxu0 0.0
        %1773 = vmatprep.subr.mxu0 0.0
        %1774 = vmatpush2.msra.mxu0 0.0
        %1775 = vmatprep.subr.mxu0 0.0
        %1776 = vmatpush2.msra.mxu0 0.0
        %1777 = vmatprep.subr.mxu0 0.0
        %1778 = vmatpush2.msra.mxu0 0.0
        %1779 = vmatprep.subr.mxu0 0.0
        %1780 = vmatpush2.msra.mxu0 0.0
        %1781 = vmatprep.mubr.f32.mxu0 0.0
        %1782 = vmatmul.mubr.f32.gmra.mxu0 %v551
        %v1783 = vpop.f32.mrf.mxu0
        %v1784 = vadd.f32 0.0, %v1783
        %v1785 = vpop.f32.mrf.mxu0
        %v1786 = vadd.f32 0.0, %v1785
        %1787 = vmatprep.mubr.f32.mxu0 0.0
        %1788 = vmatmul.mubr.f32.gmra.mxu0 %v554
        %v1789 = vpop.f32.mrf.mxu0
        %v1790 = vadd.f32 0.0, %v1789
        %v1791 = vpop.f32.mrf.mxu0
        %v1792 = vadd.f32 0.0, %v1791
        %1793 = vmatprep.mubr.f32.mxu0 0.0
        %1794 = vmatmul.mubr.f32.gmra.mxu0 %v557
        %v1795 = vpop.f32.mrf.mxu0
        %v1796 = vadd.f32 0.0, %v1795
        %v1797 = vpop.f32.mrf.mxu0
        %v1798 = vadd.f32 0.0, %v1797
        %1799 = vmatprep.mubr.f32.mxu0 0.0
        %1800 = vmatmul.mubr.f32.gmra.mxu0 %v560
        %v1801 = vpop.f32.mrf.mxu0
        %v1802 = vadd.f32 0.0, %v1801
        %v1803 = vpop.f32.mrf.mxu0
        %v1804 = vadd.f32 0.0, %v1803
        %1805 = vmatprep.mubr.f32.mxu0 0.0
        %1806 = vmatmul.mubr.f32.gmra.mxu0 %v563
        %v1807 = vpop.f32.mrf.mxu0
        %v1808 = vadd.f32 0.0, %v1807
        %v1809 = vpop.f32.mrf.mxu0
        %v1810 = vadd.f32 0.0, %v1809
        %1811 = vmatprep.mubr.f32.mxu0 0.0
        %1812 = vmatmul.mubr.f32.gmra.mxu0 %v566
        %v1813 = vpop.f32.mrf.mxu0
        %v1814 = vadd.f32 0.0, %v1813
        %v1815 = vpop.f32.mrf.mxu0
        %v1816 = vadd.f32 0.0, %v1815
        %1817 = vmatprep.mubr.f32.mxu0 0.0
        %1818 = vmatmul.mubr.f32.gmra.mxu0 %v569
        %v1819 = vpop.f32.mrf.mxu0
        %v1820 = vadd.f32 0.0, %v1819
        %v1821 = vpop.f32.mrf.mxu0
        %v1822 = vadd.f32 0.0, %v1821
        %1823 = vmatprep.mubr.f32.mxu0 0.0
        %1824 = vmatmul.mubr.f32.gmra.mxu0 %v572
        %v1825 = vpop.f32.mrf.mxu0
        %v1826 = vadd.f32 0.0, %v1825
        %v1827 = vpop.f32.mrf.mxu0
        %v1828 = vadd.f32 0.0, %v1827
        %1829 = vmatprep.mubr.f32.mxu0 0.0
        %1830 = vmatmul.mubr.f32.gmra.mxu0 %v575
        %v1831 = vpop.f32.mrf.mxu0
        %v1832 = vadd.f32 0.0, %v1831
        %v1833 = vpop.f32.mrf.mxu0
        %v1834 = vadd.f32 0.0, %v1833
        %1835 = vmatprep.mubr.f32.mxu0 0.0
        %1836 = vmatmul.mubr.f32.gmra.mxu0 %v578
        %v1837 = vpop.f32.mrf.mxu0
        %v1838 = vadd.f32 0.0, %v1837
        %v1839 = vpop.f32.mrf.mxu0
        %v1840 = vadd.f32 0.0, %v1839
        %1841 = vmatprep.mubr.f32.mxu0 0.0
        %1842 = vmatmul.mubr.f32.gmra.mxu0 %v581
        %v1843 = vpop.f32.mrf.mxu0
        %v1844 = vadd.f32 0.0, %v1843
        %v1845 = vpop.f32.mrf.mxu0
        %v1846 = vadd.f32 0.0, %v1845
        %1847 = vmatprep.mubr.f32.mxu0 0.0
        %1848 = vmatmul.mubr.f32.gmra.mxu0 %v1095
        %v1849 = vpop.f32.mrf.mxu0
        %v1850 = vadd.f32 0.0, %v1849
        %v1851 = vpop.f32.mrf.mxu0
        %v1852 = vadd.f32 0.0, %v1851
        %1853 = vdwg.mxu0
        %v1854 = vadd.f32 %v1647, %v1784
        %v1855 = vadd.f32 %v1649, %v1786
        %v1856 = vadd.f32 %v1653, %v1790
        %v1857 = vadd.f32 %v1655, %v1792
        %v1858 = vadd.f32 %v1659, %v1796
        %v1859 = vadd.f32 %v1661, %v1798
        %v1860 = vadd.f32 %v1665, %v1802
        %v1861 = vadd.f32 %v1667, %v1804
        %v1862 = vadd.f32 %v1671, %v1808
        %v1863 = vadd.f32 %v1673, %v1810
        %v1864 = vadd.f32 %v1677, %v1814
        %v1865 = vadd.f32 %v1679, %v1816
        %v1866 = vadd.f32 %v1683, %v1820
        %v1867 = vadd.f32 %v1685, %v1822
        %v1868 = vadd.f32 %v1689, %v1826
        %v1869 = vadd.f32 %v1691, %v1828
        %v1870 = vadd.f32 %v1695, %v1832
        %v1871 = vadd.f32 %v1697, %v1834
        %v1872 = vadd.f32 %v1701, %v1838
        %v1873 = vadd.f32 %v1703, %v1840
        %v1874 = vadd.f32 %v1707, %v1844
        %v1875 = vadd.f32 %v1709, %v1846
        %v1876 = vadd.f32 %v1713, %v1850
        %v1877 = vadd.f32 %v1715, %v1852
        %1878 = vmatprep.subr.mxu0 0.0
        %1879 = vmatpush1.msra.mxu0 0.0
        %1880 = vmatprep.subr.mxu0 0.0
        %1881 = vmatpush1.msra.mxu0 0.0
        %1882 = vmatprep.subr.mxu0 0.0
        %1883 = vmatpush1.msra.mxu0 0.0
        %1884 = vmatprep.subr.mxu0 0.0
        %1885 = vmatpush1.msra.mxu0 0.0
        %1886 = vmatprep.subr.mxu0 0.0
        %1887 = vmatpush1.msra.mxu0 0.0
        %1888 = vmatprep.subr.mxu0 0.0
        %1889 = vmatpush1.msra.mxu0 0.0
        %1890 = vmatprep.subr.mxu0 0.0
        %1891 = vmatpush1.msra.mxu0 0.0
        %1892 = vmatprep.subr.mxu0 0.0
        %1893 = vmatpush1.msra.mxu0 0.0
        %1894 = vmatprep.subr.mxu0 0.0
        %1895 = vmatpush1.msra.mxu0 0.0
        %1896 = vmatprep.subr.mxu0 0.0
        %1897 = vmatpush1.msra.mxu0 0.0
        %1898 = vmatprep.subr.mxu0 0.0
        %1899 = vmatpush1.msra.mxu0 0.0
        %1900 = vmatprep.subr.mxu0 0.0
        %1901 = vmatpush1.msra.mxu0 0.0
        %1902 = vmatprep.subr.mxu0 %v1101
        %1903 = vmatpush1.msra.mxu0 %v1098
        %1904 = vmatprep.subr.mxu0 %v1091
        %1905 = vmatpush1.msra.mxu0 %v1090
        %1906 = vmatprep.subr.mxu0 %v1089
        %1907 = vmatpush1.msra.mxu0 %v1088
        %1908 = vmatprep.subr.mxu0 %v1087
        %1909 = vmatpush1.msra.mxu0 %v1086
        %1910 = vmatprep.subr.mxu0 0.0
        %1911 = vmatpush2.msra.mxu0 0.0
        %1912 = vmatprep.subr.mxu0 0.0
        %1913 = vmatpush2.msra.mxu0 0.0
        %1914 = vmatprep.subr.mxu0 0.0
        %1915 = vmatpush2.msra.mxu0 0.0
        %1916 = vmatprep.subr.mxu0 0.0
        %1917 = vmatpush2.msra.mxu0 0.0
        %1918 = vmatprep.subr.mxu0 0.0
        %1919 = vmatpush2.msra.mxu0 0.0
        %1920 = vmatprep.subr.mxu0 0.0
        %1921 = vmatpush2.msra.mxu0 0.0
        %1922 = vmatprep.subr.mxu0 0.0
        %1923 = vmatpush2.msra.mxu0 0.0
        %1924 = vmatprep.subr.mxu0 0.0
        %1925 = vmatpush2.msra.mxu0 0.0
        %1926 = vmatprep.subr.mxu0 0.0
        %1927 = vmatpush2.msra.mxu0 0.0
        %1928 = vmatprep.subr.mxu0 0.0
        %1929 = vmatpush2.msra.mxu0 0.0
        %1930 = vmatprep.subr.mxu0 0.0
        %1931 = vmatpush2.msra.mxu0 0.0
        %1932 = vmatprep.subr.mxu0 0.0
        %1933 = vmatpush2.msra.mxu0 0.0
        %1934 = vmatprep.subr.mxu0 0.0
        %1935 = vmatpush2.msra.mxu0 0.0
        %1936 = vmatprep.subr.mxu0 0.0
        %1937 = vmatpush2.msra.mxu0 0.0
        %1938 = vmatprep.subr.mxu0 0.0
        %1939 = vmatpush2.msra.mxu0 0.0
        %1940 = vmatprep.subr.mxu0 0.0
        %1941 = vmatpush2.msra.mxu0 0.0
        %1942 = vmatprep.mubr.f32.mxu0 0.0
        %1943 = vmatmul.mubr.f32.gmra.mxu0 %v734
        %v1944 = vpop.f32.mrf.mxu0
        %v1945 = vadd.f32 0.0, %v1944
        %v1946 = vpop.f32.mrf.mxu0
        %v1947 = vadd.f32 0.0, %v1946
        %1948 = vmatprep.mubr.f32.mxu0 0.0
        %1949 = vmatmul.mubr.f32.gmra.mxu0 %v737
        %v1950 = vpop.f32.mrf.mxu0
        %v1951 = vadd.f32 0.0, %v1950
        %v1952 = vpop.f32.mrf.mxu0
        %v1953 = vadd.f32 0.0, %v1952
        %1954 = vmatprep.mubr.f32.mxu0 0.0
        %1955 = vmatmul.mubr.f32.gmra.mxu0 %v740
        %v1956 = vpop.f32.mrf.mxu0
        %v1957 = vadd.f32 0.0, %v1956
        %v1958 = vpop.f32.mrf.mxu0
        %v1959 = vadd.f32 0.0, %v1958
        %1960 = vmatprep.mubr.f32.mxu0 0.0
        %1961 = vmatmul.mubr.f32.gmra.mxu0 %v743
        %v1962 = vpop.f32.mrf.mxu0
        %v1963 = vadd.f32 0.0, %v1962
        %v1964 = vpop.f32.mrf.mxu0
        %v1965 = vadd.f32 0.0, %v1964
        %1966 = vmatprep.mubr.f32.mxu0 0.0
        %1967 = vmatmul.mubr.f32.gmra.mxu0 %v746
        %v1968 = vpop.f32.mrf.mxu0
        %v1969 = vadd.f32 0.0, %v1968
        %v1970 = vpop.f32.mrf.mxu0
        %v1971 = vadd.f32 0.0, %v1970
        %1972 = vmatprep.mubr.f32.mxu0 0.0
        %1973 = vmatmul.mubr.f32.gmra.mxu0 %v749
        %v1974 = vpop.f32.mrf.mxu0
        %v1975 = vadd.f32 0.0, %v1974
        %v1976 = vpop.f32.mrf.mxu0
        %v1977 = vadd.f32 0.0, %v1976
        %1978 = vmatprep.mubr.f32.mxu0 0.0
        %1979 = vmatmul.mubr.f32.gmra.mxu0 %v752
        %v1980 = vpop.f32.mrf.mxu0
        %v1981 = vadd.f32 0.0, %v1980
        %v1982 = vpop.f32.mrf.mxu0
        %v1983 = vadd.f32 0.0, %v1982
        %1984 = vmatprep.mubr.f32.mxu0 0.0
        %1985 = vmatmul.mubr.f32.gmra.mxu0 %v755
        %v1986 = vpop.f32.mrf.mxu0
        %v1987 = vadd.f32 0.0, %v1986
        %v1988 = vpop.f32.mrf.mxu0
        %v1989 = vadd.f32 0.0, %v1988
        %1990 = vmatprep.mubr.f32.mxu0 0.0
        %1991 = vmatmul.mubr.f32.gmra.mxu0 %v758
        %v1992 = vpop.f32.mrf.mxu0
        %v1993 = vadd.f32 0.0, %v1992
        %v1994 = vpop.f32.mrf.mxu0
        %v1995 = vadd.f32 0.0, %v1994
        %1996 = vmatprep.mubr.f32.mxu0 0.0
        %1997 = vmatmul.mubr.f32.gmra.mxu0 %v761
        %v1998 = vpop.f32.mrf.mxu0
        %v1999 = vadd.f32 0.0, %v1998
        %v2000 = vpop.f32.mrf.mxu0
        %v2001 = vadd.f32 0.0, %v2000
        %2002 = vmatprep.mubr.f32.mxu0 0.0
        %2003 = vmatmul.mubr.f32.gmra.mxu0 %v916
        %v2004 = vpop.f32.mrf.mxu0
        %v2005 = vadd.f32 0.0, %v2004
        %v2006 = vpop.f32.mrf.mxu0
        %v2007 = vadd.f32 0.0, %v2006
        %2008 = vmatprep.mubr.f32.mxu0 0.0
        %2009 = vmatmul.mubr.f32.gmra.mxu0 %v1274
        %v2010 = vpop.f32.mrf.mxu0
        %v2011 = vadd.f32 0.0, %v2010
        %v2012 = vpop.f32.mrf.mxu0
        %v2013 = vadd.f32 0.0, %v2012
        %2014 = vdwg.mxu0
        %v2015 = vadd.f32 %v1854, %v1945
        %v2016 = vadd.f32 %v1855, %v1947
        %v2017 = vadd.f32 %v1856, %v1951
        %v2018 = vadd.f32 %v1857, %v1953
        %v2019 = vadd.f32 %v1858, %v1957
        %v2020 = vadd.f32 %v1859, %v1959
        %v2021 = vadd.f32 %v1860, %v1963
        %v2022 = vadd.f32 %v1861, %v1965
        %v2023 = vadd.f32 %v1862, %v1969
        %v2024 = vadd.f32 %v1863, %v1971
        %v2025 = vadd.f32 %v1864, %v1975
        %v2026 = vadd.f32 %v1865, %v1977
        %v2027 = vadd.f32 %v1866, %v1981
        %v2028 = vadd.f32 %v1867, %v1983
        %v2029 = vadd.f32 %v1868, %v1987
        %v2030 = vadd.f32 %v1869, %v1989
        %v2031 = vadd.f32 %v1870, %v1993
        %v2032 = vadd.f32 %v1871, %v1995
        %v2033 = vadd.f32 %v1872, %v1999
        %v2034 = vadd.f32 %v1873, %v2001
        %v2035 = vadd.f32 %v1874, %v2005
        %v2036 = vadd.f32 %v1875, %v2007
        %v2037 = vadd.f32 %v1876, %v2011
        %v2038 = vadd.f32 %v1877, %v2013
        %v2040 = vsel %vm546, %v528, 0
        %2042 = vmatprep.subr.mxu0 0.0
        %2043 = vmatpush1.msra.mxu0 0.0
        %2044 = vmatprep.subr.mxu0 0.0
        %2045 = vmatpush1.msra.mxu0 0.0
        %2046 = vmatprep.subr.mxu0 0.0
        %2047 = vmatpush1.msra.mxu0 0.0
        %2048 = vmatprep.subr.mxu0 0.0
        %2049 = vmatpush1.msra.mxu0 0.0
        %2050 = vmatprep.subr.mxu0 0.0
        %2051 = vmatpush1.msra.mxu0 0.0
        %2052 = vmatprep.subr.mxu0 0.0
        %2053 = vmatpush1.msra.mxu0 0.0
        %2054 = vmatprep.subr.mxu0 0.0
        %2055 = vmatpush1.msra.mxu0 0.0
        %2056 = vmatprep.subr.mxu0 0.0
        %2057 = vmatpush1.msra.mxu0 0.0
        %2058 = vmatprep.subr.mxu0 0.0
        %2059 = vmatpush1.msra.mxu0 0.0
        %2060 = vmatprep.subr.mxu0 0.0
        %2061 = vmatpush1.msra.mxu0 0.0
        %2062 = vmatprep.subr.mxu0 0.0
        %2063 = vmatpush1.msra.mxu0 0.0
        %2064 = vmatprep.subr.mxu0 0.0
        %2065 = vmatpush1.msra.mxu0 0.0
        %2066 = vmatprep.subr.mxu0 %v1280
        %2067 = vmatpush1.msra.mxu0 %v1277
        %2068 = vmatprep.subr.mxu0 %v1270
        %2069 = vmatpush1.msra.mxu0 %v1269
        %2070 = vmatprep.subr.mxu0 %v1268
        %2071 = vmatpush1.msra.mxu0 %v1267
        %2072 = vmatprep.subr.mxu0 %v1266
        %2073 = vmatpush1.msra.mxu0 %v1265
        %2074 = vmatprep.subr.mxu0 0.0
        %2075 = vmatpush2.msra.mxu0 0.0
        %2076 = vmatprep.subr.mxu0 0.0
        %2077 = vmatpush2.msra.mxu0 0.0
        %2078 = vmatprep.subr.mxu0 0.0
        %2079 = vmatpush2.msra.mxu0 0.0
        %2080 = vmatprep.subr.mxu0 0.0
        %2081 = vmatpush2.msra.mxu0 0.0
        %2082 = vmatprep.subr.mxu0 0.0
        %2083 = vmatpush2.msra.mxu0 0.0
        %2084 = vmatprep.subr.mxu0 0.0
        %2085 = vmatpush2.msra.mxu0 0.0
        %2086 = vmatprep.subr.mxu0 0.0
        %2087 = vmatpush2.msra.mxu0 0.0
        %2088 = vmatprep.subr.mxu0 0.0
        %2089 = vmatpush2.msra.mxu0 0.0
        %2090 = vmatprep.subr.mxu0 0.0
        %2091 = vmatpush2.msra.mxu0 0.0
        %2092 = vmatprep.subr.mxu0 0.0
        %2093 = vmatpush2.msra.mxu0 0.0
        %2094 = vmatprep.subr.mxu0 0.0
        %2095 = vmatpush2.msra.mxu0 0.0
        %2096 = vmatprep.subr.mxu0 0.0
        %2097 = vmatpush2.msra.mxu0 0.0
        %2098 = vmatprep.subr.mxu0 0.0
        %2099 = vmatpush2.msra.mxu0 0.0
        %2100 = vmatprep.subr.mxu0 0.0
        %2101 = vmatpush2.msra.mxu0 0.0
        %2102 = vmatprep.subr.mxu0 0.0
        %2103 = vmatpush2.msra.mxu0 0.0
        %2104 = vmatprep.subr.mxu0 0.0
        %2105 = vmatpush2.msra.mxu0 0.0
        %2106 = vmatprep.mubr.f32.mxu0 0.0
        %2107 = vmatmul.mubr.f32.gmra.mxu0 %v554
        %v2108 = vpop.f32.mrf.mxu0
        %v2109 = vadd.f32 0.0, %v2108
        %v2110 = vpop.f32.mrf.mxu0
        %v2111 = vadd.f32 0.0, %v2110
        %2112 = vmatprep.mubr.f32.mxu0 0.0
        %2113 = vmatmul.mubr.f32.gmra.mxu0 %v557
        %v2114 = vpop.f32.mrf.mxu0
        %v2115 = vadd.f32 0.0, %v2114
        %v2116 = vpop.f32.mrf.mxu0
        %v2117 = vadd.f32 0.0, %v2116
        %2118 = vmatprep.mubr.f32.mxu0 0.0
        %2119 = vmatmul.mubr.f32.gmra.mxu0 %v560
        %v2120 = vpop.f32.mrf.mxu0
        %v2121 = vadd.f32 0.0, %v2120
        %v2122 = vpop.f32.mrf.mxu0
        %v2123 = vadd.f32 0.0, %v2122
        %2124 = vmatprep.mubr.f32.mxu0 0.0
        %2125 = vmatmul.mubr.f32.gmra.mxu0 %v563
        %v2126 = vpop.f32.mrf.mxu0
        %v2127 = vadd.f32 0.0, %v2126
        %v2128 = vpop.f32.mrf.mxu0
        %v2129 = vadd.f32 0.0, %v2128
        %2130 = vmatprep.mubr.f32.mxu0 0.0
        %2131 = vmatmul.mubr.f32.gmra.mxu0 %v566
        %v2132 = vpop.f32.mrf.mxu0
        %v2133 = vadd.f32 0.0, %v2132
        %v2134 = vpop.f32.mrf.mxu0
        %v2135 = vadd.f32 0.0, %v2134
        %2136 = vmatprep.mubr.f32.mxu0 0.0
        %2137 = vmatmul.mubr.f32.gmra.mxu0 %v569
        %v2138 = vpop.f32.mrf.mxu0
        %v2139 = vadd.f32 0.0, %v2138
        %v2140 = vpop.f32.mrf.mxu0
        %v2141 = vadd.f32 0.0, %v2140
        %2142 = vmatprep.mubr.f32.mxu0 0.0
        %2143 = vmatmul.mubr.f32.gmra.mxu0 %v572
        %v2144 = vpop.f32.mrf.mxu0
        %v2145 = vadd.f32 0.0, %v2144
        %v2146 = vpop.f32.mrf.mxu0
        %v2147 = vadd.f32 0.0, %v2146
        %2148 = vmatprep.mubr.f32.mxu0 0.0
        %2149 = vmatmul.mubr.f32.gmra.mxu0 %v575
        %v2150 = vpop.f32.mrf.mxu0
        %v2151 = vadd.f32 0.0, %v2150
        %v2152 = vpop.f32.mrf.mxu0
        %v2153 = vadd.f32 0.0, %v2152
        %2154 = vmatprep.mubr.f32.mxu0 0.0
        %2155 = vmatmul.mubr.f32.gmra.mxu0 %v578
        %v2156 = vpop.f32.mrf.mxu0
        %v2157 = vadd.f32 0.0, %v2156
        %v2158 = vpop.f32.mrf.mxu0
        %v2159 = vadd.f32 0.0, %v2158
        %2160 = vmatprep.mubr.f32.mxu0 0.0
        %2161 = vmatmul.mubr.f32.gmra.mxu0 %v581
        %v2162 = vpop.f32.mrf.mxu0
        %v2163 = vadd.f32 0.0, %v2162
        %v2164 = vpop.f32.mrf.mxu0
        %v2165 = vadd.f32 0.0, %v2164
        %2166 = vmatprep.mubr.f32.mxu0 0.0
        %2167 = vmatmul.mubr.f32.gmra.mxu0 %v1095
        %v2168 = vpop.f32.mrf.mxu0
        %v2169 = vadd.f32 0.0, %v2168
        %v2170 = vpop.f32.mrf.mxu0
        %v2171 = vadd.f32 0.0, %v2170
        %2172 = vmatprep.mubr.f32.mxu0 0.0
        %2173 = vmatmul.mubr.f32.gmra.mxu0 %v2040
        %v2174 = vpop.f32.mrf.mxu0
        %v2175 = vadd.f32 0.0, %v2174
        %v2176 = vpop.f32.mrf.mxu0
        %v2177 = vadd.f32 0.0, %v2176
        %2178 = vdwg.mxu0
        %v2179 = vadd.f32 %v2015, %v2109
        %v2180 = vadd.f32 %v2016, %v2111
        %v2181 = vadd.f32 %v2017, %v2115
        %v2182 = vadd.f32 %v2018, %v2117
        %v2183 = vadd.f32 %v2019, %v2121
        %v2184 = vadd.f32 %v2020, %v2123
        %v2185 = vadd.f32 %v2021, %v2127
        %v2186 = vadd.f32 %v2022, %v2129
        %v2187 = vadd.f32 %v2023, %v2133
        %v2188 = vadd.f32 %v2024, %v2135
        %v2189 = vadd.f32 %v2025, %v2139
        %v2190 = vadd.f32 %v2026, %v2141
        %v2191 = vadd.f32 %v2027, %v2145
        %v2192 = vadd.f32 %v2028, %v2147
        %v2193 = vadd.f32 %v2029, %v2151
        %v2194 = vadd.f32 %v2030, %v2153
        %v2195 = vadd.f32 %v2031, %v2157
        %v2196 = vadd.f32 %v2032, %v2159
        %v2197 = vadd.f32 %v2033, %v2163
        %v2198 = vadd.f32 %v2034, %v2165
        %v2199 = vadd.f32 %v2035, %v2169
        %v2200 = vadd.f32 %v2036, %v2171
        %v2201 = vadd.f32 %v2037, %v2175
        %v2202 = vadd.f32 %v2038, %v2177
        %v2203 = vmax.f32 %v1419, %v2179
        %v2204 = vmax.f32 %v1420, %v2180
        %v2205 = vmax.f32 %v1421, %v2181
        %v2206 = vmax.f32 %v1422, %v2182
        %v2207 = vmax.f32 %v1423, %v2183
        %v2208 = vmax.f32 %v1424, %v2184
        %v2209 = vmax.f32 %v1425, %v2185
        %v2210 = vmax.f32 %v1426, %v2186
        %v2211 = vmax.f32 %v1427, %v2187
        %v2212 = vmax.f32 %v1428, %v2188
        %v2213 = vmax.f32 %v1429, %v2189
        %v2214 = vmax.f32 %v1430, %v2190
        %v2215 = vmax.f32 %v1431, %v2191
        %v2216 = vmax.f32 %v1432, %v2192
        %v2217 = vmax.f32 %v1433, %v2193
        %v2218 = vmax.f32 %v1434, %v2194
        %v2219 = vmax.f32 %v1435, %v2195
        %v2220 = vmax.f32 %v1436, %v2196
        %v2221 = vmax.f32 %v1437, %v2197
        %v2222 = vmax.f32 %v1438, %v2198
        %v2223 = vmax.f32 %v1439, %v2199
        %v2224 = vmax.f32 %v1440, %v2200
        %v2225 = vmax.f32 %v1441, %v2201
        %v2226 = vmax.f32 %v1442, %v2202
        %v2227 = vmax.f32 %v2203, %v2204
        %v2228 = vmax.f32 %v2205, %v2206
        %v2229 = vmax.f32 %v2207, %v2208
        %v2230 = vmax.f32 %v2209, %v2210
        %v2231 = vmax.f32 %v2211, %v2212
        %v2232 = vmax.f32 %v2213, %v2214
        %v2233 = vmax.f32 %v2215, %v2216
        %v2234 = vmax.f32 %v2217, %v2218
        %v2235 = vmax.f32 %v2219, %v2220
        %v2236 = vmax.f32 %v2221, %v2222
        %v2237 = vmax.f32 %v2223, %v2224
        %v2238 = vmax.f32 %v2225, %v2226
        %v2239 = vld [vmem:[%s2] sm:$0x1]
        %v2241 = vlaneseq
        %v2242 = vshrl.u32 %v2241, 7
        %v2243 = vsub.s32 0, %v2242
        %v2244 = vrot.slane %v2239, %v2243
        %v2246 = vadd.f32 %v2227, %v2244
        %v2247 = vadd.f32 %v2228, %v2244
        %v2248 = vadd.f32 %v2229, %v2244
        %v2249 = vadd.f32 %v2230, %v2244
        %v2250 = vadd.f32 %v2231, %v2244
        %v2251 = vadd.f32 %v2232, %v2244
        %v2252 = vadd.f32 %v2233, %v2244
        %v2253 = vadd.f32 %v2234, %v2244
        %v2254 = vadd.f32 %v2235, %v2244
        %v2255 = vadd.f32 %v2236, %v2244
        %v2256 = vadd.f32 %v2237, %v2244
        %v2257 = vadd.f32 %v2238, %v2244
        %v2258 = vmax.f32 %v2246, 0.0
        %v2259 = vmax.f32 %v2247, 0.0
        %v2260 = vmax.f32 %v2248, 0.0
        %v2261 = vmax.f32 %v2249, 0.0
        %v2262 = vmax.f32 %v2250, 0.0
        %v2263 = vmax.f32 %v2251, 0.0
        %v2264 = vmax.f32 %v2252, 0.0
        %v2265 = vmax.f32 %v2253, 0.0
        %v2266 = vmax.f32 %v2254, 0.0
        %v2267 = vmax.f32 %v2255, 0.0
        %v2268 = vmax.f32 %v2256, 0.0
        %v2269 = vmax.f32 %v2257, 0.0
        %v2270 = vld [vmem:[%s3] sm:$0xff]
        %v2271 = vld [vmem:[%s3 + $0x8] sm:$0xff]
        %v2272 = vld [vmem:[%s3 + $0x10] sm:$0xff]
        %v2273 = vld [vmem:[%s3 + $0x18] sm:$0xff]
        %v2274 = vld [vmem:[%s3 + $0x20] sm:$0xff]
        %v2275 = vld [vmem:[%s3 + $0x28] sm:$0xff]
        %v2276 = vld [vmem:[%s3 + $0x30] sm:$0xff]
        %v2277 = vld [vmem:[%s3 + $0x38] sm:$0xff]
        %v2278 = vld [vmem:[%s3 + $0x40] sm:$0xff]
        %v2279 = vld [vmem:[%s3 + $0x48] sm:$0xff]
        %v2280 = vld [vmem:[%s3 + $0x50] sm:$0xff]
        %v2281 = vld [vmem:[%s3 + $0x58] sm:$0xff]
        %v2282 = vld [vmem:[%s3 + $0x60] sm:$0xff]
        %v2283 = vld [vmem:[%s3 + $0x68] sm:$0xff]
        %v2284 = vld [vmem:[%s3 + $0x70] sm:$0xff]
        %v2285 = vld [vmem:[%s3 + $0x78] sm:$0xff]
        %v2286 = vld [vmem:[%s3 + $0x80] sm:$0xff]
        %v2287 = vld [vmem:[%s3 + $0x88] sm:$0xff]
        %v2288 = vld [vmem:[%s3 + $0x90] sm:$0xff]
        %v2289 = vld [vmem:[%s3 + $0x98] sm:$0xff]
        %v2290 = vld [vmem:[%s3 + $0xa0] sm:$0xff]
        %v2291 = vld [vmem:[%s3 + $0xa8] sm:$0xff]
        %v2292 = vld [vmem:[%s3 + $0xb0] sm:$0xff]
        %v2293 = vld [vmem:[%s3 + $0xb8] sm:$0xff]
        %v2294 = vld [vmem:[%s3 + $0xc0] sm:$0xff]
        %v2295 = vld [vmem:[%s3 + $0xc8] sm:$0xff]
        %v2296 = vld [vmem:[%s3 + $0xd0] sm:$0xff]
        %v2297 = vld [vmem:[%s3 + $0xd8] sm:$0xff]
        %v2298 = vld [vmem:[%s3 + $0xe0] sm:$0xff]
        %v2299 = vld [vmem:[%s3 + $0xe8] sm:$0xff]
        %v2300 = vld [vmem:[%s3 + $0xf0] sm:$0xff]
        %v2301 = vld [vmem:[%s3 + $0xf8] sm:$0xff]
        %s2302 = scalar_lea.vmem %s3, 256
        %v2303 = vld [vmem:[%s2302] sm:$0xff]
        %v2304 = vld [vmem:[%s2302 + $0x8] sm:$0xff]
        %v2305 = vld [vmem:[%s2302 + $0x10] sm:$0xff]
        %v2306 = vld [vmem:[%s2302 + $0x18] sm:$0xff]
        %v2307 = vld [vmem:[%s2302 + $0x20] sm:$0xff]
        %v2308 = vld [vmem:[%s2302 + $0x28] sm:$0xff]
        %v2309 = vld [vmem:[%s2302 + $0x30] sm:$0xff]
        %v2310 = vld [vmem:[%s2302 + $0x38] sm:$0xff]
        %v2311 = vld [vmem:[%s2302 + $0x40] sm:$0xff]
        %v2312 = vld [vmem:[%s2302 + $0x48] sm:$0xff]
        %v2313 = vld [vmem:[%s2302 + $0x50] sm:$0xff]
        %v2314 = vld [vmem:[%s2302 + $0x58] sm:$0xff]
        %v2315 = vld [vmem:[%s2302 + $0x60] sm:$0xff]
        %v2316 = vld [vmem:[%s2302 + $0x68] sm:$0xff]
        %v2317 = vld [vmem:[%s2302 + $0x70] sm:$0xff]
        %v2318 = vld [vmem:[%s2302 + $0x78] sm:$0xff]
        %v2319 = vld [vmem:[%s2302 + $0x80] sm:$0xff]
        %v2320 = vld [vmem:[%s2302 + $0x88] sm:$0xff]
        %v2321 = vld [vmem:[%s2302 + $0x90] sm:$0xff]
        %v2322 = vld [vmem:[%s2302 + $0x98] sm:$0xff]
        %v2323 = vld [vmem:[%s2302 + $0xa0] sm:$0xff]
        %v2324 = vld [vmem:[%s2302 + $0xa8] sm:$0xff]
        %v2325 = vld [vmem:[%s2302 + $0xb0] sm:$0xff]
        %v2326 = vld [vmem:[%s2302 + $0xb8] sm:$0xff]
        %v2327 = vld [vmem:[%s2302 + $0xc0] sm:$0xff]
        %v2328 = vld [vmem:[%s2302 + $0xc8] sm:$0xff]
        %v2329 = vld [vmem:[%s2302 + $0xd0] sm:$0xff]
        %v2330 = vld [vmem:[%s2302 + $0xd8] sm:$0xff]
        %v2331 = vld [vmem:[%s2302 + $0xe0] sm:$0xff]
        %v2332 = vld [vmem:[%s2302 + $0xe8] sm:$0xff]
        %v2333 = vld [vmem:[%s2302 + $0xf0] sm:$0xff]
        %v2334 = vld [vmem:[%s2302 + $0xf8] sm:$0xff]
        %2335 = vmatprep.subr.mxu0 %v2334
        %2336 = vmatpush1.msra.mxu0 %v2333
        %2337 = vmatprep.subr.mxu0 %v2332
        %2338 = vmatpush1.msra.mxu0 %v2331
        %2339 = vmatprep.subr.mxu0 %v2330
        %2340 = vmatpush1.msra.mxu0 %v2329
        %2341 = vmatprep.subr.mxu0 %v2328
        %2342 = vmatpush1.msra.mxu0 %v2327
        %2343 = vmatprep.subr.mxu0 %v2326
        %2344 = vmatpush1.msra.mxu0 %v2325
        %2345 = vmatprep.subr.mxu0 %v2324
        %2346 = vmatpush1.msra.mxu0 %v2323
        %2347 = vmatprep.subr.mxu0 %v2322
        %2348 = vmatpush1.msra.mxu0 %v2321
        %2349 = vmatprep.subr.mxu0 %v2320
        %2350 = vmatpush1.msra.mxu0 %v2319
        %2351 = vmatprep.subr.mxu0 %v2318
        %2352 = vmatpush1.msra.mxu0 %v2317
        %2353 = vmatprep.subr.mxu0 %v2316
        %2354 = vmatpush1.msra.mxu0 %v2315
        %2355 = vmatprep.subr.mxu0 %v2314
        %2356 = vmatpush1.msra.mxu0 %v2313
        %2357 = vmatprep.subr.mxu0 %v2312
        %2358 = vmatpush1.msra.mxu0 %v2311
        %2359 = vmatprep.subr.mxu0 %v2310
        %2360 = vmatpush1.msra.mxu0 %v2309
        %2361 = vmatprep.subr.mxu0 %v2308
        %2362 = vmatpush1.msra.mxu0 %v2307
        %2363 = vmatprep.subr.mxu0 %v2306
        %2364 = vmatpush1.msra.mxu0 %v2305
        %2365 = vmatprep.subr.mxu0 %v2304
        %2366 = vmatpush1.msra.mxu0 %v2303
        %2367 = vmatprep.subr.mxu0 0.0
        %2368 = vmatpush2.msra.mxu0 0.0
        %2369 = vmatprep.subr.mxu0 0.0
        %2370 = vmatpush2.msra.mxu0 0.0
        %2371 = vmatprep.subr.mxu0 0.0
        %2372 = vmatpush2.msra.mxu0 0.0
        %2373 = vmatprep.subr.mxu0 0.0
        %2374 = vmatpush2.msra.mxu0 0.0
        %2375 = vmatprep.subr.mxu0 0.0
        %2376 = vmatpush2.msra.mxu0 0.0
        %2377 = vmatprep.subr.mxu0 0.0
        %2378 = vmatpush2.msra.mxu0 0.0
        %2379 = vmatprep.subr.mxu0 0.0
        %2380 = vmatpush2.msra.mxu0 0.0
        %2381 = vmatprep.subr.mxu0 0.0
        %2382 = vmatpush2.msra.mxu0 0.0
        %2383 = vmatprep.subr.mxu0 0.0
        %2384 = vmatpush2.msra.mxu0 0.0
        %2385 = vmatprep.subr.mxu0 0.0
        %2386 = vmatpush2.msra.mxu0 0.0
        %2387 = vmatprep.subr.mxu0 0.0
        %2388 = vmatpush2.msra.mxu0 0.0
        %2389 = vmatprep.subr.mxu0 0.0
        %2390 = vmatpush2.msra.mxu0 0.0
        %2391 = vmatprep.subr.mxu0 0.0
        %2392 = vmatpush2.msra.mxu0 0.0
        %2393 = vmatprep.subr.mxu0 0.0
        %2394 = vmatpush2.msra.mxu0 0.0
        %2395 = vmatprep.subr.mxu0 0.0
        %2396 = vmatpush2.msra.mxu0 0.0
        %2397 = vmatprep.subr.mxu0 0.0
        %2398 = vmatpush2.msra.mxu0 0.0
        %2399 = vmatprep.mubr.f32.mxu0 0.0
        %2400 = vmatmul.mubr.f32.gmra.mxu0 %v2259
        %v2401 = vpop.f32.mrf.mxu0
        %v2402 = vadd.f32 0.0, %v2401
        %v2403 = vpop.f32.mrf.mxu0
        %v2404 = vadd.f32 0.0, %v2403
        %2405 = vmatprep.mubr.f32.mxu0 0.0
        %2406 = vmatmul.mubr.f32.gmra.mxu0 %v2261
        %v2407 = vpop.f32.mrf.mxu0
        %v2408 = vadd.f32 0.0, %v2407
        %v2409 = vpop.f32.mrf.mxu0
        %v2410 = vadd.f32 0.0, %v2409
        %2411 = vmatprep.mubr.f32.mxu0 0.0
        %2412 = vmatmul.mubr.f32.gmra.mxu0 %v2263
        %v2413 = vpop.f32.mrf.mxu0
        %v2414 = vadd.f32 0.0, %v2413
        %v2415 = vpop.f32.mrf.mxu0
        %v2416 = vadd.f32 0.0, %v2415
        %2417 = vmatprep.mubr.f32.mxu0 0.0
        %2418 = vmatmul.mubr.f32.gmra.mxu0 %v2265
        %v2419 = vpop.f32.mrf.mxu0
        %v2420 = vadd.f32 0.0, %v2419
        %v2421 = vpop.f32.mrf.mxu0
        %v2422 = vadd.f32 0.0, %v2421
        %2423 = vdwg.mxu0
        %2424 = vmatprep.subr.mxu0 %v2301
        %2425 = vmatpush1.msra.mxu0 %v2300
        %2426 = vmatprep.subr.mxu0 %v2299
        %2427 = vmatpush1.msra.mxu0 %v2298
        %2428 = vmatprep.subr.mxu0 %v2297
        %2429 = vmatpush1.msra.mxu0 %v2296
        %2430 = vmatprep.subr.mxu0 %v2295
        %2431 = vmatpush1.msra.mxu0 %v2294
        %2432 = vmatprep.subr.mxu0 %v2293
        %2433 = vmatpush1.msra.mxu0 %v2292
        %2434 = vmatprep.subr.mxu0 %v2291
        %2435 = vmatpush1.msra.mxu0 %v2290
        %2436 = vmatprep.subr.mxu0 %v2289
        %2437 = vmatpush1.msra.mxu0 %v2288
        %2438 = vmatprep.subr.mxu0 %v2287
        %2439 = vmatpush1.msra.mxu0 %v2286
        %2440 = vmatprep.subr.mxu0 %v2285
        %2441 = vmatpush1.msra.mxu0 %v2284
        %2442 = vmatprep.subr.mxu0 %v2283
        %2443 = vmatpush1.msra.mxu0 %v2282
        %2444 = vmatprep.subr.mxu0 %v2281
        %2445 = vmatpush1.msra.mxu0 %v2280
        %2446 = vmatprep.subr.mxu0 %v2279
        %2447 = vmatpush1.msra.mxu0 %v2278
        %2448 = vmatprep.subr.mxu0 %v2277
        %2449 = vmatpush1.msra.mxu0 %v2276
        %2450 = vmatprep.subr.mxu0 %v2275
        %2451 = vmatpush1.msra.mxu0 %v2274
        %2452 = vmatprep.subr.mxu0 %v2273
        %2453 = vmatpush1.msra.mxu0 %v2272
        %2454 = vmatprep.subr.mxu0 %v2271
        %2455 = vmatpush1.msra.mxu0 %v2270
        %2456 = vmatprep.subr.mxu0 0.0
        %2457 = vmatpush2.msra.mxu0 0.0
        %2458 = vmatprep.subr.mxu0 0.0
        %2459 = vmatpush2.msra.mxu0 0.0
        %2460 = vmatprep.subr.mxu0 0.0
        %2461 = vmatpush2.msra.mxu0 0.0
        %2462 = vmatprep.subr.mxu0 0.0
        %2463 = vmatpush2.msra.mxu0 0.0
        %2464 = vmatprep.subr.mxu0 0.0
        %2465 = vmatpush2.msra.mxu0 0.0
        %2466 = vmatprep.subr.mxu0 0.0
        %2467 = vmatpush2.msra.mxu0 0.0
        %2468 = vmatprep.subr.mxu0 0.0
        %2469 = vmatpush2.msra.mxu0 0.0
        %2470 = vmatprep.subr.mxu0 0.0
        %2471 = vmatpush2.msra.mxu0 0.0
        %2472 = vmatprep.subr.mxu0 0.0
        %2473 = vmatpush2.msra.mxu0 0.0
        %2474 = vmatprep.subr.mxu0 0.0
        %2475 = vmatpush2.msra.mxu0 0.0
        %2476 = vmatprep.subr.mxu0 0.0
        %2477 = vmatpush2.msra.mxu0 0.0
        %2478 = vmatprep.subr.mxu0 0.0
        %2479 = vmatpush2.msra.mxu0 0.0
        %2480 = vmatprep.subr.mxu0 0.0
        %2481 = vmatpush2.msra.mxu0 0.0
        %2482 = vmatprep.subr.mxu0 0.0
        %2483 = vmatpush2.msra.mxu0 0.0
        %2484 = vmatprep.subr.mxu0 0.0
        %2485 = vmatpush2.msra.mxu0 0.0
        %2486 = vmatprep.subr.mxu0 0.0
        %2487 = vmatpush2.msra.mxu0 0.0
        %2488 = vmatprep.mubr.f32.mxu0 0.0
        %2489 = vmatmul.mubr.f32.gmra.mxu0 %v2258
        %v2490 = vpop.f32.mrf.mxu0
        %v2491 = vadd.f32 %v2402, %v2490
        %v2492 = vpop.f32.mrf.mxu0
        %v2493 = vadd.f32 %v2404, %v2492
        %2494 = vmatprep.mubr.f32.mxu0 0.0
        %2495 = vmatmul.mubr.f32.gmra.mxu0 %v2260
        %v2496 = vpop.f32.mrf.mxu0
        %v2497 = vadd.f32 %v2408, %v2496
        %v2498 = vpop.f32.mrf.mxu0
        %v2499 = vadd.f32 %v2410, %v2498
        %2500 = vmatprep.mubr.f32.mxu0 0.0
        %2501 = vmatmul.mubr.f32.gmra.mxu0 %v2262
        %v2502 = vpop.f32.mrf.mxu0
        %v2503 = vadd.f32 %v2414, %v2502
        %v2504 = vpop.f32.mrf.mxu0
        %v2505 = vadd.f32 %v2416, %v2504
        %2506 = vmatprep.mubr.f32.mxu0 0.0
        %2507 = vmatmul.mubr.f32.gmra.mxu0 %v2264
        %v2508 = vpop.f32.mrf.mxu0
        %v2509 = vadd.f32 %v2420, %v2508
        %v2510 = vpop.f32.mrf.mxu0
        %v2511 = vadd.f32 %v2422, %v2510
        %2512 = vdwg.mxu0
        %s2513 = scalar_lea.vmem %s3, 512
        %v2514 = vld [vmem:[%s2513] sm:$0xff]
        %v2515 = vld [vmem:[%s2513 + $0x8] sm:$0xff]
        %v2516 = vld [vmem:[%s2513 + $0x10] sm:$0xff]
        %v2517 = vld [vmem:[%s2513 + $0x18] sm:$0xff]
        %v2518 = vld [vmem:[%s2513 + $0x20] sm:$0xff]
        %v2519 = vld [vmem:[%s2513 + $0x28] sm:$0xff]
        %v2520 = vld [vmem:[%s2513 + $0x30] sm:$0xff]
        %v2521 = vld [vmem:[%s2513 + $0x38] sm:$0xff]
        %v2522 = vld [vmem:[%s2513 + $0x40] sm:$0xff]
        %v2523 = vld [vmem:[%s2513 + $0x48] sm:$0xff]
        %v2524 = vld [vmem:[%s2513 + $0x50] sm:$0xff]
        %v2525 = vld [vmem:[%s2513 + $0x58] sm:$0xff]
        %v2526 = vld [vmem:[%s2513 + $0x60] sm:$0xff]
        %v2527 = vld [vmem:[%s2513 + $0x68] sm:$0xff]
        %v2528 = vld [vmem:[%s2513 + $0x70] sm:$0xff]
        %v2529 = vld [vmem:[%s2513 + $0x78] sm:$0xff]
        %v2530 = vld [vmem:[%s2513 + $0x80] sm:$0xff]
        %v2531 = vld [vmem:[%s2513 + $0x88] sm:$0xff]
        %v2532 = vld [vmem:[%s2513 + $0x90] sm:$0xff]
        %v2533 = vld [vmem:[%s2513 + $0x98] sm:$0xff]
        %v2534 = vld [vmem:[%s2513 + $0xa0] sm:$0xff]
        %v2535 = vld [vmem:[%s2513 + $0xa8] sm:$0xff]
        %v2536 = vld [vmem:[%s2513 + $0xb0] sm:$0xff]
        %v2537 = vld [vmem:[%s2513 + $0xb8] sm:$0xff]
        %v2538 = vld [vmem:[%s2513 + $0xc0] sm:$0xff]
        %v2539 = vld [vmem:[%s2513 + $0xc8] sm:$0xff]
        %v2540 = vld [vmem:[%s2513 + $0xd0] sm:$0xff]
        %v2541 = vld [vmem:[%s2513 + $0xd8] sm:$0xff]
        %v2542 = vld [vmem:[%s2513 + $0xe0] sm:$0xff]
        %v2543 = vld [vmem:[%s2513 + $0xe8] sm:$0xff]
        %v2544 = vld [vmem:[%s2513 + $0xf0] sm:$0xff]
        %v2545 = vld [vmem:[%s2513 + $0xf8] sm:$0xff]
        %2546 = vmatprep.subr.mxu0 %v2545
        %2547 = vmatpush1.msra.mxu0 %v2544
        %2548 = vmatprep.subr.mxu0 %v2543
        %2549 = vmatpush1.msra.mxu0 %v2542
        %2550 = vmatprep.subr.mxu0 %v2541
        %2551 = vmatpush1.msra.mxu0 %v2540
        %2552 = vmatprep.subr.mxu0 %v2539
        %2553 = vmatpush1.msra.mxu0 %v2538
        %2554 = vmatprep.subr.mxu0 %v2537
        %2555 = vmatpush1.msra.mxu0 %v2536
        %2556 = vmatprep.subr.mxu0 %v2535
        %2557 = vmatpush1.msra.mxu0 %v2534
        %2558 = vmatprep.subr.mxu0 %v2533
        %2559 = vmatpush1.msra.mxu0 %v2532
        %2560 = vmatprep.subr.mxu0 %v2531
        %2561 = vmatpush1.msra.mxu0 %v2530
        %2562 = vmatprep.subr.mxu0 %v2529
        %2563 = vmatpush1.msra.mxu0 %v2528
        %2564 = vmatprep.subr.mxu0 %v2527
        %2565 = vmatpush1.msra.mxu0 %v2526
        %2566 = vmatprep.subr.mxu0 %v2525
        %2567 = vmatpush1.msra.mxu0 %v2524
        %2568 = vmatprep.subr.mxu0 %v2523
        %2569 = vmatpush1.msra.mxu0 %v2522
        %2570 = vmatprep.subr.mxu0 %v2521
        %2571 = vmatpush1.msra.mxu0 %v2520
        %2572 = vmatprep.subr.mxu0 %v2519
        %2573 = vmatpush1.msra.mxu0 %v2518
        %2574 = vmatprep.subr.mxu0 %v2517
        %2575 = vmatpush1.msra.mxu0 %v2516
        %2576 = vmatprep.subr.mxu0 %v2515
        %2577 = vmatpush1.msra.mxu0 %v2514
        %2578 = vmatprep.subr.mxu0 0.0
        %2579 = vmatpush2.msra.mxu0 0.0
        %2580 = vmatprep.subr.mxu0 0.0
        %2581 = vmatpush2.msra.mxu0 0.0
        %2582 = vmatprep.subr.mxu0 0.0
        %2583 = vmatpush2.msra.mxu0 0.0
        %2584 = vmatprep.subr.mxu0 0.0
        %2585 = vmatpush2.msra.mxu0 0.0
        %2586 = vmatprep.subr.mxu0 0.0
        %2587 = vmatpush2.msra.mxu0 0.0
        %2588 = vmatprep.subr.mxu0 0.0
        %2589 = vmatpush2.msra.mxu0 0.0
        %2590 = vmatprep.subr.mxu0 0.0
        %2591 = vmatpush2.msra.mxu0 0.0
        %2592 = vmatprep.subr.mxu0 0.0
        %2593 = vmatpush2.msra.mxu0 0.0
        %2594 = vmatprep.subr.mxu0 0.0
        %2595 = vmatpush2.msra.mxu0 0.0
        %2596 = vmatprep.subr.mxu0 0.0
        %2597 = vmatpush2.msra.mxu0 0.0
        %2598 = vmatprep.subr.mxu0 0.0
        %2599 = vmatpush2.msra.mxu0 0.0
        %2600 = vmatprep.subr.mxu0 0.0
        %2601 = vmatpush2.msra.mxu0 0.0
        %2602 = vmatprep.subr.mxu0 0.0
        %2603 = vmatpush2.msra.mxu0 0.0
        %2604 = vmatprep.subr.mxu0 0.0
        %2605 = vmatpush2.msra.mxu0 0.0
        %2606 = vmatprep.subr.mxu0 0.0
        %2607 = vmatpush2.msra.mxu0 0.0
        %2608 = vmatprep.subr.mxu0 0.0
        %2609 = vmatpush2.msra.mxu0 0.0
        %2610 = vmatprep.mubr.f32.mxu0 0.0
        %2611 = vmatmul.mubr.f32.gmra.mxu0 %v2260
        %v2612 = vpop.f32.mrf.mxu0
        %v2613 = vadd.f32 0.0, %v2612
        %v2614 = vpop.f32.mrf.mxu0
        %v2615 = vadd.f32 0.0, %v2614
        %2616 = vmatprep.mubr.f32.mxu0 0.0
        %2617 = vmatmul.mubr.f32.gmra.mxu0 %v2262
        %v2618 = vpop.f32.mrf.mxu0
        %v2619 = vadd.f32 0.0, %v2618
        %v2620 = vpop.f32.mrf.mxu0
        %v2621 = vadd.f32 0.0, %v2620
        %2622 = vmatprep.mubr.f32.mxu0 0.0
        %2623 = vmatmul.mubr.f32.gmra.mxu0 %v2264
        %v2624 = vpop.f32.mrf.mxu0
        %v2625 = vadd.f32 0.0, %v2624
        %v2626 = vpop.f32.mrf.mxu0
        %v2627 = vadd.f32 0.0, %v2626
        %2628 = vmatprep.mubr.f32.mxu0 0.0
        %2629 = vmatmul.mubr.f32.gmra.mxu0 %v2266
        %v2630 = vpop.f32.mrf.mxu0
        %v2631 = vadd.f32 0.0, %v2630
        %v2632 = vpop.f32.mrf.mxu0
        %v2633 = vadd.f32 0.0, %v2632
        %2634 = vdwg.mxu0
        %v2635 = vadd.f32 %v2491, %v2613
        %v2636 = vadd.f32 %v2493, %v2615
        %v2637 = vadd.f32 %v2497, %v2619
        %v2638 = vadd.f32 %v2499, %v2621
        %v2639 = vadd.f32 %v2503, %v2625
        %v2640 = vadd.f32 %v2505, %v2627
        %v2641 = vadd.f32 %v2509, %v2631
        %v2642 = vadd.f32 %v2511, %v2633
        %s2643 = scalar_lea.vmem %s3, 768
        %v2644 = vld [vmem:[%s2643] sm:$0xff]
        %v2645 = vld [vmem:[%s2643 + $0x8] sm:$0xff]
        %v2646 = vld [vmem:[%s2643 + $0x10] sm:$0xff]
        %v2647 = vld [vmem:[%s2643 + $0x18] sm:$0xff]
        %v2648 = vld [vmem:[%s2643 + $0x20] sm:$0xff]
        %v2649 = vld [vmem:[%s2643 + $0x28] sm:$0xff]
        %v2650 = vld [vmem:[%s2643 + $0x30] sm:$0xff]
        %v2651 = vld [vmem:[%s2643 + $0x38] sm:$0xff]
        %v2652 = vld [vmem:[%s2643 + $0x40] sm:$0xff]
        %v2653 = vld [vmem:[%s2643 + $0x48] sm:$0xff]
        %v2654 = vld [vmem:[%s2643 + $0x50] sm:$0xff]
        %v2655 = vld [vmem:[%s2643 + $0x58] sm:$0xff]
        %v2656 = vld [vmem:[%s2643 + $0x60] sm:$0xff]
        %v2657 = vld [vmem:[%s2643 + $0x68] sm:$0xff]
        %v2658 = vld [vmem:[%s2643 + $0x70] sm:$0xff]
        %v2659 = vld [vmem:[%s2643 + $0x78] sm:$0xff]
        %v2660 = vld [vmem:[%s2643 + $0x80] sm:$0xff]
        %v2661 = vld [vmem:[%s2643 + $0x88] sm:$0xff]
        %v2662 = vld [vmem:[%s2643 + $0x90] sm:$0xff]
        %v2663 = vld [vmem:[%s2643 + $0x98] sm:$0xff]
        %v2664 = vld [vmem:[%s2643 + $0xa0] sm:$0xff]
        %v2665 = vld [vmem:[%s2643 + $0xa8] sm:$0xff]
        %v2666 = vld [vmem:[%s2643 + $0xb0] sm:$0xff]
        %v2667 = vld [vmem:[%s2643 + $0xb8] sm:$0xff]
        %v2668 = vld [vmem:[%s2643 + $0xc0] sm:$0xff]
        %v2669 = vld [vmem:[%s2643 + $0xc8] sm:$0xff]
        %v2670 = vld [vmem:[%s2643 + $0xd0] sm:$0xff]
        %v2671 = vld [vmem:[%s2643 + $0xd8] sm:$0xff]
        %v2672 = vld [vmem:[%s2643 + $0xe0] sm:$0xff]
        %v2673 = vld [vmem:[%s2643 + $0xe8] sm:$0xff]
        %v2674 = vld [vmem:[%s2643 + $0xf0] sm:$0xff]
        %v2675 = vld [vmem:[%s2643 + $0xf8] sm:$0xff]
        %2676 = vmatprep.subr.mxu0 %v2675
        %2677 = vmatpush1.msra.mxu0 %v2674
        %2678 = vmatprep.subr.mxu0 %v2673
        %2679 = vmatpush1.msra.mxu0 %v2672
        %2680 = vmatprep.subr.mxu0 %v2671
        %2681 = vmatpush1.msra.mxu0 %v2670
        %2682 = vmatprep.subr.mxu0 %v2669
        %2683 = vmatpush1.msra.mxu0 %v2668
        %2684 = vmatprep.subr.mxu0 %v2667
        %2685 = vmatpush1.msra.mxu0 %v2666
        %2686 = vmatprep.subr.mxu0 %v2665
        %2687 = vmatpush1.msra.mxu0 %v2664
        %2688 = vmatprep.subr.mxu0 %v2663
        %2689 = vmatpush1.msra.mxu0 %v2662
        %2690 = vmatprep.subr.mxu0 %v2661
        %2691 = vmatpush1.msra.mxu0 %v2660
        %2692 = vmatprep.subr.mxu0 %v2659
        %2693 = vmatpush1.msra.mxu0 %v2658
        %2694 = vmatprep.subr.mxu0 %v2657
        %2695 = vmatpush1.msra.mxu0 %v2656
        %2696 = vmatprep.subr.mxu0 %v2655
        %2697 = vmatpush1.msra.mxu0 %v2654
        %2698 = vmatprep.subr.mxu0 %v2653
        %2699 = vmatpush1.msra.mxu0 %v2652
        %2700 = vmatprep.subr.mxu0 %v2651
        %2701 = vmatpush1.msra.mxu0 %v2650
        %2702 = vmatprep.subr.mxu0 %v2649
        %2703 = vmatpush1.msra.mxu0 %v2648
        %2704 = vmatprep.subr.mxu0 %v2647
        %2705 = vmatpush1.msra.mxu0 %v2646
        %2706 = vmatprep.subr.mxu0 %v2645
        %2707 = vmatpush1.msra.mxu0 %v2644
        %2708 = vmatprep.subr.mxu0 0.0
        %2709 = vmatpush2.msra.mxu0 0.0
        %2710 = vmatprep.subr.mxu0 0.0
        %2711 = vmatpush2.msra.mxu0 0.0
        %2712 = vmatprep.subr.mxu0 0.0
        %2713 = vmatpush2.msra.mxu0 0.0
        %2714 = vmatprep.subr.mxu0 0.0
        %2715 = vmatpush2.msra.mxu0 0.0
        %2716 = vmatprep.subr.mxu0 0.0
        %2717 = vmatpush2.msra.mxu0 0.0
        %2718 = vmatprep.subr.mxu0 0.0
        %2719 = vmatpush2.msra.mxu0 0.0
        %2720 = vmatprep.subr.mxu0 0.0
        %2721 = vmatpush2.msra.mxu0 0.0
        %2722 = vmatprep.subr.mxu0 0.0
        %2723 = vmatpush2.msra.mxu0 0.0
        %2724 = vmatprep.subr.mxu0 0.0
        %2725 = vmatpush2.msra.mxu0 0.0
        %2726 = vmatprep.subr.mxu0 0.0
        %2727 = vmatpush2.msra.mxu0 0.0
        %2728 = vmatprep.subr.mxu0 0.0
        %2729 = vmatpush2.msra.mxu0 0.0
        %2730 = vmatprep.subr.mxu0 0.0
        %2731 = vmatpush2.msra.mxu0 0.0
        %2732 = vmatprep.subr.mxu0 0.0
        %2733 = vmatpush2.msra.mxu0 0.0
        %2734 = vmatprep.subr.mxu0 0.0
        %2735 = vmatpush2.msra.mxu0 0.0
        %2736 = vmatprep.subr.mxu0 0.0
        %2737 = vmatpush2.msra.mxu0 0.0
        %2738 = vmatprep.subr.mxu0 0.0
        %2739 = vmatpush2.msra.mxu0 0.0
        %2740 = vmatprep.mubr.f32.mxu0 0.0
        %2741 = vmatmul.mubr.f32.gmra.mxu0 %v2261
        %v2742 = vpop.f32.mrf.mxu0
        %v2743 = vadd.f32 0.0, %v2742
        %v2744 = vpop.f32.mrf.mxu0
        %v2745 = vadd.f32 0.0, %v2744
        %2746 = vmatprep.mubr.f32.mxu0 0.0
        %2747 = vmatmul.mubr.f32.gmra.mxu0 %v2263
        %v2748 = vpop.f32.mrf.mxu0
        %v2749 = vadd.f32 0.0, %v2748
        %v2750 = vpop.f32.mrf.mxu0
        %v2751 = vadd.f32 0.0, %v2750
        %2752 = vmatprep.mubr.f32.mxu0 0.0
        %2753 = vmatmul.mubr.f32.gmra.mxu0 %v2265
        %v2754 = vpop.f32.mrf.mxu0
        %v2755 = vadd.f32 0.0, %v2754
        %v2756 = vpop.f32.mrf.mxu0
        %v2757 = vadd.f32 0.0, %v2756
        %2758 = vmatprep.mubr.f32.mxu0 0.0
        %2759 = vmatmul.mubr.f32.gmra.mxu0 %v2267
        %v2760 = vpop.f32.mrf.mxu0
        %v2761 = vadd.f32 0.0, %v2760
        %v2762 = vpop.f32.mrf.mxu0
        %v2763 = vadd.f32 0.0, %v2762
        %2764 = vdwg.mxu0
        %v2765 = vadd.f32 %v2635, %v2743
        %v2766 = vadd.f32 %v2636, %v2745
        %v2767 = vadd.f32 %v2637, %v2749
        %v2768 = vadd.f32 %v2638, %v2751
        %v2769 = vadd.f32 %v2639, %v2755
        %v2770 = vadd.f32 %v2640, %v2757
        %v2771 = vadd.f32 %v2641, %v2761
        %v2772 = vadd.f32 %v2642, %v2763
        %s2773 = scalar_lea.vmem %s3, 1024
        %v2774 = vld [vmem:[%s2773] sm:$0xff]
        %v2775 = vld [vmem:[%s2773 + $0x8] sm:$0xff]
        %v2776 = vld [vmem:[%s2773 + $0x10] sm:$0xff]
        %v2777 = vld [vmem:[%s2773 + $0x18] sm:$0xff]
        %v2778 = vld [vmem:[%s2773 + $0x20] sm:$0xff]
        %v2779 = vld [vmem:[%s2773 + $0x28] sm:$0xff]
        %v2780 = vld [vmem:[%s2773 + $0x30] sm:$0xff]
        %v2781 = vld [vmem:[%s2773 + $0x38] sm:$0xff]
        %v2782 = vld [vmem:[%s2773 + $0x40] sm:$0xff]
        %v2783 = vld [vmem:[%s2773 + $0x48] sm:$0xff]
        %v2784 = vld [vmem:[%s2773 + $0x50] sm:$0xff]
        %v2785 = vld [vmem:[%s2773 + $0x58] sm:$0xff]
        %v2786 = vld [vmem:[%s2773 + $0x60] sm:$0xff]
        %v2787 = vld [vmem:[%s2773 + $0x68] sm:$0xff]
        %v2788 = vld [vmem:[%s2773 + $0x70] sm:$0xff]
        %v2789 = vld [vmem:[%s2773 + $0x78] sm:$0xff]
        %v2790 = vld [vmem:[%s2773 + $0x80] sm:$0xff]
        %v2791 = vld [vmem:[%s2773 + $0x88] sm:$0xff]
        %v2792 = vld [vmem:[%s2773 + $0x90] sm:$0xff]
        %v2793 = vld [vmem:[%s2773 + $0x98] sm:$0xff]
        %v2794 = vld [vmem:[%s2773 + $0xa0] sm:$0xff]
        %v2795 = vld [vmem:[%s2773 + $0xa8] sm:$0xff]
        %v2796 = vld [vmem:[%s2773 + $0xb0] sm:$0xff]
        %v2797 = vld [vmem:[%s2773 + $0xb8] sm:$0xff]
        %v2798 = vld [vmem:[%s2773 + $0xc0] sm:$0xff]
        %v2799 = vld [vmem:[%s2773 + $0xc8] sm:$0xff]
        %v2800 = vld [vmem:[%s2773 + $0xd0] sm:$0xff]
        %v2801 = vld [vmem:[%s2773 + $0xd8] sm:$0xff]
        %v2802 = vld [vmem:[%s2773 + $0xe0] sm:$0xff]
        %v2803 = vld [vmem:[%s2773 + $0xe8] sm:$0xff]
        %v2804 = vld [vmem:[%s2773 + $0xf0] sm:$0xff]
        %v2805 = vld [vmem:[%s2773 + $0xf8] sm:$0xff]
        %2806 = vmatprep.subr.mxu0 %v2805
        %2807 = vmatpush1.msra.mxu0 %v2804
        %2808 = vmatprep.subr.mxu0 %v2803
        %2809 = vmatpush1.msra.mxu0 %v2802
        %2810 = vmatprep.subr.mxu0 %v2801
        %2811 = vmatpush1.msra.mxu0 %v2800
        %2812 = vmatprep.subr.mxu0 %v2799
        %2813 = vmatpush1.msra.mxu0 %v2798
        %2814 = vmatprep.subr.mxu0 %v2797
        %2815 = vmatpush1.msra.mxu0 %v2796
        %2816 = vmatprep.subr.mxu0 %v2795
        %2817 = vmatpush1.msra.mxu0 %v2794
        %2818 = vmatprep.subr.mxu0 %v2793
        %2819 = vmatpush1.msra.mxu0 %v2792
        %2820 = vmatprep.subr.mxu0 %v2791
        %2821 = vmatpush1.msra.mxu0 %v2790
        %2822 = vmatprep.subr.mxu0 %v2789
        %2823 = vmatpush1.msra.mxu0 %v2788
        %2824 = vmatprep.subr.mxu0 %v2787
        %2825 = vmatpush1.msra.mxu0 %v2786
        %2826 = vmatprep.subr.mxu0 %v2785
        %2827 = vmatpush1.msra.mxu0 %v2784
        %2828 = vmatprep.subr.mxu0 %v2783
        %2829 = vmatpush1.msra.mxu0 %v2782
        %2830 = vmatprep.subr.mxu0 %v2781
        %2831 = vmatpush1.msra.mxu0 %v2780
        %2832 = vmatprep.subr.mxu0 %v2779
        %2833 = vmatpush1.msra.mxu0 %v2778
        %2834 = vmatprep.subr.mxu0 %v2777
        %2835 = vmatpush1.msra.mxu0 %v2776
        %2836 = vmatprep.subr.mxu0 %v2775
        %2837 = vmatpush1.msra.mxu0 %v2774
        %2838 = vmatprep.subr.mxu0 0.0
        %2839 = vmatpush2.msra.mxu0 0.0
        %2840 = vmatprep.subr.mxu0 0.0
        %2841 = vmatpush2.msra.mxu0 0.0
        %2842 = vmatprep.subr.mxu0 0.0
        %2843 = vmatpush2.msra.mxu0 0.0
        %2844 = vmatprep.subr.mxu0 0.0
        %2845 = vmatpush2.msra.mxu0 0.0
        %2846 = vmatprep.subr.mxu0 0.0
        %2847 = vmatpush2.msra.mxu0 0.0
        %2848 = vmatprep.subr.mxu0 0.0
        %2849 = vmatpush2.msra.mxu0 0.0
        %2850 = vmatprep.subr.mxu0 0.0
        %2851 = vmatpush2.msra.mxu0 0.0
        %2852 = vmatprep.subr.mxu0 0.0
        %2853 = vmatpush2.msra.mxu0 0.0
        %2854 = vmatprep.subr.mxu0 0.0
        %2855 = vmatpush2.msra.mxu0 0.0
        %2856 = vmatprep.subr.mxu0 0.0
        %2857 = vmatpush2.msra.mxu0 0.0
        %2858 = vmatprep.subr.mxu0 0.0
        %2859 = vmatpush2.msra.mxu0 0.0
        %2860 = vmatprep.subr.mxu0 0.0
        %2861 = vmatpush2.msra.mxu0 0.0
        %2862 = vmatprep.subr.mxu0 0.0
        %2863 = vmatpush2.msra.mxu0 0.0
        %2864 = vmatprep.subr.mxu0 0.0
        %2865 = vmatpush2.msra.mxu0 0.0
        %2866 = vmatprep.subr.mxu0 0.0
        %2867 = vmatpush2.msra.mxu0 0.0
        %2868 = vmatprep.subr.mxu0 0.0
        %2869 = vmatpush2.msra.mxu0 0.0
        %2870 = vmatprep.mubr.f32.mxu0 0.0
        %2871 = vmatmul.mubr.f32.gmra.mxu0 %v2262
        %v2872 = vpop.f32.mrf.mxu0
        %v2873 = vadd.f32 0.0, %v2872
        %v2874 = vpop.f32.mrf.mxu0
        %v2875 = vadd.f32 0.0, %v2874
        %2876 = vmatprep.mubr.f32.mxu0 0.0
        %2877 = vmatmul.mubr.f32.gmra.mxu0 %v2264
        %v2878 = vpop.f32.mrf.mxu0
        %v2879 = vadd.f32 0.0, %v2878
        %v2880 = vpop.f32.mrf.mxu0
        %v2881 = vadd.f32 0.0, %v2880
        %2882 = vmatprep.mubr.f32.mxu0 0.0
        %2883 = vmatmul.mubr.f32.gmra.mxu0 %v2266
        %v2884 = vpop.f32.mrf.mxu0
        %v2885 = vadd.f32 0.0, %v2884
        %v2886 = vpop.f32.mrf.mxu0
        %v2887 = vadd.f32 0.0, %v2886
        %2888 = vmatprep.mubr.f32.mxu0 0.0
        %2889 = vmatmul.mubr.f32.gmra.mxu0 %v2268
        %v2890 = vpop.f32.mrf.mxu0
        %v2891 = vadd.f32 0.0, %v2890
        %v2892 = vpop.f32.mrf.mxu0
        %v2893 = vadd.f32 0.0, %v2892
        %2894 = vdwg.mxu0
        %v2895 = vadd.f32 %v2765, %v2873
        %v2896 = vadd.f32 %v2766, %v2875
        %v2897 = vadd.f32 %v2767, %v2879
        %v2898 = vadd.f32 %v2768, %v2881
        %v2899 = vadd.f32 %v2769, %v2885
        %v2900 = vadd.f32 %v2770, %v2887
        %v2901 = vadd.f32 %v2771, %v2891
        %v2902 = vadd.f32 %v2772, %v2893
        %2903 = vmatprep.subr.mxu0 %v2334
        %2904 = vmatpush1.msra.mxu0 %v2333
        %2905 = vmatprep.subr.mxu0 %v2332
        %2906 = vmatpush1.msra.mxu0 %v2331
        %2907 = vmatprep.subr.mxu0 %v2330
        %2908 = vmatpush1.msra.mxu0 %v2329
        %2909 = vmatprep.subr.mxu0 %v2328
        %2910 = vmatpush1.msra.mxu0 %v2327
        %2911 = vmatprep.subr.mxu0 %v2326
        %2912 = vmatpush1.msra.mxu0 %v2325
        %2913 = vmatprep.subr.mxu0 %v2324
        %2914 = vmatpush1.msra.mxu0 %v2323
        %2915 = vmatprep.subr.mxu0 %v2322
        %2916 = vmatpush1.msra.mxu0 %v2321
        %2917 = vmatprep.subr.mxu0 %v2320
        %2918 = vmatpush1.msra.mxu0 %v2319
        %2919 = vmatprep.subr.mxu0 %v2318
        %2920 = vmatpush1.msra.mxu0 %v2317
        %2921 = vmatprep.subr.mxu0 %v2316
        %2922 = vmatpush1.msra.mxu0 %v2315
        %2923 = vmatprep.subr.mxu0 %v2314
        %2924 = vmatpush1.msra.mxu0 %v2313
        %2925 = vmatprep.subr.mxu0 %v2312
        %2926 = vmatpush1.msra.mxu0 %v2311
        %2927 = vmatprep.subr.mxu0 %v2310
        %2928 = vmatpush1.msra.mxu0 %v2309
        %2929 = vmatprep.subr.mxu0 %v2308
        %2930 = vmatpush1.msra.mxu0 %v2307
        %2931 = vmatprep.subr.mxu0 %v2306
        %2932 = vmatpush1.msra.mxu0 %v2305
        %2933 = vmatprep.subr.mxu0 %v2304
        %2934 = vmatpush1.msra.mxu0 %v2303
        %2935 = vmatprep.subr.mxu0 0.0
        %2936 = vmatpush2.msra.mxu0 0.0
        %2937 = vmatprep.subr.mxu0 0.0
        %2938 = vmatpush2.msra.mxu0 0.0
        %2939 = vmatprep.subr.mxu0 0.0
        %2940 = vmatpush2.msra.mxu0 0.0
        %2941 = vmatprep.subr.mxu0 0.0
        %2942 = vmatpush2.msra.mxu0 0.0
        %2943 = vmatprep.subr.mxu0 0.0
        %2944 = vmatpush2.msra.mxu0 0.0
        %2945 = vmatprep.subr.mxu0 0.0
        %2946 = vmatpush2.msra.mxu0 0.0
        %2947 = vmatprep.subr.mxu0 0.0
        %2948 = vmatpush2.msra.mxu0 0.0
        %2949 = vmatprep.subr.mxu0 0.0
        %2950 = vmatpush2.msra.mxu0 0.0
        %2951 = vmatprep.subr.mxu0 0.0
        %2952 = vmatpush2.msra.mxu0 0.0
        %2953 = vmatprep.subr.mxu0 0.0
        %2954 = vmatpush2.msra.mxu0 0.0
        %2955 = vmatprep.subr.mxu0 0.0
        %2956 = vmatpush2.msra.mxu0 0.0
        %2957 = vmatprep.subr.mxu0 0.0
        %2958 = vmatpush2.msra.mxu0 0.0
        %2959 = vmatprep.subr.mxu0 0.0
        %2960 = vmatpush2.msra.mxu0 0.0
        %2961 = vmatprep.subr.mxu0 0.0
        %2962 = vmatpush2.msra.mxu0 0.0
        %2963 = vmatprep.subr.mxu0 0.0
        %2964 = vmatpush2.msra.mxu0 0.0
        %2965 = vmatprep.subr.mxu0 0.0
        %2966 = vmatpush2.msra.mxu0 0.0
        %2967 = vmatprep.mubr.f32.mxu0 0.0
        %2968 = vmatmul.mubr.f32.gmra.mxu0 %v2260
        %v2969 = vpop.f32.mrf.mxu0
        %v2970 = vadd.f32 0.0, %v2969
        %v2971 = vpop.f32.mrf.mxu0
        %v2972 = vadd.f32 0.0, %v2971
        %2973 = vmatprep.mubr.f32.mxu0 0.0
        %2974 = vmatmul.mubr.f32.gmra.mxu0 %v2262
        %v2975 = vpop.f32.mrf.mxu0
        %v2976 = vadd.f32 0.0, %v2975
        %v2977 = vpop.f32.mrf.mxu0
        %v2978 = vadd.f32 0.0, %v2977
        %2979 = vmatprep.mubr.f32.mxu0 0.0
        %2980 = vmatmul.mubr.f32.gmra.mxu0 %v2264
        %v2981 = vpop.f32.mrf.mxu0
        %v2982 = vadd.f32 0.0, %v2981
        %v2983 = vpop.f32.mrf.mxu0
        %v2984 = vadd.f32 0.0, %v2983
        %2985 = vmatprep.mubr.f32.mxu0 0.0
        %2986 = vmatmul.mubr.f32.gmra.mxu0 %v2266
        %v2987 = vpop.f32.mrf.mxu0
        %v2988 = vadd.f32 0.0, %v2987
        %v2989 = vpop.f32.mrf.mxu0
        %v2990 = vadd.f32 0.0, %v2989
        %2991 = vdwg.mxu0
        %2992 = vmatprep.subr.mxu0 %v2301
        %2993 = vmatpush1.msra.mxu0 %v2300
        %2994 = vmatprep.subr.mxu0 %v2299
        %2995 = vmatpush1.msra.mxu0 %v2298
        %2996 = vmatprep.subr.mxu0 %v2297
        %2997 = vmatpush1.msra.mxu0 %v2296
        %2998 = vmatprep.subr.mxu0 %v2295
        %2999 = vmatpush1.msra.mxu0 %v2294
        %3000 = vmatprep.subr.mxu0 %v2293
        %3001 = vmatpush1.msra.mxu0 %v2292
        %3002 = vmatprep.subr.mxu0 %v2291
        %3003 = vmatpush1.msra.mxu0 %v2290
        %3004 = vmatprep.subr.mxu0 %v2289
        %3005 = vmatpush1.msra.mxu0 %v2288
        %3006 = vmatprep.subr.mxu0 %v2287
        %3007 = vmatpush1.msra.mxu0 %v2286
        %3008 = vmatprep.subr.mxu0 %v2285
        %3009 = vmatpush1.msra.mxu0 %v2284
        %3010 = vmatprep.subr.mxu0 %v2283
        %3011 = vmatpush1.msra.mxu0 %v2282
        %3012 = vmatprep.subr.mxu0 %v2281
        %3013 = vmatpush1.msra.mxu0 %v2280
        %3014 = vmatprep.subr.mxu0 %v2279
        %3015 = vmatpush1.msra.mxu0 %v2278
        %3016 = vmatprep.subr.mxu0 %v2277
        %3017 = vmatpush1.msra.mxu0 %v2276
        %3018 = vmatprep.subr.mxu0 %v2275
        %3019 = vmatpush1.msra.mxu0 %v2274
        %3020 = vmatprep.subr.mxu0 %v2273
        %3021 = vmatpush1.msra.mxu0 %v2272
        %3022 = vmatprep.subr.mxu0 %v2271
        %3023 = vmatpush1.msra.mxu0 %v2270
        %3024 = vmatprep.subr.mxu0 0.0
        %3025 = vmatpush2.msra.mxu0 0.0
        %3026 = vmatprep.subr.mxu0 0.0
        %3027 = vmatpush2.msra.mxu0 0.0
        %3028 = vmatprep.subr.mxu0 0.0
        %3029 = vmatpush2.msra.mxu0 0.0
        %3030 = vmatprep.subr.mxu0 0.0
        %3031 = vmatpush2.msra.mxu0 0.0
        %3032 = vmatprep.subr.mxu0 0.0
        %3033 = vmatpush2.msra.mxu0 0.0
        %3034 = vmatprep.subr.mxu0 0.0
        %3035 = vmatpush2.msra.mxu0 0.0
        %3036 = vmatprep.subr.mxu0 0.0
        %3037 = vmatpush2.msra.mxu0 0.0
        %3038 = vmatprep.subr.mxu0 0.0
        %3039 = vmatpush2.msra.mxu0 0.0
        %3040 = vmatprep.subr.mxu0 0.0
        %3041 = vmatpush2.msra.mxu0 0.0
        %3042 = vmatprep.subr.mxu0 0.0
        %3043 = vmatpush2.msra.mxu0 0.0
        %3044 = vmatprep.subr.mxu0 0.0
        %3045 = vmatpush2.msra.mxu0 0.0
        %3046 = vmatprep.subr.mxu0 0.0
        %3047 = vmatpush2.msra.mxu0 0.0
        %3048 = vmatprep.subr.mxu0 0.0
        %3049 = vmatpush2.msra.mxu0 0.0
        %3050 = vmatprep.subr.mxu0 0.0
        %3051 = vmatpush2.msra.mxu0 0.0
        %3052 = vmatprep.subr.mxu0 0.0
        %3053 = vmatpush2.msra.mxu0 0.0
        %3054 = vmatprep.subr.mxu0 0.0
        %3055 = vmatpush2.msra.mxu0 0.0
        %3056 = vmatprep.mubr.f32.mxu0 0.0
        %3057 = vmatmul.mubr.f32.gmra.mxu0 %v2259
        %v3058 = vpop.f32.mrf.mxu0
        %v3059 = vadd.f32 %v2970, %v3058
        %v3060 = vpop.f32.mrf.mxu0
        %v3061 = vadd.f32 %v2972, %v3060
        %3062 = vmatprep.mubr.f32.mxu0 0.0
        %3063 = vmatmul.mubr.f32.gmra.mxu0 %v2261
        %v3064 = vpop.f32.mrf.mxu0
        %v3065 = vadd.f32 %v2976, %v3064
        %v3066 = vpop.f32.mrf.mxu0
        %v3067 = vadd.f32 %v2978, %v3066
        %3068 = vmatprep.mubr.f32.mxu0 0.0
        %3069 = vmatmul.mubr.f32.gmra.mxu0 %v2263
        %v3070 = vpop.f32.mrf.mxu0
        %v3071 = vadd.f32 %v2982, %v3070
        %v3072 = vpop.f32.mrf.mxu0
        %v3073 = vadd.f32 %v2984, %v3072
        %3074 = vmatprep.mubr.f32.mxu0 0.0
        %3075 = vmatmul.mubr.f32.gmra.mxu0 %v2265
        %v3076 = vpop.f32.mrf.mxu0
        %v3077 = vadd.f32 %v2988, %v3076
        %v3078 = vpop.f32.mrf.mxu0
        %v3079 = vadd.f32 %v2990, %v3078
        %3080 = vdwg.mxu0
        %3081 = vmatprep.subr.mxu0 %v2545
        %3082 = vmatpush1.msra.mxu0 %v2544
        %3083 = vmatprep.subr.mxu0 %v2543
        %3084 = vmatpush1.msra.mxu0 %v2542
        %3085 = vmatprep.subr.mxu0 %v2541
        %3086 = vmatpush1.msra.mxu0 %v2540
        %3087 = vmatprep.subr.mxu0 %v2539
        %3088 = vmatpush1.msra.mxu0 %v2538
        %3089 = vmatprep.subr.mxu0 %v2537
        %3090 = vmatpush1.msra.mxu0 %v2536
        %3091 = vmatprep.subr.mxu0 %v2535
        %3092 = vmatpush1.msra.mxu0 %v2534
        %3093 = vmatprep.subr.mxu0 %v2533
        %3094 = vmatpush1.msra.mxu0 %v2532
        %3095 = vmatprep.subr.mxu0 %v2531
        %3096 = vmatpush1.msra.mxu0 %v2530
        %3097 = vmatprep.subr.mxu0 %v2529
        %3098 = vmatpush1.msra.mxu0 %v2528
        %3099 = vmatprep.subr.mxu0 %v2527
        %3100 = vmatpush1.msra.mxu0 %v2526
        %3101 = vmatprep.subr.mxu0 %v2525
        %3102 = vmatpush1.msra.mxu0 %v2524
        %3103 = vmatprep.subr.mxu0 %v2523
        %3104 = vmatpush1.msra.mxu0 %v2522
        %3105 = vmatprep.subr.mxu0 %v2521
        %3106 = vmatpush1.msra.mxu0 %v2520
        %3107 = vmatprep.subr.mxu0 %v2519
        %3108 = vmatpush1.msra.mxu0 %v2518
        %3109 = vmatprep.subr.mxu0 %v2517
        %3110 = vmatpush1.msra.mxu0 %v2516
        %3111 = vmatprep.subr.mxu0 %v2515
        %3112 = vmatpush1.msra.mxu0 %v2514
        %3113 = vmatprep.subr.mxu0 0.0
        %3114 = vmatpush2.msra.mxu0 0.0
        %3115 = vmatprep.subr.mxu0 0.0
        %3116 = vmatpush2.msra.mxu0 0.0
        %3117 = vmatprep.subr.mxu0 0.0
        %3118 = vmatpush2.msra.mxu0 0.0
        %3119 = vmatprep.subr.mxu0 0.0
        %3120 = vmatpush2.msra.mxu0 0.0
        %3121 = vmatprep.subr.mxu0 0.0
        %3122 = vmatpush2.msra.mxu0 0.0
        %3123 = vmatprep.subr.mxu0 0.0
        %3124 = vmatpush2.msra.mxu0 0.0
        %3125 = vmatprep.subr.mxu0 0.0
        %3126 = vmatpush2.msra.mxu0 0.0
        %3127 = vmatprep.subr.mxu0 0.0
        %3128 = vmatpush2.msra.mxu0 0.0
        %3129 = vmatprep.subr.mxu0 0.0
        %3130 = vmatpush2.msra.mxu0 0.0
        %3131 = vmatprep.subr.mxu0 0.0
        %3132 = vmatpush2.msra.mxu0 0.0
        %3133 = vmatprep.subr.mxu0 0.0
        %3134 = vmatpush2.msra.mxu0 0.0
        %3135 = vmatprep.subr.mxu0 0.0
        %3136 = vmatpush2.msra.mxu0 0.0
        %3137 = vmatprep.subr.mxu0 0.0
        %3138 = vmatpush2.msra.mxu0 0.0
        %3139 = vmatprep.subr.mxu0 0.0
        %3140 = vmatpush2.msra.mxu0 0.0
        %3141 = vmatprep.subr.mxu0 0.0
        %3142 = vmatpush2.msra.mxu0 0.0
        %3143 = vmatprep.subr.mxu0 0.0
        %3144 = vmatpush2.msra.mxu0 0.0
        %3145 = vmatprep.mubr.f32.mxu0 0.0
        %3146 = vmatmul.mubr.f32.gmra.mxu0 %v2261
        %v3147 = vpop.f32.mrf.mxu0
        %v3148 = vadd.f32 0.0, %v3147
        %v3149 = vpop.f32.mrf.mxu0
        %v3150 = vadd.f32 0.0, %v3149
        %3151 = vmatprep.mubr.f32.mxu0 0.0
        %3152 = vmatmul.mubr.f32.gmra.mxu0 %v2263
        %v3153 = vpop.f32.mrf.mxu0
        %v3154 = vadd.f32 0.0, %v3153
        %v3155 = vpop.f32.mrf.mxu0
        %v3156 = vadd.f32 0.0, %v3155
        %3157 = vmatprep.mubr.f32.mxu0 0.0
        %3158 = vmatmul.mubr.f32.gmra.mxu0 %v2265
        %v3159 = vpop.f32.mrf.mxu0
        %v3160 = vadd.f32 0.0, %v3159
        %v3161 = vpop.f32.mrf.mxu0
        %v3162 = vadd.f32 0.0, %v3161
        %3163 = vmatprep.mubr.f32.mxu0 0.0
        %3164 = vmatmul.mubr.f32.gmra.mxu0 %v2267
        %v3165 = vpop.f32.mrf.mxu0
        %v3166 = vadd.f32 0.0, %v3165
        %v3167 = vpop.f32.mrf.mxu0
        %v3168 = vadd.f32 0.0, %v3167
        %3169 = vdwg.mxu0
        %v3170 = vadd.f32 %v3059, %v3148
        %v3171 = vadd.f32 %v3061, %v3150
        %v3172 = vadd.f32 %v3065, %v3154
        %v3173 = vadd.f32 %v3067, %v3156
        %v3174 = vadd.f32 %v3071, %v3160
        %v3175 = vadd.f32 %v3073, %v3162
        %v3176 = vadd.f32 %v3077, %v3166
        %v3177 = vadd.f32 %v3079, %v3168
        %3178 = vmatprep.subr.mxu0 %v2675
        %3179 = vmatpush1.msra.mxu0 %v2674
        %3180 = vmatprep.subr.mxu0 %v2673
        %3181 = vmatpush1.msra.mxu0 %v2672
        %3182 = vmatprep.subr.mxu0 %v2671
        %3183 = vmatpush1.msra.mxu0 %v2670
        %3184 = vmatprep.subr.mxu0 %v2669
        %3185 = vmatpush1.msra.mxu0 %v2668
        %3186 = vmatprep.subr.mxu0 %v2667
        %3187 = vmatpush1.msra.mxu0 %v2666
        %3188 = vmatprep.subr.mxu0 %v2665
        %3189 = vmatpush1.msra.mxu0 %v2664
        %3190 = vmatprep.subr.mxu0 %v2663
        %3191 = vmatpush1.msra.mxu0 %v2662
        %3192 = vmatprep.subr.mxu0 %v2661
        %3193 = vmatpush1.msra.mxu0 %v2660
        %3194 = vmatprep.subr.mxu0 %v2659
        %3195 = vmatpush1.msra.mxu0 %v2658
        %3196 = vmatprep.subr.mxu0 %v2657
        %3197 = vmatpush1.msra.mxu0 %v2656
        %3198 = vmatprep.subr.mxu0 %v2655
        %3199 = vmatpush1.msra.mxu0 %v2654
        %3200 = vmatprep.subr.mxu0 %v2653
        %3201 = vmatpush1.msra.mxu0 %v2652
        %3202 = vmatprep.subr.mxu0 %v2651
        %3203 = vmatpush1.msra.mxu0 %v2650
        %3204 = vmatprep.subr.mxu0 %v2649
        %3205 = vmatpush1.msra.mxu0 %v2648
        %3206 = vmatprep.subr.mxu0 %v2647
        %3207 = vmatpush1.msra.mxu0 %v2646
        %3208 = vmatprep.subr.mxu0 %v2645
        %3209 = vmatpush1.msra.mxu0 %v2644
        %3210 = vmatprep.subr.mxu0 0.0
        %3211 = vmatpush2.msra.mxu0 0.0
        %3212 = vmatprep.subr.mxu0 0.0
        %3213 = vmatpush2.msra.mxu0 0.0
        %3214 = vmatprep.subr.mxu0 0.0
        %3215 = vmatpush2.msra.mxu0 0.0
        %3216 = vmatprep.subr.mxu0 0.0
        %3217 = vmatpush2.msra.mxu0 0.0
        %3218 = vmatprep.subr.mxu0 0.0
        %3219 = vmatpush2.msra.mxu0 0.0
        %3220 = vmatprep.subr.mxu0 0.0
        %3221 = vmatpush2.msra.mxu0 0.0
        %3222 = vmatprep.subr.mxu0 0.0
        %3223 = vmatpush2.msra.mxu0 0.0
        %3224 = vmatprep.subr.mxu0 0.0
        %3225 = vmatpush2.msra.mxu0 0.0
        %3226 = vmatprep.subr.mxu0 0.0
        %3227 = vmatpush2.msra.mxu0 0.0
        %3228 = vmatprep.subr.mxu0 0.0
        %3229 = vmatpush2.msra.mxu0 0.0
        %3230 = vmatprep.subr.mxu0 0.0
        %3231 = vmatpush2.msra.mxu0 0.0
        %3232 = vmatprep.subr.mxu0 0.0
        %3233 = vmatpush2.msra.mxu0 0.0
        %3234 = vmatprep.subr.mxu0 0.0
        %3235 = vmatpush2.msra.mxu0 0.0
        %3236 = vmatprep.subr.mxu0 0.0
        %3237 = vmatpush2.msra.mxu0 0.0
        %3238 = vmatprep.subr.mxu0 0.0
        %3239 = vmatpush2.msra.mxu0 0.0
        %3240 = vmatprep.subr.mxu0 0.0
        %3241 = vmatpush2.msra.mxu0 0.0
        %3242 = vmatprep.mubr.f32.mxu0 0.0
        %3243 = vmatmul.mubr.f32.gmra.mxu0 %v2262
        %v3244 = vpop.f32.mrf.mxu0
        %v3245 = vadd.f32 0.0, %v3244
        %v3246 = vpop.f32.mrf.mxu0
        %v3247 = vadd.f32 0.0, %v3246
        %3248 = vmatprep.mubr.f32.mxu0 0.0
        %3249 = vmatmul.mubr.f32.gmra.mxu0 %v2264
        %v3250 = vpop.f32.mrf.mxu0
        %v3251 = vadd.f32 0.0, %v3250
        %v3252 = vpop.f32.mrf.mxu0
        %v3253 = vadd.f32 0.0, %v3252
        %3254 = vmatprep.mubr.f32.mxu0 0.0
        %3255 = vmatmul.mubr.f32.gmra.mxu0 %v2266
        %v3256 = vpop.f32.mrf.mxu0
        %v3257 = vadd.f32 0.0, %v3256
        %v3258 = vpop.f32.mrf.mxu0
        %v3259 = vadd.f32 0.0, %v3258
        %3260 = vmatprep.mubr.f32.mxu0 0.0
        %3261 = vmatmul.mubr.f32.gmra.mxu0 %v2268
        %v3262 = vpop.f32.mrf.mxu0
        %v3263 = vadd.f32 0.0, %v3262
        %v3264 = vpop.f32.mrf.mxu0
        %v3265 = vadd.f32 0.0, %v3264
        %3266 = vdwg.mxu0
        %v3267 = vadd.f32 %v3170, %v3245
        %v3268 = vadd.f32 %v3171, %v3247
        %v3269 = vadd.f32 %v3172, %v3251
        %v3270 = vadd.f32 %v3173, %v3253
        %v3271 = vadd.f32 %v3174, %v3257
        %v3272 = vadd.f32 %v3175, %v3259
        %v3273 = vadd.f32 %v3176, %v3263
        %v3274 = vadd.f32 %v3177, %v3265
        %3275 = vmatprep.subr.mxu0 %v2805
        %3276 = vmatpush1.msra.mxu0 %v2804
        %3277 = vmatprep.subr.mxu0 %v2803
        %3278 = vmatpush1.msra.mxu0 %v2802
        %3279 = vmatprep.subr.mxu0 %v2801
        %3280 = vmatpush1.msra.mxu0 %v2800
        %3281 = vmatprep.subr.mxu0 %v2799
        %3282 = vmatpush1.msra.mxu0 %v2798
        %3283 = vmatprep.subr.mxu0 %v2797
        %3284 = vmatpush1.msra.mxu0 %v2796
        %3285 = vmatprep.subr.mxu0 %v2795
        %3286 = vmatpush1.msra.mxu0 %v2794
        %3287 = vmatprep.subr.mxu0 %v2793
        %3288 = vmatpush1.msra.mxu0 %v2792
        %3289 = vmatprep.subr.mxu0 %v2791
        %3290 = vmatpush1.msra.mxu0 %v2790
        %3291 = vmatprep.subr.mxu0 %v2789
        %3292 = vmatpush1.msra.mxu0 %v2788
        %3293 = vmatprep.subr.mxu0 %v2787
        %3294 = vmatpush1.msra.mxu0 %v2786
        %3295 = vmatprep.subr.mxu0 %v2785
        %3296 = vmatpush1.msra.mxu0 %v2784
        %3297 = vmatprep.subr.mxu0 %v2783
        %3298 = vmatpush1.msra.mxu0 %v2782
        %3299 = vmatprep.subr.mxu0 %v2781
        %3300 = vmatpush1.msra.mxu0 %v2780
        %3301 = vmatprep.subr.mxu0 %v2779
        %3302 = vmatpush1.msra.mxu0 %v2778
        %3303 = vmatprep.subr.mxu0 %v2777
        %3304 = vmatpush1.msra.mxu0 %v2776
        %3305 = vmatprep.subr.mxu0 %v2775
        %3306 = vmatpush1.msra.mxu0 %v2774
        %3307 = vmatprep.subr.mxu0 0.0
        %3308 = vmatpush2.msra.mxu0 0.0
        %3309 = vmatprep.subr.mxu0 0.0
        %3310 = vmatpush2.msra.mxu0 0.0
        %3311 = vmatprep.subr.mxu0 0.0
        %3312 = vmatpush2.msra.mxu0 0.0
        %3313 = vmatprep.subr.mxu0 0.0
        %3314 = vmatpush2.msra.mxu0 0.0
        %3315 = vmatprep.subr.mxu0 0.0
        %3316 = vmatpush2.msra.mxu0 0.0
        %3317 = vmatprep.subr.mxu0 0.0
        %3318 = vmatpush2.msra.mxu0 0.0
        %3319 = vmatprep.subr.mxu0 0.0
        %3320 = vmatpush2.msra.mxu0 0.0
        %3321 = vmatprep.subr.mxu0 0.0
        %3322 = vmatpush2.msra.mxu0 0.0
        %3323 = vmatprep.subr.mxu0 0.0
        %3324 = vmatpush2.msra.mxu0 0.0
        %3325 = vmatprep.subr.mxu0 0.0
        %3326 = vmatpush2.msra.mxu0 0.0
        %3327 = vmatprep.subr.mxu0 0.0
        %3328 = vmatpush2.msra.mxu0 0.0
        %3329 = vmatprep.subr.mxu0 0.0
        %3330 = vmatpush2.msra.mxu0 0.0
        %3331 = vmatprep.subr.mxu0 0.0
        %3332 = vmatpush2.msra.mxu0 0.0
        %3333 = vmatprep.subr.mxu0 0.0
        %3334 = vmatpush2.msra.mxu0 0.0
        %3335 = vmatprep.subr.mxu0 0.0
        %3336 = vmatpush2.msra.mxu0 0.0
        %3337 = vmatprep.subr.mxu0 0.0
        %3338 = vmatpush2.msra.mxu0 0.0
        %3339 = vmatprep.mubr.f32.mxu0 0.0
        %3340 = vmatmul.mubr.f32.gmra.mxu0 %v2263
        %v3341 = vpop.f32.mrf.mxu0
        %v3342 = vadd.f32 0.0, %v3341
        %v3343 = vpop.f32.mrf.mxu0
        %v3344 = vadd.f32 0.0, %v3343
        %3345 = vmatprep.mubr.f32.mxu0 0.0
        %3346 = vmatmul.mubr.f32.gmra.mxu0 %v2265
        %v3347 = vpop.f32.mrf.mxu0
        %v3348 = vadd.f32 0.0, %v3347
        %v3349 = vpop.f32.mrf.mxu0
        %v3350 = vadd.f32 0.0, %v3349
        %3351 = vmatprep.mubr.f32.mxu0 0.0
        %3352 = vmatmul.mubr.f32.gmra.mxu0 %v2267
        %v3353 = vpop.f32.mrf.mxu0
        %v3354 = vadd.f32 0.0, %v3353
        %v3355 = vpop.f32.mrf.mxu0
        %v3356 = vadd.f32 0.0, %v3355
        %3357 = vmatprep.mubr.f32.mxu0 0.0
        %3358 = vmatmul.mubr.f32.gmra.mxu0 %v2269
        %v3359 = vpop.f32.mrf.mxu0
        %v3360 = vadd.f32 0.0, %v3359
        %v3361 = vpop.f32.mrf.mxu0
        %v3362 = vadd.f32 0.0, %v3361
        %3363 = vdwg.mxu0
        %v3364 = vadd.f32 %v3267, %v3342
        %v3365 = vadd.f32 %v3268, %v3344
        %v3366 = vadd.f32 %v3269, %v3348
        %v3367 = vadd.f32 %v3270, %v3350
        %v3368 = vadd.f32 %v3271, %v3354
        %v3369 = vadd.f32 %v3272, %v3356
        %v3370 = vadd.f32 %v3273, %v3360
        %v3371 = vadd.f32 %v3274, %v3362
        %v3372 = vmax.f32 %v2895, %v3364
        %v3373 = vmax.f32 %v2896, %v3365
        %v3374 = vmax.f32 %v2897, %v3366
        %v3375 = vmax.f32 %v2898, %v3367
        %v3376 = vmax.f32 %v2899, %v3368
        %v3377 = vmax.f32 %v2900, %v3369
        %v3378 = vmax.f32 %v2901, %v3370
        %v3379 = vmax.f32 %v2902, %v3371
        %v3380 = vmax.f32 %v3372, %v3373
        %v3381 = vmax.f32 %v3374, %v3375
        %v3382 = vmax.f32 %v3376, %v3377
        %v3383 = vmax.f32 %v3378, %v3379
        %v3384 = vld [vmem:[%s4] sm:$0x1]
        %v3386 = vlaneseq
        %v3387 = vshrl.u32 %v3386, 7
        %v3388 = vsub.s32 0, %v3387
        %v3389 = vrot.slane %v3384, %v3388
        %v3391 = vadd.f32 %v3380, %v3389
        %v3392 = vadd.f32 %v3381, %v3389
        %v3393 = vadd.f32 %v3382, %v3389
        %v3394 = vadd.f32 %v3383, %v3389
        %v3395 = vmax.f32 %v3391, 0.0
        %v3396 = vmax.f32 %v3392, 0.0
        %v3397 = vmax.f32 %v3393, 0.0
        %v3398 = vmax.f32 %v3394, 0.0
        %v3399 = vld [vmem:[%s5] sm:$0xff]
        %v3400 = vld [vmem:[%s5 + $0x8] sm:$0xff]
        %v3401 = vld [vmem:[%s5 + $0x10] sm:$0xff]
        %v3402 = vld [vmem:[%s5 + $0x18] sm:$0xff]
        %v3403 = vld [vmem:[%s5 + $0x20] sm:$0xff]
        %v3404 = vld [vmem:[%s5 + $0x28] sm:$0xff]
        %v3405 = vld [vmem:[%s5 + $0x30] sm:$0xff]
        %v3406 = vld [vmem:[%s5 + $0x38] sm:$0xff]
        %v3407 = vld [vmem:[%s5 + $0x40] sm:$0xff]
        %v3408 = vld [vmem:[%s5 + $0x48] sm:$0xff]
        %v3409 = vld [vmem:[%s5 + $0x50] sm:$0xff]
        %v3410 = vld [vmem:[%s5 + $0x58] sm:$0xff]
        %v3411 = vld [vmem:[%s5 + $0x60] sm:$0xff]
        %v3412 = vld [vmem:[%s5 + $0x68] sm:$0xff]
        %v3413 = vld [vmem:[%s5 + $0x70] sm:$0xff]
        %v3414 = vld [vmem:[%s5 + $0x78] sm:$0xff]
        %s3415 = scalar_lea.vmem %s5, 128
        %v3416 = vld [vmem:[%s3415] sm:$0xff]
        %v3417 = vld [vmem:[%s3415 + $0x8] sm:$0xff]
        %v3418 = vld [vmem:[%s3415 + $0x10] sm:$0xff]
        %v3419 = vld [vmem:[%s3415 + $0x18] sm:$0xff]
        %v3420 = vld [vmem:[%s3415 + $0x20] sm:$0xff]
        %v3421 = vld [vmem:[%s3415 + $0x28] sm:$0xff]
        %v3422 = vld [vmem:[%s3415 + $0x30] sm:$0xff]
        %v3423 = vld [vmem:[%s3415 + $0x38] sm:$0xff]
        %v3424 = vld [vmem:[%s3415 + $0x40] sm:$0xff]
        %v3425 = vld [vmem:[%s3415 + $0x48] sm:$0xff]
        %v3426 = vld [vmem:[%s3415 + $0x50] sm:$0xff]
        %v3427 = vld [vmem:[%s3415 + $0x58] sm:$0xff]
        %v3428 = vld [vmem:[%s3415 + $0x60] sm:$0xff]
        %v3429 = vld [vmem:[%s3415 + $0x68] sm:$0xff]
        %v3430 = vld [vmem:[%s3415 + $0x70] sm:$0xff]
        %v3431 = vld [vmem:[%s3415 + $0x78] sm:$0xff]
        %3432 = vmatprep.subr.mxu0 0.0
        %3433 = vmatpush1.msra.mxu0 %v3431
        %3434 = vmatprep.subr.mxu0 0.0
        %3435 = vmatpush1.msra.mxu0 %v3430
        %3436 = vmatprep.subr.mxu0 0.0
        %3437 = vmatpush1.msra.mxu0 %v3429
        %3438 = vmatprep.subr.mxu0 0.0
        %3439 = vmatpush1.msra.mxu0 %v3428
        %3440 = vmatprep.subr.mxu0 0.0
        %3441 = vmatpush1.msra.mxu0 %v3427
        %3442 = vmatprep.subr.mxu0 0.0
        %3443 = vmatpush1.msra.mxu0 %v3426
        %3444 = vmatprep.subr.mxu0 0.0
        %3445 = vmatpush1.msra.mxu0 %v3425
        %3446 = vmatprep.subr.mxu0 0.0
        %3447 = vmatpush1.msra.mxu0 %v3424
        %3448 = vmatprep.subr.mxu0 0.0
        %3449 = vmatpush1.msra.mxu0 %v3423
        %3450 = vmatprep.subr.mxu0 0.0
        %3451 = vmatpush1.msra.mxu0 %v3422
        %3452 = vmatprep.subr.mxu0 0.0
        %3453 = vmatpush1.msra.mxu0 %v3421
        %3454 = vmatprep.subr.mxu0 0.0
        %3455 = vmatpush1.msra.mxu0 %v3420
        %3456 = vmatprep.subr.mxu0 0.0
        %3457 = vmatpush1.msra.mxu0 %v3419
        %3458 = vmatprep.subr.mxu0 0.0
        %3459 = vmatpush1.msra.mxu0 %v3418
        %3460 = vmatprep.subr.mxu0 0.0
        %3461 = vmatpush1.msra.mxu0 %v3417
        %3462 = vmatprep.subr.mxu0 0.0
        %3463 = vmatpush1.msra.mxu0 %v3416
        %3464 = vmatprep.subr.mxu0 0.0
        %3465 = vmatpush2.msra.mxu0 0.0
        %3466 = vmatprep.subr.mxu0 0.0
        %3467 = vmatpush2.msra.mxu0 0.0
        %3468 = vmatprep.subr.mxu0 0.0
        %3469 = vmatpush2.msra.mxu0 0.0
        %3470 = vmatprep.subr.mxu0 0.0
        %3471 = vmatpush2.msra.mxu0 0.0
        %3472 = vmatprep.subr.mxu0 0.0
        %3473 = vmatpush2.msra.mxu0 0.0
        %3474 = vmatprep.subr.mxu0 0.0
        %3475 = vmatpush2.msra.mxu0 0.0
        %3476 = vmatprep.subr.mxu0 0.0
        %3477 = vmatpush2.msra.mxu0 0.0
        %3478 = vmatprep.subr.mxu0 0.0
        %3479 = vmatpush2.msra.mxu0 0.0
        %3480 = vmatprep.subr.mxu0 0.0
        %3481 = vmatpush2.msra.mxu0 0.0
        %3482 = vmatprep.subr.mxu0 0.0
        %3483 = vmatpush2.msra.mxu0 0.0
        %3484 = vmatprep.subr.mxu0 0.0
        %3485 = vmatpush2.msra.mxu0 0.0
        %3486 = vmatprep.subr.mxu0 0.0
        %3487 = vmatpush2.msra.mxu0 0.0
        %3488 = vmatprep.subr.mxu0 0.0
        %3489 = vmatpush2.msra.mxu0 0.0
        %3490 = vmatprep.subr.mxu0 0.0
        %3491 = vmatpush2.msra.mxu0 0.0
        %3492 = vmatprep.subr.mxu0 0.0
        %3493 = vmatpush2.msra.mxu0 0.0
        %3494 = vmatprep.subr.mxu0 0.0
        %3495 = vmatpush2.msra.mxu0 0.0
        %3496 = vmatprep.mubr.f32.mxu0 0.0
        %3497 = vmatmul.mubr.f32.gmra.mxu0 %v3396
        %v3498 = vpop.f32.mrf.mxu0
        %v3499 = vadd.f32 0.0, %v3498
        %v3500 = vpop.f32.mrf.mxu0
        %3501 = vdwg.mxu0
        %3502 = vmatprep.subr.mxu0 0.0
        %3503 = vmatpush1.msra.mxu0 %v3414
        %3504 = vmatprep.subr.mxu0 0.0
        %3505 = vmatpush1.msra.mxu0 %v3413
        %3506 = vmatprep.subr.mxu0 0.0
        %3507 = vmatpush1.msra.mxu0 %v3412
        %3508 = vmatprep.subr.mxu0 0.0
        %3509 = vmatpush1.msra.mxu0 %v3411
        %3510 = vmatprep.subr.mxu0 0.0
        %3511 = vmatpush1.msra.mxu0 %v3410
        %3512 = vmatprep.subr.mxu0 0.0
        %3513 = vmatpush1.msra.mxu0 %v3409
        %3514 = vmatprep.subr.mxu0 0.0
        %3515 = vmatpush1.msra.mxu0 %v3408
        %3516 = vmatprep.subr.mxu0 0.0
        %3517 = vmatpush1.msra.mxu0 %v3407
        %3518 = vmatprep.subr.mxu0 0.0
        %3519 = vmatpush1.msra.mxu0 %v3406
        %3520 = vmatprep.subr.mxu0 0.0
        %3521 = vmatpush1.msra.mxu0 %v3405
        %3522 = vmatprep.subr.mxu0 0.0
        %3523 = vmatpush1.msra.mxu0 %v3404
        %3524 = vmatprep.subr.mxu0 0.0
        %3525 = vmatpush1.msra.mxu0 %v3403
        %3526 = vmatprep.subr.mxu0 0.0
        %3527 = vmatpush1.msra.mxu0 %v3402
        %3528 = vmatprep.subr.mxu0 0.0
        %3529 = vmatpush1.msra.mxu0 %v3401
        %3530 = vmatprep.subr.mxu0 0.0
        %3531 = vmatpush1.msra.mxu0 %v3400
        %3532 = vmatprep.subr.mxu0 0.0
        %3533 = vmatpush1.msra.mxu0 %v3399
        %3534 = vmatprep.subr.mxu0 0.0
        %3535 = vmatpush2.msra.mxu0 0.0
        %3536 = vmatprep.subr.mxu0 0.0
        %3537 = vmatpush2.msra.mxu0 0.0
        %3538 = vmatprep.subr.mxu0 0.0
        %3539 = vmatpush2.msra.mxu0 0.0
        %3540 = vmatprep.subr.mxu0 0.0
        %3541 = vmatpush2.msra.mxu0 0.0
        %3542 = vmatprep.subr.mxu0 0.0
        %3543 = vmatpush2.msra.mxu0 0.0
        %3544 = vmatprep.subr.mxu0 0.0
        %3545 = vmatpush2.msra.mxu0 0.0
        %3546 = vmatprep.subr.mxu0 0.0
        %3547 = vmatpush2.msra.mxu0 0.0
        %3548 = vmatprep.subr.mxu0 0.0
        %3549 = vmatpush2.msra.mxu0 0.0
        %3550 = vmatprep.subr.mxu0 0.0
        %3551 = vmatpush2.msra.mxu0 0.0
        %3552 = vmatprep.subr.mxu0 0.0
        %3553 = vmatpush2.msra.mxu0 0.0
        %3554 = vmatprep.subr.mxu0 0.0
        %3555 = vmatpush2.msra.mxu0 0.0
        %3556 = vmatprep.subr.mxu0 0.0
        %3557 = vmatpush2.msra.mxu0 0.0
        %3558 = vmatprep.subr.mxu0 0.0
        %3559 = vmatpush2.msra.mxu0 0.0
        %3560 = vmatprep.subr.mxu0 0.0
        %3561 = vmatpush2.msra.mxu0 0.0
        %3562 = vmatprep.subr.mxu0 0.0
        %3563 = vmatpush2.msra.mxu0 0.0
        %3564 = vmatprep.subr.mxu0 0.0
        %3565 = vmatpush2.msra.mxu0 0.0
        %3566 = vmatprep.mubr.f32.mxu0 0.0
        %3567 = vmatmul.mubr.f32.gmra.mxu0 %v3395
        %v3568 = vpop.f32.mrf.mxu0
        %v3569 = vadd.f32 %v3499, %v3568
        %v3570 = vpop.f32.mrf.mxu0
        %3571 = vdwg.mxu0
        %s3572 = scalar_lea.vmem %s5, 256
        %v3573 = vld [vmem:[%s3572] sm:$0xff]
        %v3574 = vld [vmem:[%s3572 + $0x8] sm:$0xff]
        %v3575 = vld [vmem:[%s3572 + $0x10] sm:$0xff]
        %v3576 = vld [vmem:[%s3572 + $0x18] sm:$0xff]
        %v3577 = vld [vmem:[%s3572 + $0x20] sm:$0xff]
        %v3578 = vld [vmem:[%s3572 + $0x28] sm:$0xff]
        %v3579 = vld [vmem:[%s3572 + $0x30] sm:$0xff]
        %v3580 = vld [vmem:[%s3572 + $0x38] sm:$0xff]
        %v3581 = vld [vmem:[%s3572 + $0x40] sm:$0xff]
        %v3582 = vld [vmem:[%s3572 + $0x48] sm:$0xff]
        %v3583 = vld [vmem:[%s3572 + $0x50] sm:$0xff]
        %v3584 = vld [vmem:[%s3572 + $0x58] sm:$0xff]
        %v3585 = vld [vmem:[%s3572 + $0x60] sm:$0xff]
        %v3586 = vld [vmem:[%s3572 + $0x68] sm:$0xff]
        %v3587 = vld [vmem:[%s3572 + $0x70] sm:$0xff]
        %v3588 = vld [vmem:[%s3572 + $0x78] sm:$0xff]
        %3589 = vmatprep.subr.mxu0 0.0
        %3590 = vmatpush1.msra.mxu0 %v3588
        %3591 = vmatprep.subr.mxu0 0.0
        %3592 = vmatpush1.msra.mxu0 %v3587
        %3593 = vmatprep.subr.mxu0 0.0
        %3594 = vmatpush1.msra.mxu0 %v3586
        %3595 = vmatprep.subr.mxu0 0.0
        %3596 = vmatpush1.msra.mxu0 %v3585
        %3597 = vmatprep.subr.mxu0 0.0
        %3598 = vmatpush1.msra.mxu0 %v3584
        %3599 = vmatprep.subr.mxu0 0.0
        %3600 = vmatpush1.msra.mxu0 %v3583
        %3601 = vmatprep.subr.mxu0 0.0
        %3602 = vmatpush1.msra.mxu0 %v3582
        %3603 = vmatprep.subr.mxu0 0.0
        %3604 = vmatpush1.msra.mxu0 %v3581
        %3605 = vmatprep.subr.mxu0 0.0
        %3606 = vmatpush1.msra.mxu0 %v3580
        %3607 = vmatprep.subr.mxu0 0.0
        %3608 = vmatpush1.msra.mxu0 %v3579
        %3609 = vmatprep.subr.mxu0 0.0
        %3610 = vmatpush1.msra.mxu0 %v3578
        %3611 = vmatprep.subr.mxu0 0.0
        %3612 = vmatpush1.msra.mxu0 %v3577
        %3613 = vmatprep.subr.mxu0 0.0
        %3614 = vmatpush1.msra.mxu0 %v3576
        %3615 = vmatprep.subr.mxu0 0.0
        %3616 = vmatpush1.msra.mxu0 %v3575
        %3617 = vmatprep.subr.mxu0 0.0
        %3618 = vmatpush1.msra.mxu0 %v3574
        %3619 = vmatprep.subr.mxu0 0.0
        %3620 = vmatpush1.msra.mxu0 %v3573
        %3621 = vmatprep.subr.mxu0 0.0
        %3622 = vmatpush2.msra.mxu0 0.0
        %3623 = vmatprep.subr.mxu0 0.0
        %3624 = vmatpush2.msra.mxu0 0.0
        %3625 = vmatprep.subr.mxu0 0.0
        %3626 = vmatpush2.msra.mxu0 0.0
        %3627 = vmatprep.subr.mxu0 0.0
        %3628 = vmatpush2.msra.mxu0 0.0
        %3629 = vmatprep.subr.mxu0 0.0
        %3630 = vmatpush2.msra.mxu0 0.0
        %3631 = vmatprep.subr.mxu0 0.0
        %3632 = vmatpush2.msra.mxu0 0.0
        %3633 = vmatprep.subr.mxu0 0.0
        %3634 = vmatpush2.msra.mxu0 0.0
        %3635 = vmatprep.subr.mxu0 0.0
        %3636 = vmatpush2.msra.mxu0 0.0
        %3637 = vmatprep.subr.mxu0 0.0
        %3638 = vmatpush2.msra.mxu0 0.0
        %3639 = vmatprep.subr.mxu0 0.0
        %3640 = vmatpush2.msra.mxu0 0.0
        %3641 = vmatprep.subr.mxu0 0.0
        %3642 = vmatpush2.msra.mxu0 0.0
        %3643 = vmatprep.subr.mxu0 0.0
        %3644 = vmatpush2.msra.mxu0 0.0
        %3645 = vmatprep.subr.mxu0 0.0
        %3646 = vmatpush2.msra.mxu0 0.0
        %3647 = vmatprep.subr.mxu0 0.0
        %3648 = vmatpush2.msra.mxu0 0.0
        %3649 = vmatprep.subr.mxu0 0.0
        %3650 = vmatpush2.msra.mxu0 0.0
        %3651 = vmatprep.subr.mxu0 0.0
        %3652 = vmatpush2.msra.mxu0 0.0
        %3653 = vmatprep.mubr.f32.mxu0 0.0
        %3654 = vmatmul.mubr.f32.gmra.mxu0 %v3397
        %v3655 = vpop.f32.mrf.mxu0
        %v3656 = vadd.f32 0.0, %v3655
        %v3657 = vpop.f32.mrf.mxu0
        %3658 = vdwg.mxu0
        %v3659 = vadd.f32 %v3569, %v3656
        %s3660 = scalar_lea.vmem %s5, 384
        %v3661 = vld [vmem:[%s3660] sm:$0xff]
        %v3662 = vld [vmem:[%s3660 + $0x8] sm:$0xff]
        %v3663 = vld [vmem:[%s3660 + $0x10] sm:$0xff]
        %v3664 = vld [vmem:[%s3660 + $0x18] sm:$0xff]
        %v3665 = vld [vmem:[%s3660 + $0x20] sm:$0xff]
        %v3666 = vld [vmem:[%s3660 + $0x28] sm:$0xff]
        %v3667 = vld [vmem:[%s3660 + $0x30] sm:$0xff]
        %v3668 = vld [vmem:[%s3660 + $0x38] sm:$0xff]
        %v3669 = vld [vmem:[%s3660 + $0x40] sm:$0xff]
        %v3670 = vld [vmem:[%s3660 + $0x48] sm:$0xff]
        %v3671 = vld [vmem:[%s3660 + $0x50] sm:$0xff]
        %v3672 = vld [vmem:[%s3660 + $0x58] sm:$0xff]
        %v3673 = vld [vmem:[%s3660 + $0x60] sm:$0xff]
        %v3674 = vld [vmem:[%s3660 + $0x68] sm:$0xff]
        %v3675 = vld [vmem:[%s3660 + $0x70] sm:$0xff]
        %v3676 = vld [vmem:[%s3660 + $0x78] sm:$0xff]
        %3677 = vmatprep.subr.mxu0 0.0
        %3678 = vmatpush1.msra.mxu0 %v3676
        %3679 = vmatprep.subr.mxu0 0.0
        %3680 = vmatpush1.msra.mxu0 %v3675
        %3681 = vmatprep.subr.mxu0 0.0
        %3682 = vmatpush1.msra.mxu0 %v3674
        %3683 = vmatprep.subr.mxu0 0.0
        %3684 = vmatpush1.msra.mxu0 %v3673
        %3685 = vmatprep.subr.mxu0 0.0
        %3686 = vmatpush1.msra.mxu0 %v3672
        %3687 = vmatprep.subr.mxu0 0.0
        %3688 = vmatpush1.msra.mxu0 %v3671
        %3689 = vmatprep.subr.mxu0 0.0
        %3690 = vmatpush1.msra.mxu0 %v3670
        %3691 = vmatprep.subr.mxu0 0.0
        %3692 = vmatpush1.msra.mxu0 %v3669
        %3693 = vmatprep.subr.mxu0 0.0
        %3694 = vmatpush1.msra.mxu0 %v3668
        %3695 = vmatprep.subr.mxu0 0.0
        %3696 = vmatpush1.msra.mxu0 %v3667
        %3697 = vmatprep.subr.mxu0 0.0
        %3698 = vmatpush1.msra.mxu0 %v3666
        %3699 = vmatprep.subr.mxu0 0.0
        %3700 = vmatpush1.msra.mxu0 %v3665
        %3701 = vmatprep.subr.mxu0 0.0
        %3702 = vmatpush1.msra.mxu0 %v3664
        %3703 = vmatprep.subr.mxu0 0.0
        %3704 = vmatpush1.msra.mxu0 %v3663
        %3705 = vmatprep.subr.mxu0 0.0
        %3706 = vmatpush1.msra.mxu0 %v3662
        %3707 = vmatprep.subr.mxu0 0.0
        %3708 = vmatpush1.msra.mxu0 %v3661
        %3709 = vmatprep.subr.mxu0 0.0
        %3710 = vmatpush2.msra.mxu0 0.0
        %3711 = vmatprep.subr.mxu0 0.0
        %3712 = vmatpush2.msra.mxu0 0.0
        %3713 = vmatprep.subr.mxu0 0.0
        %3714 = vmatpush2.msra.mxu0 0.0
        %3715 = vmatprep.subr.mxu0 0.0
        %3716 = vmatpush2.msra.mxu0 0.0
        %3717 = vmatprep.subr.mxu0 0.0
        %3718 = vmatpush2.msra.mxu0 0.0
        %3719 = vmatprep.subr.mxu0 0.0
        %3720 = vmatpush2.msra.mxu0 0.0
        %3721 = vmatprep.subr.mxu0 0.0
        %3722 = vmatpush2.msra.mxu0 0.0
        %3723 = vmatprep.subr.mxu0 0.0
        %3724 = vmatpush2.msra.mxu0 0.0
        %3725 = vmatprep.subr.mxu0 0.0
        %3726 = vmatpush2.msra.mxu0 0.0
        %3727 = vmatprep.subr.mxu0 0.0
        %3728 = vmatpush2.msra.mxu0 0.0
        %3729 = vmatprep.subr.mxu0 0.0
        %3730 = vmatpush2.msra.mxu0 0.0
        %3731 = vmatprep.subr.mxu0 0.0
        %3732 = vmatpush2.msra.mxu0 0.0
        %3733 = vmatprep.subr.mxu0 0.0
        %3734 = vmatpush2.msra.mxu0 0.0
        %3735 = vmatprep.subr.mxu0 0.0
        %3736 = vmatpush2.msra.mxu0 0.0
        %3737 = vmatprep.subr.mxu0 0.0
        %3738 = vmatpush2.msra.mxu0 0.0
        %3739 = vmatprep.subr.mxu0 0.0
        %3740 = vmatpush2.msra.mxu0 0.0
        %3741 = vmatprep.mubr.f32.mxu0 0.0
        %3742 = vmatmul.mubr.f32.gmra.mxu0 %v3398
        %v3743 = vpop.f32.mrf.mxu0
        %v3744 = vadd.f32 0.0, %v3743
        %v3745 = vpop.f32.mrf.mxu0
        %3746 = vdwg.mxu0
        %v3747 = vadd.f32 %v3659, %v3744
        %v3748 = vld [vmem:[%s6] sm:$0x1]
        %v3750 = vlaneseq
        %v3751 = vshrl.u32 %v3750, 7
        %v3752 = vsub.s32 0, %v3751
        %v3753 = vrot.slane %v3748, %v3752
        %v3755 = vadd.f32 %v3747, %v3753
        %v3756 = vmax.f32 %v3755, 0.0
        %v3757 = vld [vmem:[%s7] sm:$0xff]
        %v3758 = vld [vmem:[%s7 + $0x8] sm:$0xff]
        %v3759 = vld [vmem:[%s7 + $0x10] sm:$0xff]
        %v3760 = vld [vmem:[%s7 + $0x18] sm:$0xff]
        %v3761 = vld [vmem:[%s7 + $0x20] sm:$0xff]
        %v3762 = vld [vmem:[%s7 + $0x28] sm:$0xff]
        %v3763 = vld [vmem:[%s7 + $0x30] sm:$0xff]
        %v3764 = vld [vmem:[%s7 + $0x38] sm:$0xff]
        %v3765 = vld [vmem:[%s8] sm:$0x1]
        %v3767 = vlaneseq
        %v3768 = vshrl.u32 %v3767, 7
        %v3769 = vsub.s32 0, %v3768
        %v3770 = vrot.slane %v3765, %v3769
        %vm3772 = vcmask 523264
        %v3774 = vsel %vm3772, %v3756, 0
        %3776 = vmatprep.subr.mxu0 0.0
        %3777 = vmatpush1.msra.mxu0 0.0
        %3778 = vmatprep.subr.mxu0 0.0
        %3779 = vmatpush1.msra.mxu0 0.0
        %3780 = vmatprep.subr.mxu0 0.0
        %3781 = vmatpush1.msra.mxu0 0.0
        %3782 = vmatprep.subr.mxu0 0.0
        %3783 = vmatpush1.msra.mxu0 0.0
        %3784 = vmatprep.subr.mxu0 0.0
        %3785 = vmatpush1.msra.mxu0 0.0
        %3786 = vmatprep.subr.mxu0 0.0
        %3787 = vmatpush1.msra.mxu0 0.0
        %3788 = vmatprep.subr.mxu0 0.0
        %3789 = vmatpush1.msra.mxu0 0.0
        %3790 = vmatprep.subr.mxu0 0.0
        %3791 = vmatpush1.msra.mxu0 0.0
        %3792 = vmatprep.subr.mxu0 0.0
        %3793 = vmatpush1.msra.mxu0 %v3764
        %3794 = vmatprep.subr.mxu0 0.0
        %3795 = vmatpush1.msra.mxu0 %v3763
        %3796 = vmatprep.subr.mxu0 0.0
        %3797 = vmatpush1.msra.mxu0 %v3762
        %3798 = vmatprep.subr.mxu0 0.0
        %3799 = vmatpush1.msra.mxu0 %v3761
        %3800 = vmatprep.subr.mxu0 0.0
        %3801 = vmatpush1.msra.mxu0 %v3760
        %3802 = vmatprep.subr.mxu0 0.0
        %3803 = vmatpush1.msra.mxu0 %v3759
        %3804 = vmatprep.subr.mxu0 0.0
        %3805 = vmatpush1.msra.mxu0 %v3758
        %3806 = vmatprep.subr.mxu0 0.0
        %3807 = vmatpush1.msra.mxu0 %v3757
        %3808 = vmatprep.subr.mxu0 0.0
        %3809 = vmatpush2.msra.mxu0 0.0
        %3810 = vmatprep.subr.mxu0 0.0
        %3811 = vmatpush2.msra.mxu0 0.0
        %3812 = vmatprep.subr.mxu0 0.0
        %3813 = vmatpush2.msra.mxu0 0.0
        %3814 = vmatprep.subr.mxu0 0.0
        %3815 = vmatpush2.msra.mxu0 0.0
        %3816 = vmatprep.subr.mxu0 0.0
        %3817 = vmatpush2.msra.mxu0 0.0
        %3818 = vmatprep.subr.mxu0 0.0
        %3819 = vmatpush2.msra.mxu0 0.0
        %3820 = vmatprep.subr.mxu0 0.0
        %3821 = vmatpush2.msra.mxu0 0.0
        %3822 = vmatprep.subr.mxu0 0.0
        %3823 = vmatpush2.msra.mxu0 0.0
        %3824 = vmatprep.subr.mxu0 0.0
        %3825 = vmatpush2.msra.mxu0 0.0
        %3826 = vmatprep.subr.mxu0 0.0
        %3827 = vmatpush2.msra.mxu0 0.0
        %3828 = vmatprep.subr.mxu0 0.0
        %3829 = vmatpush2.msra.mxu0 0.0
        %3830 = vmatprep.subr.mxu0 0.0
        %3831 = vmatpush2.msra.mxu0 0.0
        %3832 = vmatprep.subr.mxu0 0.0
        %3833 = vmatpush2.msra.mxu0 0.0
        %3834 = vmatprep.subr.mxu0 0.0
        %3835 = vmatpush2.msra.mxu0 0.0
        %3836 = vmatprep.subr.mxu0 0.0
        %3837 = vmatpush2.msra.mxu0 0.0
        %3838 = vmatprep.subr.mxu0 0.0
        %3839 = vmatpush2.msra.mxu0 0.0
        %3840 = vmatprep.mubr.f32.mxu0 0.0
        %3841 = vmatmul.mubr.f32.gmra.mxu0 %v3774
        %v3842 = vpop.f32.mrf.mxu0
        %v3843 = vadd.f32 %v3770, %v3842
        %v3844 = vpop.f32.mrf.mxu0
        %3845 = vdwg.mxu0
        %3846 = vmax.xlane.f32.xlu0 %v3843
        %v3847 = vpop.xlane.xlu0 %3846
        %v3848 = vsub.f32 %v3843, %v3847
        %v3849 = vmul.f32 %v3848, 1.442695
        %v3850 = vpow.pop %v3849
        %3851 = vadd.xlane.f32.xlu0 %v3850
        %v3852 = vpop.xlane.xlu0 %3851
        %v3853 = vlog2.pop %v3852
        %v3854 = vmul.f32 %v3853, 0.6931472
        %v3855 = vsub.f32 %v3848, %v3854
        %3856 = vst [vmem:[%s473] sm:$0xff] %v3855
        %s3857 = sand.u32 %s225, 1
        %s3858 = scalar_lea.sflag [#allocation4], %s3857
        %s3859 = sand.u32 %s225, 1
        %s3860 = smul.addr %s3859, 8
        %s3861 = scalar_lea.vmem [#allocation3], %s3860
        // Predicated region
        $region95: #{net_forward.1} parent=89 // pred_check
          %p3862 = pneg %p235
        $region96: #{net_forward.1} parent=89 // pred_check_branch
          %3864 = sbr.rel (%p3862) target = $region98
        $region97: #{net_forward.1} parent=89 // pred_region
          %s3866 = ssub.s32 128, 128
          %3867 = vsyncadd %s3858, %s3866
          %s3868 = smul.addr %s23, 128
          %s3869 = scalar_lea.hbm %s9, %s3868
          %s3871 = sshll.u32 %s3861, 4
          %s3872 = int_to_ptr.vmem [resolvable:$true] %s3871
          %3874 = dma.vmem_to_hbm [thread:$0]  %s3872, 128, %s3869, %s3858
        $region98: #{net_forward.1} parent=89 // pred_fallthru
          _
      $region90: #{net_forward.1} parent=5 // pred_fallthru
        _
      %p3875 = scmp.le.s32.totalorder 2, %s18
      // Predicated region
      $region99: #{net_forward.1} parent=5 // pred_check
        %p3876 = pneg %p3875
      $region100: #{net_forward.1} parent=5 // pred_check_branch
        %3878 = sbr.rel (%p3876) target = $region102
      $region101: #{net_forward.1} parent=5 // pred_region
        %s3879 = ssub.s32 %s18, 2
        // Predicated region
        $region103: #{net_forward.1} parent=101 // pred_check
          %p3880 = pneg %p241
        $region104: #{net_forward.1} parent=101 // pred_check_branch
          %3882 = sbr.rel (%p3880) target = $region106
        $region105: #{net_forward.1} parent=101 // pred_region
          %s3883 = sand.u32 %s226, 1
          %s3884 = scalar_lea.sflag [#allocation4], %s3883
          %s3885 = sand.u32 %s226, 1
          %s3886 = smul.addr %s3885, 8
          %s3887 = scalar_lea.vmem [#allocation3], %s3886
          %3888 = dma.done %s3884, 128
        $region106: #{net_forward.1} parent=101 // pred_fallthru
          _
      $region102: #{net_forward.1} parent=5 // pred_fallthru
        _
    $region6: #{net_forward.1} parent=1 // loop_footer
      %s22 = sadd.s32 1, %s18
    $region7: #{net_forward.1} parent=1 // loop_footer_branch
      %17 = sbr.rel target = $region3
    $region8: #{net_forward.1} parent=1 // loop_exit
      _
    %3889 = vsyncpa [#allocation4], 1
    %s3890 = scalar_lea.sflag [#allocation4], 1
    %3891 = vsyncpa %s3890, 1

</llo_original>
